<compile_context>
chip_gen: v7x
topology: tpu7x:2x2x1
jax: 0.10.0
libtpu: 0.0.40
codegen_flags: <defaults>
</compile_context>

<pallas_src>
import functools

import jax
import jax.numpy as jnp
from jax import lax
from jax.experimental import pallas as pl
from jax.experimental.pallas import tpu as pltpu


def _round_up(x, m):
    return ((x + m - 1) // m) * m


@functools.lru_cache(maxsize=None)
def _vmem_limit_bytes():
    """Generation-aware scoped-VMEM limit (~3/4 of physical, 32 MiB floor)."""
    try:
        cap = int(pltpu.get_tpu_info().vmem_capacity_bytes)
    except Exception:
        return 32 * 1024 * 1024
    return max(32 * 1024 * 1024, min(100 * 1024 * 1024, (3 * cap) // 4))


@functools.lru_cache(maxsize=None)
def _exp_dtype():
    """bf16 exp on v6e/v7x (bf16 EUP), f32 on v5e and older / unknown."""
    try:
        kind = jax.devices()[0].device_kind.lower()
    except Exception:
        kind = ""
    if (not kind) or any(t in kind for t in ("v2", "v3", "v4", "v5")):
        return jnp.float32
    return jnp.bfloat16


# ----------------------------- Pallas matmul ------------------------------- #

def _matmul_bias_kernel(x_ref, w_ref, b_ref, o_ref):
    o_ref[...] = (
        jnp.dot(x_ref[...], w_ref[...], preferred_element_type=jnp.float32)
        + b_ref[...]
    ).astype(o_ref.dtype)


def _matmul_bias_acc_kernel(x_ref, w_ref, b_ref, o_ref, acc_ref):
    @pl.when(pl.program_id(1) == 0)
    def _():
        acc_ref[...] = jnp.zeros_like(acc_ref)

    acc_ref[...] += jnp.dot(x_ref[...], w_ref[...],
                            preferred_element_type=jnp.float32)

    @pl.when(pl.program_id(1) == pl.num_programs(1) - 1)
    def _():
        o_ref[...] = (acc_ref[...] + b_ref[...]).astype(o_ref.dtype)


def _pick_m_tile(M):
    # Prefer >= 2 grid steps (keeps both v7x TensorCores busy) with large tiles.
    for tm in (1024, 512, 256):
        if M % tm == 0 and M // tm >= 2:
            return tm, M
    if M % 256 == 0:            # e.g. M == 256: one full tile
        return M, M
    if M <= 512:
        Mp = _round_up(M, 8)
        return Mp, Mp
    Mp = _round_up(M, 256)
    return 256, Mp


def _pick_k_tile(K):
    if K <= 2048:
        return K
    for tk in (2048, 1024, 512, 256, 128):
        if K % tk == 0:
            return tk
    return K


def matmul_bias(x, w, b=None):
    """(M, K) @ (K, N) [+ b] with bf16 MXU inputs, f32 accumulation, lane-dense
    (128-padded) N, large M tiles and an optional K-reduction grid axis."""
    M, K = x.shape
    K2, N = w.shape
    assert K == K2

    Np = _round_up(N, 128)
    if Np != N:
        w = jnp.pad(w, ((0, 0), (0, Np - N)))
    if b is None:
        b = jnp.zeros((Np,), jnp.float32)
    else:
        b = b.astype(jnp.float32)
        if Np != N:
            b = jnp.pad(b, (0, Np - N))
    b2 = b.reshape(1, Np)

    tm, Mp = _pick_m_tile(M)
    if Mp != M:
        x = jnp.pad(x, ((0, Mp - M), (0, 0)))
    tk = _pick_k_tile(K)
    nk = K // tk

    x = x.astype(jnp.bfloat16)
    w = w.astype(jnp.bfloat16)

    if nk == 1:
        out = pl.pallas_call(
            _matmul_bias_kernel,
            out_shape=jax.ShapeDtypeStruct((Mp, Np), jnp.float32),
            grid=(Mp // tm,),
            in_specs=[
                pl.BlockSpec((tm, K), lambda i: (i, 0)),
                pl.BlockSpec((K, Np), lambda i: (0, 0)),
                pl.BlockSpec((1, Np), lambda i: (0, 0)),
            ],
            out_specs=pl.BlockSpec((tm, Np), lambda i: (i, 0)),
            compiler_params=pltpu.CompilerParams(
                dimension_semantics=("parallel",),
                vmem_limit_bytes=_vmem_limit_bytes(),
            ),
        )(x, w, b2)
    else:
        out = pl.pallas_call(
            _matmul_bias_acc_kernel,
            out_shape=jax.ShapeDtypeStruct((Mp, Np), jnp.float32),
            grid_spec=pltpu.PrefetchScalarGridSpec(
                num_scalar_prefetch=0,
                grid=(Mp // tm, nk),
                in_specs=[
                    pl.BlockSpec((tm, tk), lambda i, k: (i, k)),
                    pl.BlockSpec((tk, Np), lambda i, k: (k, 0)),
                    pl.BlockSpec((1, Np), lambda i, k: (0, 0)),
                ],
                out_specs=pl.BlockSpec((tm, Np), lambda i, k: (i, 0)),
                scratch_shapes=[pltpu.VMEM((tm, Np), jnp.float32)],
            ),
            compiler_params=pltpu.CompilerParams(
                dimension_semantics=("parallel", "arbitrary"),
                vmem_limit_bytes=_vmem_limit_bytes(),
            ),
        )(x, w, b2)
    return out[:M, :N]


# --------------------------- Pallas attention ------------------------------ #

def _attention_kernel(q_ref, k_ref, v_ref, o_ref, m_ref, acc_ref, *, exp_dtype):
    """Fused-bias flash attention over one (group-block, q-tile, kv-tile).

    Lane axis is the query axis everywhere.
      q_ref : (Gt, D, tq)   bf16   D = dkh + 2S, rows [q*scale ; rel^T*scale]
      k_ref : (Gt, D, tkv)  bf16   rows [k ; 0/1 selector]
      v_ref : (Gt, dvh+1, tkv) bf16  last row is ones (softmax denominator)
      o_ref : (Gt, dvh, tq) f32
    """
    kv = pl.program_id(2)
    gt = q_ref.shape[0]
    dvh = o_ref.shape[1]

    @pl.when(kv == 0)
    def _():
        m_ref[...] = jnp.full_like(m_ref, -jnp.inf)
        acc_ref[...] = jnp.zeros_like(acc_ref)

    for g in range(gt):  # static unroll over (batch*head) groups in this block
        # QK + relative bias in ONE MXU contraction (selector rows of k pick
        # the rel_h/rel_w rows appended to q).
        s = lax.dot_general(k_ref[g], q_ref[g],
                            (((0,), (0,)), ((), ())),
                            preferred_element_type=jnp.float32)       # (tkv, tq)
        m_prev = m_ref[g]                                             # (1, tq)
        m_new = jnp.maximum(m_prev, jnp.max(s, axis=0, keepdims=True))
        alpha = jnp.exp(m_prev - m_new)
        p = jnp.exp((s - m_new).astype(exp_dtype))                    # (tkv, tq)
        # PV and the softmax denominator in one MXU op (last v row is ones).
        pv = lax.dot_general(v_ref[g], p.astype(v_ref.dtype),
                             (((1,), (0,)), ((), ())),
                             preferred_element_type=jnp.float32)      # (dvh+1, tq)
        acc_ref[g] = alpha * acc_ref[g] + pv
        m_ref[g] = m_new

    @pl.when(kv == pl.num_programs(2) - 1)
    def _():
        acc = acc_ref[...]
        inv_l = pl.reciprocal(acc[:, dvh:dvh + 1, :], approx=True)
        o_ref[...] = (acc[:, :dvh, :] * inv_l).astype(o_ref.dtype)


def _pick_seq_tile(n):
    if n <= 1024:
        return n
    for t in (1024, 512, 256, 128):
        if n % t == 0:
            return t
    return n


def _pick_group_tile(G, tq, tkv):
    # Amortize per-step overhead over several (batch, head) groups while
    # keeping the f32 (tkv, tq) temporaries modest and leaving >= 2 parallel
    # grid steps (two TensorCores on v7x).
    budget = 8 * 1024 * 1024
    for gt in (8, 4, 2):
        if G % gt == 0 and G // gt >= 2 and 2 * gt * tkv * tq * 4 <= budget:
            return gt
    return 1


def attention(q_aug, k_aug, v_aug, dvh):
    """q_aug/k_aug: (G, D, HW) bf16, v_aug: (G, dvh+1, HW) bf16.

    Returns (G, dvh, HW) float32, G = batch * num_heads.
    """
    G, D, HW = q_aug.shape
    tq = _pick_seq_tile(HW)
    tkv = _pick_seq_tile(HW)
    Gt = _pick_group_tile(G, tq, tkv)
    nq = HW // tq
    nkv = HW // tkv

    kernel = functools.partial(_attention_kernel, exp_dtype=_exp_dtype())
    return pl.pallas_call(
        kernel,
        out_shape=jax.ShapeDtypeStruct((G, dvh, HW), jnp.float32),
        grid_spec=pltpu.PrefetchScalarGridSpec(
            num_scalar_prefetch=0,
            grid=(G // Gt, nq, nkv),
            in_specs=[
                pl.BlockSpec((Gt, D, tq), lambda g, qi, kv: (g, 0, qi)),
                pl.BlockSpec((Gt, D, tkv), lambda g, qi, kv: (g, 0, kv)),
                pl.BlockSpec((Gt, dvh + 1, tkv), lambda g, qi, kv: (g, 0, kv)),
            ],
            out_specs=pl.BlockSpec((Gt, dvh, tq), lambda g, qi, kv: (g, 0, qi)),
            scratch_shapes=[
                pltpu.VMEM((Gt, 1, tq), jnp.float32),        # running max
                pltpu.VMEM((Gt, dvh + 1, tq), jnp.float32),  # [out acc | denom]
            ],
        ),
        compiler_params=pltpu.CompilerParams(
            dimension_semantics=("parallel", "parallel", "arbitrary"),
            vmem_limit_bytes=_vmem_limit_bytes(),
        ),
    )(q_aug, k_aug, v_aug)


# ------------------------------ JAX glue ----------------------------------- #

def conv2d_im2col(x, weight, bias, padding):
    """PyTorch-layout conv: x (B,Cin,H,W), weight (Cout,Cin,kH,kW)."""
    B, Cin, H, W = x.shape
    Cout, _, kH, kW = weight.shape
    xh = jnp.transpose(x, (0, 2, 3, 1)).astype(jnp.bfloat16)          # NHWC bf16
    xp = jnp.pad(xh, ((0, 0), (padding, padding), (padding, padding), (0, 0)))
    Ho = H + 2 * padding - kH + 1
    Wo = W + 2 * padding - kW + 1
    # TODO(synk): the (kH*kW*Cin)-wide patch matrix is still materialized in HBM
    # (now in bf16); a fully fused tap-loop conv kernel would remove it.
    cols = [xp[:, i:i + Ho, j:j + Wo, :] for i in range(kH) for j in range(kW)]
    patches = jnp.concatenate(cols, axis=-1).reshape(B * Ho * Wo, kH * kW * Cin)
    # weight -> (kH*kW*Cin, Cout) matching the (ki, kj, cin) K-order of patches
    w_flat = jnp.transpose(weight, (2, 3, 1, 0)).reshape(kH * kW * Cin, Cout)
    out = matmul_bias(patches, w_flat, bias)                          # Pallas
    return out.reshape(B, Ho, Wo, Cout).transpose(0, 3, 1, 2)


def _rel_to_abs(rel, S):
    """Mirror of the torch pad/view/slice relative->absolute trick.

    rel: (B, Nh, S, S, 2S-1) -> (B, Nh, S, S, S)
    """
    B, Nh = rel.shape[0], rel.shape[1]
    r = rel.reshape(B, Nh * S, S, 2 * S - 1)
    r = jnp.concatenate([r, jnp.zeros((B, Nh * S, S, 1), r.dtype)], axis=-1)
    r = r.reshape(B, Nh * S, 2 * S * S)
    r = jnp.concatenate([r, jnp.zeros((B, Nh * S, S - 1), r.dtype)], axis=-1)
    r = r.reshape(B, Nh * S, S + 1, 2 * S - 1)
    r = r[:, :, :S, S - 1:]
    return r.reshape(B, Nh, S, S, S)


def relative_logits_compact(q5, key_rel_w, key_rel_h, S, Nh):
    """q5: (B, Nh, S, S, dkh), already scaled.  Returns (B, Nh, S*S, 2S):

    [..., :S] = rel_h bias indexed by absolute key row i
    [..., S:] = rel_w bias indexed by absolute key column j
    """
    B, dkh = q5.shape[0], q5.shape[-1]
    nrel = 2 * S - 1
    # single fused projection against [key_rel_w ; key_rel_h]
    w_cat = jnp.concatenate([key_rel_w, key_rel_h], axis=0).T          # (dkh, 2*(2S-1))
    proj = matmul_bias(q5.reshape(B * Nh * S * S, dkh), w_cat)         # f32
    proj = proj.reshape(B, Nh, S, S, 2 * nrel)

    rel_w_abs = _rel_to_abs(proj[..., :nrel], S)                       # [b,h,x,y,j]
    rh_t = jnp.transpose(proj[..., nrel:], (0, 1, 3, 2, 4))            # [b,h,y,x,m]
    rel_h_abs = _rel_to_abs(rh_t, S)                                   # [b,h,y,x,i]
    rel_h_q = jnp.transpose(rel_h_abs, (0, 1, 3, 2, 4))                # [b,h,x,y,i]

    return jnp.concatenate(
        [rel_h_q.reshape(B, Nh, S * S, S), rel_w_abs.reshape(B, Nh, S * S, S)],
        axis=-1)


def attention_augmented_conv2d(x, params, *, dim_k, dim_v, num_h):
    """Forward pass of AttentionAugmentedConv2d. x: (B, Cin, H, W) NCHW f32."""
    B, Cin, H, W = x.shape
    dkh = dim_k // num_h
    dvh = dim_v // num_h
    scale = float(dkh) ** -0.5

    qkv = conv2d_im2col(x, params["w_qkv"], params["b_qkv"], padding=1)
    S = qkv.shape[2]
    assert qkv.shape[3] == S, "relative-logits trick (as in the reference) needs H == W"
    HW = S * S

    # q pre-scaled by dkh**-0.5 (as in torch), so the rel bias (linear in q)
    # and the QK logits need no further scaling.
    q = qkv[:, :dim_k] * scale
    k = qkv[:, dim_k:2 * dim_k]
    v = qkv[:, 2 * dim_k:]

    # compact relative-position bias (B, Nh, HW, 2S); never (B, Nh, HW, HW).
    q5 = jnp.transpose(q.reshape(B, num_h, dkh, S, S), (0, 1, 3, 4, 2))
    rel_cat = relative_logits_compact(q5, params["key_rel_w"], params["key_rel_h"],
                                      S, num_h)

    # 0/1 selector rows appended to k: expands the compact bias to the full
    # (key, query) bias inside the SAME MXU contraction as QK.
    idx = jnp.arange(S, dtype=jnp.int32)
    cols = jnp.arange(HW, dtype=jnp.int32)
    e_h = (cols[None, :] // S == idx[:, None])
    e_w = (cols[None, :] % S == idx[:, None])
    e_cat = jnp.concatenate([e_h, e_w], axis=0).astype(jnp.bfloat16)   # (2S, HW)

    G = B * num_h
    q_aug = jnp.concatenate(
        [q.reshape(G, dkh, HW).astype(jnp.bfloat16),
         jnp.transpose(rel_cat.reshape(G, HW, 2 * S), (0, 2, 1)).astype(jnp.bfloat16)],
        axis=1)                                                        # (G, dkh+2S, HW)
    k_aug = jnp.concatenate(
        [k.reshape(G, dkh, HW).astype(jnp.bfloat16),
         jnp.broadcast_to(e_cat[None], (G, 2 * S, HW))],
        axis=1)                                                        # (G, dkh+2S, HW)
    v_aug = jnp.concatenate(
        [v.reshape(G, dvh, HW).astype(jnp.bfloat16),
         jnp.ones((G, 1, HW), jnp.bfloat16)],                          # denom row
        axis=1)                                                        # (G, dvh+1, HW)

    att = attention(q_aug, k_aug, v_aug, dvh)                          # (G, dvh, HW) f32

    # torch semantics: att (B, Nh, HW, dvh) raw-viewed as (B, dim_v, H, W)
    att = jnp.transpose(att.reshape(B, num_h, dvh, HW), (0, 1, 3, 2))
    att = att.reshape(B, dim_v, S, S)

    # 1x1 conv_att via the Pallas matmul.
    # TODO(synk): not fused into the attention kernel because the reference's
    # raw .view interleaves head/spatial/channel, so conv_att mixes across heads.
    att_rows = jnp.transpose(att, (0, 2, 3, 1)).reshape(B * HW, dim_v)
    w_att = params["w_att"].reshape(dim_v, dim_v).T
    att = matmul_bias(att_rows, w_att, params["b_att"])
    att = att.reshape(B, S, S, dim_v).transpose(0, 3, 1, 2)

    xc = conv2d_im2col(x, params["w_conv"], params["b_conv"], padding=1)
    return jnp.concatenate([xc, att], axis=1)


# ------------------------------- demo -------------------------------------- #

if __name__ == "__main__":
    key = jax.random.PRNGKey(0)
    B, Cin, H, W = 2, 4, 16, 16
    out_channels, dim_k, dim_v, num_h = 16, 8, 4, 2
    dkh = dim_k // num_h

    ks = jax.random.split(key, 9)
    # TODO(synk): the PyTorch module re-samples key_rel_{w,h} with torch.randn on
    # every forward call; here they are initialized once, deterministically.
    params = {
        "w_qkv": 0.1 * jax.random.normal(ks[0], (2 * dim_k + dim_v, Cin, 3, 3), jnp.float32),
        "b_qkv": 0.1 * jax.random.normal(ks[1], (2 * dim_k + dim_v,), jnp.float32),
        "w_conv": 0.1 * jax.random.normal(ks[2], (out_channels - dim_v, Cin, 3, 3), jnp.float32),
        "b_conv": 0.1 * jax.random.normal(ks[3], (out_channels - dim_v,), jnp.float32),
        "w_att": 0.1 * jax.random.normal(ks[4], (dim_v, dim_v, 1, 1), jnp.float32),
        "b_att": 0.1 * jax.random.normal(ks[5], (dim_v,), jnp.float32),
        "key_rel_w": jax.random.normal(ks[6], (2 * W - 1, dkh), jnp.float32),
        "key_rel_h": jax.random.normal(ks[7], (2 * H - 1, dkh), jnp.float32),
    }
    x = jax.random.normal(ks[8], (B, Cin, H, W), jnp.float32)

    fwd = jax.jit(functools.partial(attention_augmented_conv2d,
                                    dim_k=dim_k, dim_v=dim_v, num_h=num_h))
    out = fwd(x, params)
    jax.block_until_ready(out)
    assert out.shape == (B, out_channels, H, W), out.shape
    assert bool(jnp.all(jnp.isfinite(out)))
    print("KERNEL_OK")
</pallas_src>

<mosaic_0001>
module attributes {stable_mosaic.version = 11 : i64} {
  func.func @_matmul_bias_kernel(%arg0: i32, %arg1: memref<256x36xbf16, #tpu.memory_space<vmem>>, %arg2: memref<36x128xbf16, #tpu.memory_space<vmem>>, %arg3: memref<1x128xf32, #tpu.memory_space<vmem>>, %arg4: memref<256x128xf32, #tpu.memory_space<vmem>>) attributes {dimension_semantics = [#tpu.dimension_semantics<parallel>], iteration_bounds = array<i64: 2>, scalar_prefetch = 0 : i64, scratch_operands = 0 : i64, tpu.core_type = #tpu.core_type<tc>, window_params = [{transform_indices = @transform_0, window_bounds = array<i64: 256, 36>}, {pipeline_mode = #tpu.pipeline_mode<synchronous>, transform_indices = @transform_1, window_bounds = array<i64: 36, 128>}, {pipeline_mode = #tpu.pipeline_mode<synchronous>, transform_indices = @transform_2, window_bounds = array<i64: 1, 128>}, {transform_indices = @transform_3, window_bounds = array<i64: 256, 128>}]} {
    %c0 = arith.constant 0 : index
    %c0_0 = arith.constant 0 : index
    %0 = vector.load %arg1[%c0, %c0_0] : memref<256x36xbf16, #tpu.memory_space<vmem>>, vector<256x36xbf16>
    %c0_1 = arith.constant 0 : index
    %c0_2 = arith.constant 0 : index
    %1 = vector.load %arg2[%c0_1, %c0_2] : memref<36x128xbf16, #tpu.memory_space<vmem>>, vector<36x128xbf16>
    %cst = arith.constant dense<0.000000e+00> : vector<256x128xf32>
    %2 = tpu.matmul %0, %1, %cst {dimension_numbers = #tpu.dot_dimension_numbers<[1], [0], [0], [1], [0, 0, 1, 1], [], []>} : vector<256x36xbf16>, vector<36x128xbf16>, vector<256x128xf32> -> vector<256x128xf32>
    %c0_3 = arith.constant 0 : index
    %c0_4 = arith.constant 0 : index
    %3 = vector.load %arg3[%c0_3, %c0_4] : memref<1x128xf32, #tpu.memory_space<vmem>>, vector<1x128xf32>
    %4 = vector.broadcast %3 : vector<1x128xf32> to vector<256x128xf32>
    %5 = arith.addf %2, %4 : vector<256x128xf32>
    %c0_5 = arith.constant 0 : index
    %c0_6 = arith.constant 0 : index
    %6 = vector.load %arg4[%c0_5, %c0_6] : memref<256x128xf32, #tpu.memory_space<vmem>>, vector<256x128xf32>
    tpu.vector_store %arg4[%c0_5, %c0_6], %5 {strides = array<i32>} : memref<256x128xf32, #tpu.memory_space<vmem>>, vector<256x128xf32>,
    return
  }
  func.func @transform_0(%arg0: i32) -> (i32, i32) {
    %c0_i32 = arith.constant 0 : i32
    %c0_i32_0 = arith.constant 0 : i32
    return %arg0, %c0_i32 : i32, i32
  }
  func.func @transform_1(%arg0: i32) -> (i32, i32) {
    %c0_i32 = arith.constant 0 : i32
    %c0_i32_0 = arith.constant 0 : i32
    %c0_i32_1 = arith.constant 0 : i32
    return %c0_i32, %c0_i32_0 : i32, i32
  }
  func.func @transform_2(%arg0: i32) -> (i32, i32) {
    %c0_i32 = arith.constant 0 : i32
    %c0_i32_0 = arith.constant 0 : i32
    %c0_i32_1 = arith.constant 0 : i32
    return %c0_i32, %c0_i32_0 : i32, i32
  }
  func.func @transform_3(%arg0: i32) -> (i32, i32) {
    %c0_i32 = arith.constant 0 : i32
    %c0_i32_0 = arith.constant 0 : i32
    return %arg0, %c0_i32 : i32, i32
  }
}

module attributes {stable_mosaic.version = 11 : i64} {
  func.func @_matmul_bias_kernel(%arg0: i32, %arg1: memref<512x4xbf16, #tpu.memory_space<vmem>>, %arg2: memref<4x128xbf16, #tpu.memory_space<vmem>>, %arg3: memref<1x128xf32, #tpu.memory_space<vmem>>, %arg4: memref<512x128xf32, #tpu.memory_space<vmem>>) attributes {dimension_semantics = [#tpu.dimension_semantics<parallel>], iteration_bounds = array<i64: 2>, scalar_prefetch = 0 : i64, scratch_operands = 0 : i64, tpu.core_type = #tpu.core_type<tc>, window_params = [{transform_indices = @transform_0, window_bounds = array<i64: 512, 4>}, {pipeline_mode = #tpu.pipeline_mode<synchronous>, transform_indices = @transform_1, window_bounds = array<i64: 4, 128>}, {pipeline_mode = #tpu.pipeline_mode<synchronous>, transform_indices = @transform_2, window_bounds = array<i64: 1, 128>}, {transform_indices = @transform_3, window_bounds = array<i64: 512, 128>}]} {
    %c0 = arith.constant 0 : index
    %c0_0 = arith.constant 0 : index
    %0 = vector.load %arg1[%c0, %c0_0] : memref<512x4xbf16, #tpu.memory_space<vmem>>, vector<512x4xbf16>
    %c0_1 = arith.constant 0 : index
    %c0_2 = arith.constant 0 : index
    %1 = vector.load %arg2[%c0_1, %c0_2] : memref<4x128xbf16, #tpu.memory_space<vmem>>, vector<4x128xbf16>
    %cst = arith.constant dense<0.000000e+00> : vector<512x128xf32>
    %2 = tpu.matmul %0, %1, %cst {dimension_numbers = #tpu.dot_dimension_numbers<[1], [0], [0], [1], [0, 0, 1, 1], [], []>} : vector<512x4xbf16>, vector<4x128xbf16>, vector<512x128xf32> -> vector<512x128xf32>
    %c0_3 = arith.constant 0 : index
    %c0_4 = arith.constant 0 : index
    %3 = vector.load %arg3[%c0_3, %c0_4] : memref<1x128xf32, #tpu.memory_space<vmem>>, vector<1x128xf32>
    %4 = vector.broadcast %3 : vector<1x128xf32> to vector<512x128xf32>
    %5 = arith.addf %2, %4 : vector<512x128xf32>
    %c0_5 = arith.constant 0 : index
    %c0_6 = arith.constant 0 : index
    %6 = vector.load %arg4[%c0_5, %c0_6] : memref<512x128xf32, #tpu.memory_space<vmem>>, vector<512x128xf32>
    tpu.vector_store %arg4[%c0_5, %c0_6], %5 {strides = array<i32>} : memref<512x128xf32, #tpu.memory_space<vmem>>, vector<512x128xf32>,
    return
  }
  func.func @transform_0(%arg0: i32) -> (i32, i32) {
    %c0_i32 = arith.constant 0 : i32
    %c0_i32_0 = arith.constant 0 : i32
    return %arg0, %c0_i32 : i32, i32
  }
  func.func @transform_1(%arg0: i32) -> (i32, i32) {
    %c0_i32 = arith.constant 0 : i32
    %c0_i32_0 = arith.constant 0 : i32
    %c0_i32_1 = arith.constant 0 : i32
    return %c0_i32, %c0_i32_0 : i32, i32
  }
  func.func @transform_2(%arg0: i32) -> (i32, i32) {
    %c0_i32 = arith.constant 0 : i32
    %c0_i32_0 = arith.constant 0 : i32
    %c0_i32_1 = arith.constant 0 : i32
    return %c0_i32, %c0_i32_0 : i32, i32
  }
  func.func @transform_3(%arg0: i32) -> (i32, i32) {
    %c0_i32 = arith.constant 0 : i32
    %c0_i32_0 = arith.constant 0 : i32
    return %arg0, %c0_i32 : i32, i32
  }
}

module attributes {stable_mosaic.version = 11 : i64} {
  func.func @_attention_kernel(%arg0: i32, %arg1: i32, %arg2: i32, %arg3: memref<2x36x256xbf16, #tpu.memory_space<vmem>>, %arg4: memref<2x36x256xbf16, #tpu.memory_space<vmem>>, %arg5: memref<2x3x256xbf16, #tpu.memory_space<vmem>>, %arg6: memref<2x2x256xf32, #tpu.memory_space<vmem>>, %arg7: memref<2x1x256xf32, #tpu.memory_space<vmem>>, %arg8: memref<2x3x256xf32, #tpu.memory_space<vmem>>) attributes {dimension_semantics = [#tpu.dimension_semantics<parallel>, #tpu.dimension_semantics<parallel>, #tpu.dimension_semantics<arbitrary>], iteration_bounds = array<i64: 2, 1, 1>, scalar_prefetch = 0 : i64, scratch_operands = 2 : i64, tpu.core_type = #tpu.core_type<tc>, window_params = [{transform_indices = @transform_0, window_bounds = array<i64: 2, 36, 256>}, {transform_indices = @transform_1, window_bounds = array<i64: 2, 36, 256>}, {transform_indices = @transform_2, window_bounds = array<i64: 2, 3, 256>}, {transform_indices = @transform_3, window_bounds = array<i64: 2, 2, 256>}]} {
    %c0_i32 = arith.constant 0 : i32
    %0 = arith.cmpi eq, %arg2, %c0_i32 : i32
    %1 = arith.extui %0 : i1 to i32
    %c0_i32_0 = arith.constant 0 : i32
    %2 = arith.cmpi ne, %1, %c0_i32_0 : i32
    scf.if %2 {
      %cst_48 = arith.constant 0xFF800000 : f32
      %66 = vector.broadcast %cst_48 : f32 to vector<2x1x256xf32>
      %c0_49 = arith.constant 0 : index
      %c0_50 = arith.constant 0 : index
      %c0_51 = arith.constant 0 : index
      %67 = vector.load %arg7[%c0_49, %c0_50, %c0_51] : memref<2x1x256xf32, #tpu.memory_space<vmem>>, vector<2x1x256xf32>
      tpu.vector_store %arg7[%c0_49, %c0_50, %c0_51], %66 {strides = array<i32>} : memref<2x1x256xf32, #tpu.memory_space<vmem>>, vector<2x1x256xf32>,
      %cst_52 = arith.constant 0.000000e+00 : f32
      %68 = vector.broadcast %cst_52 : f32 to vector<2x3x256xf32>
      %c0_53 = arith.constant 0 : index
      %c0_54 = arith.constant 0 : index
      %c0_55 = arith.constant 0 : index
      %69 = vector.load %arg8[%c0_53, %c0_54, %c0_55] : memref<2x3x256xf32, #tpu.memory_space<vmem>>, vector<2x3x256xf32>
      tpu.vector_store %arg8[%c0_53, %c0_54, %c0_55], %68 {strides = array<i32>} : memref<2x3x256xf32, #tpu.memory_space<vmem>>, vector<2x3x256xf32>,
    } else {
    }
    %c0 = arith.constant 0 : index
    %c0_1 = arith.constant 0 : index
    %c0_2 = arith.constant 0 : index
    %3 = vector.load %arg4[%c0, %c0_1, %c0_2] : memref<2x36x256xbf16, #tpu.memory_space<vmem>>, vector<1x36x256xbf16>
    %4 = vector.shape_cast %3 : vector<1x36x256xbf16> to vector<36x256xbf16>
    %c0_3 = arith.constant 0 : index
    %c0_4 = arith.constant 0 : index
    %c0_5 = arith.constant 0 : index
    %5 = vector.load %arg3[%c0_3, %c0_4, %c0_5] : memref<2x36x256xbf16, #tpu.memory_space<vmem>>, vector<1x36x256xbf16>
    %6 = vector.shape_cast %5 : vector<1x36x256xbf16> to vector<36x256xbf16>
    %cst = arith.constant dense<0.000000e+00> : vector<256x256xf32>
    %7 = tpu.matmul %4, %6, %cst {dimension_numbers = #tpu.dot_dimension_numbers<[0], [0], [1], [1], [0, 1, 1, 1], [], []>} : vector<36x256xbf16>, vector<36x256xbf16>, vector<256x256xf32> -> vector<256x256xf32>
    %c0_6 = arith.constant 0 : index
    %c0_7 = arith.constant 0 : index
    %c0_8 = arith.constant 0 : index
    %8 = vector.load %arg7[%c0_6, %c0_7, %c0_8] : memref<2x1x256xf32, #tpu.memory_space<vmem>>, vector<1x1x256xf32>
    %9 = vector.shape_cast %8 : vector<1x1x256xf32> to vector<1x256xf32>
    %cst_9 = arith.constant dense<0xFF800000> : vector<256xf32>
    %10 = vector.multi_reduction <maximumf>, %7, %cst_9 [0] : vector<256x256xf32> to vector<256xf32>
    %11 = vector.shape_cast %10 : vector<256xf32> to vector<1x256xf32>
    %12 = arith.maximumf %9, %11 : vector<1x256xf32>
    %13 = arith.subf %9, %12 : vector<1x256xf32>
    %14 = math.exp %13 : vector<1x256xf32>
    %15 = vector.broadcast %12 : vector<1x256xf32> to vector<256x256xf32>
    %16 = arith.subf %7, %15 : vector<256x256xf32>
    %17 = arith.truncf %16 : vector<256x256xf32> to vector<256x256xbf16>
    %18 = math.exp %17 : vector<256x256xbf16>
    %c0_10 = arith.constant 0 : index
    %c0_11 = arith.constant 0 : index
    %c0_12 = arith.constant 0 : index
    %19 = vector.load %arg5[%c0_10, %c0_11, %c0_12] : memref<2x3x256xbf16, #tpu.memory_space<vmem>>, vector<1x3x256xbf16>
    %20 = vector.shape_cast %19 : vector<1x3x256xbf16> to vector<3x256xbf16>
    %cst_13 = arith.constant dense<0.000000e+00> : vector<3x256xf32>
    %21 = tpu.matmul %20, %18, %cst_13 {dimension_numbers = #tpu.dot_dimension_numbers<[1], [0], [0], [1], [0, 0, 1, 1], [], []>} : vector<3x256xbf16>, vector<256x256xbf16>, vector<3x256xf32> -> vector<3x256xf32>
    %c0_14 = arith.constant 0 : index
    %c0_15 = arith.constant 0 : index
    %c0_16 = arith.constant 0 : index
    %22 = vector.load %arg8[%c0_14, %c0_15, %c0_16] : memref<2x3x256xf32, #tpu.memory_space<vmem>>, vector<1x3x256xf32>
    %23 = vector.shape_cast %22 : vector<1x3x256xf32> to vector<3x256xf32>
    %24 = vector.broadcast %14 : vector<1x256xf32> to vector<3x256xf32>
    %25 = arith.mulf %24, %23 : vector<3x256xf32>
    %26 = arith.addf %25, %21 : vector<3x256xf32>
    %c0_17 = arith.constant 0 : index
    %c0_18 = arith.constant 0 : index
    %c0_19 = arith.constant 0 : index
    %27 = vector.load %arg8[%c0_17, %c0_18, %c0_19] : memref<2x3x256xf32, #tpu.memory_space<vmem>>, vector<1x3x256xf32>
    %28 = vector.shape_cast %27 : vector<1x3x256xf32> to vector<3x256xf32>
    %29 = vector.shape_cast %26 : vector<3x256xf32> to vector<1x3x256xf32>
    tpu.vector_store %arg8[%c0_17, %c0_18, %c0_19], %29 {strides = array<i32>} : memref<2x3x256xf32, #tpu.memory_space<vmem>>, vector<1x3x256xf32>,
    %c0_20 = arith.constant 0 : index
    %c0_21 = arith.constant 0 : index
    %c0_22 = arith.constant 0 : index
    %30 = vector.load %arg7[%c0_20, %c0_21, %c0_22] : memref<2x1x256xf32, #tpu.memory_space<vmem>>, vector<1x1x256xf32>
    %31 = vector.shape_cast %30 : vector<1x1x256xf32> to vector<1x256xf32>
    %32 = vector.shape_cast %12 : vector<1x256xf32> to vector<1x1x256xf32>
    tpu.vector_store %arg7[%c0_20, %c0_21, %c0_22], %32 {strides = array<i32>} : memref<2x1x256xf32, #tpu.memory_space<vmem>>, vector<1x1x256xf32>,
    %c1 = arith.constant 1 : index
    %c0_23 = arith.constant 0 : index
    %c0_24 = arith.constant 0 : index
    %33 = vector.load %arg4[%c1, %c0_23, %c0_24] : memref<2x36x256xbf16, #tpu.memory_space<vmem>>, vector<1x36x256xbf16>
    %34 = vector.shape_cast %33 : vector<1x36x256xbf16> to vector<36x256xbf16>
    %c1_25 = arith.constant 1 : index
    %c0_26 = arith.constant 0 : index
    %c0_27 = arith.constant 0 : index
    %35 = vector.load %arg3[%c1_25, %c0_26, %c0_27] : memref<2x36x256xbf16, #tpu.memory_space<vmem>>, vector<1x36x256xbf16>
    %36 = vector.shape_cast %35 : vector<1x36x256xbf16> to vector<36x256xbf16>
    %cst_28 = arith.constant dense<0.000000e+00> : vector<256x256xf32>
    %37 = tpu.matmul %34, %36, %cst_28 {dimension_numbers = #tpu.dot_dimension_numbers<[0], [0], [1], [1], [0, 1, 1, 1], [], []>} : vector<36x256xbf16>, vector<36x256xbf16>, vector<256x256xf32> -> vector<256x256xf32>
    %c1_29 = arith.constant 1 : index
    %c0_30 = arith.constant 0 : index
    %c0_31 = arith.constant 0 : index
    %38 = vector.load %arg7[%c1_29, %c0_30, %c0_31] : memref<2x1x256xf32, #tpu.memory_space<vmem>>, vector<1x1x256xf32>
    %39 = vector.shape_cast %38 : vector<1x1x256xf32> to vector<1x256xf32>
    %cst_32 = arith.constant dense<0xFF800000> : vector<256xf32>
    %40 = vector.multi_reduction <maximumf>, %37, %cst_32 [0] : vector<256x256xf32> to vector<256xf32>
    %41 = vector.shape_cast %40 : vector<256xf32> to vector<1x256xf32>
    %42 = arith.maximumf %39, %41 : vector<1x256xf32>
    %43 = arith.subf %39, %42 : vector<1x256xf32>
    %44 = math.exp %43 : vector<1x256xf32>
    %45 = vector.broadcast %42 : vector<1x256xf32> to vector<256x256xf32>
    %46 = arith.subf %37, %45 : vector<256x256xf32>
    %47 = arith.truncf %46 : vector<256x256xf32> to vector<256x256xbf16>
    %48 = math.exp %47 : vector<256x256xbf16>
    %c1_33 = arith.constant 1 : index
    %c0_34 = arith.constant 0 : index
    %c0_35 = arith.constant 0 : index
    %49 = vector.load %arg5[%c1_33, %c0_34, %c0_35] : memref<2x3x256xbf16, #tpu.memory_space<vmem>>, vector<1x3x256xbf16>
    %50 = vector.shape_cast %49 : vector<1x3x256xbf16> to vector<3x256xbf16>
    %cst_36 = arith.constant dense<0.000000e+00> : vector<3x256xf32>
    %51 = tpu.matmul %50, %48, %cst_36 {dimension_numbers = #tpu.dot_dimension_numbers<[1], [0], [0], [1], [0, 0, 1, 1], [], []>} : vector<3x256xbf16>, vector<256x256xbf16>, vector<3x256xf32> -> vector<3x256xf32>
    %c1_37 = arith.constant 1 : index
    %c0_38 = arith.constant 0 : index
    %c0_39 = arith.constant 0 : index
    %52 = vector.load %arg8[%c1_37, %c0_38, %c0_39] : memref<2x3x256xf32, #tpu.memory_space<vmem>>, vector<1x3x256xf32>
    %53 = vector.shape_cast %52 : vector<1x3x256xf32> to vector<3x256xf32>
    %54 = vector.broadcast %44 : vector<1x256xf32> to vector<3x256xf32>
    %55 = arith.mulf %54, %53 : vector<3x256xf32>
    %56 = arith.addf %55, %51 : vector<3x256xf32>
    %c1_40 = arith.constant 1 : index
    %c0_41 = arith.constant 0 : index
    %c0_42 = arith.constant 0 : index
    %57 = vector.load %arg8[%c1_40, %c0_41, %c0_42] : memref<2x3x256xf32, #tpu.memory_space<vmem>>, vector<1x3x256xf32>
    %58 = vector.shape_cast %57 : vector<1x3x256xf32> to vector<3x256xf32>
    %59 = vector.shape_cast %56 : vector<3x256xf32> to vector<1x3x256xf32>
    tpu.vector_store %arg8[%c1_40, %c0_41, %c0_42], %59 {strides = array<i32>} : memref<2x3x256xf32, #tpu.memory_space<vmem>>, vector<1x3x256xf32>,
    %c1_43 = arith.constant 1 : index
    %c0_44 = arith.constant 0 : index
    %c0_45 = arith.constant 0 : index
    %60 = vector.load %arg7[%c1_43, %c0_44, %c0_45] : memref<2x1x256xf32, #tpu.memory_space<vmem>>, vector<1x1x256xf32>
    %61 = vector.shape_cast %60 : vector<1x1x256xf32> to vector<1x256xf32>
    %62 = vector.shape_cast %42 : vector<1x256xf32> to vector<1x1x256xf32>
    tpu.vector_store %arg7[%c1_43, %c0_44, %c0_45], %62 {strides = array<i32>} : memref<2x1x256xf32, #tpu.memory_space<vmem>>, vector<1x1x256xf32>,
    %c0_i32_46 = arith.constant 0 : i32
    %63 = arith.cmpi eq, %arg2, %c0_i32_46 : i32
    %64 = arith.extui %63 : i1 to i32
    %c0_i32_47 = arith.constant 0 : i32
    %65 = arith.cmpi ne, %64, %c0_i32_47 : i32
    scf.if %65 {
      %c0_48 = arith.constant 0 : index
      %c0_49 = arith.constant 0 : index
      %c0_50 = arith.constant 0 : index
      %66 = vector.load %arg8[%c0_48, %c0_49, %c0_50] : memref<2x3x256xf32, #tpu.memory_space<vmem>>, vector<2x3x256xf32>
      %67 = vector.extract_strided_slice %66 {offsets = [0, 2, 0], sizes = [2, 1, 256], strides = [1, 1, 1]} : vector<2x3x256xf32> to vector<2x1x256xf32>
      %68 = tpu.reciprocal %67 {approx = true} : vector<2x1x256xf32> -> vector<2x1x256xf32>
      %69 = vector.extract_strided_slice %66 {offsets = [0, 0, 0], sizes = [2, 2, 256], strides = [1, 1, 1]} : vector<2x3x256xf32> to vector<2x2x256xf32>
      %70 = vector.broadcast %68 : vector<2x1x256xf32> to vector<2x2x256xf32>
      %71 = arith.mulf %69, %70 : vector<2x2x256xf32>
      %c0_51 = arith.constant 0 : index
      %c0_52 = arith.constant 0 : index
      %c0_53 = arith.constant 0 : index
      %72 = vector.load %arg6[%c0_51, %c0_52, %c0_53] : memref<2x2x256xf32, #tpu.memory_space<vmem>>, vector<2x2x256xf32>
      tpu.vector_store %arg6[%c0_51, %c0_52, %c0_53], %71 {strides = array<i32>} : memref<2x2x256xf32, #tpu.memory_space<vmem>>, vector<2x2x256xf32>,
    } else {
    }
    return
  }
  func.func @transform_0(%arg0: i32, %arg1: i32, %arg2: i32) -> (i32, i32, i32) {
    %c0_i32 = arith.constant 0 : i32
    %c0_i32_0 = arith.constant 0 : i32
    return %arg0, %c0_i32, %arg1 : i32, i32, i32
  }
  func.func @transform_1(%arg0: i32, %arg1: i32, %arg2: i32) -> (i32, i32, i32) {
    %c0_i32 = arith.constant 0 : i32
    %c0_i32_0 = arith.constant 0 : i32
    return %arg0, %c0_i32, %arg2 : i32, i32, i32
  }
  func.func @transform_2(%arg0: i32, %arg1: i32, %arg2: i32) -> (i32, i32, i32) {
    %c0_i32 = arith.constant 0 : i32
    %c0_i32_0 = arith.constant 0 : i32
    return %arg0, %c0_i32, %arg2 : i32, i32, i32
  }
  func.func @transform_3(%arg0: i32, %arg1: i32, %arg2: i32) -> (i32, i32, i32) {
    %c0_i32 = arith.constant 0 : i32
    %c0_i32_0 = arith.constant 0 : i32
    return %arg0, %c0_i32, %arg1 : i32, i32, i32
  }
}

module attributes {stable_mosaic.version = 11 : i64} {
  func.func @_matmul_bias_kernel(%arg0: i32, %arg1: memref<256x4xbf16, #tpu.memory_space<vmem>>, %arg2: memref<4x128xbf16, #tpu.memory_space<vmem>>, %arg3: memref<1x128xf32, #tpu.memory_space<vmem>>, %arg4: memref<256x128xf32, #tpu.memory_space<vmem>>) attributes {dimension_semantics = [#tpu.dimension_semantics<parallel>], iteration_bounds = array<i64: 2>, scalar_prefetch = 0 : i64, scratch_operands = 0 : i64, tpu.core_type = #tpu.core_type<tc>, window_params = [{transform_indices = @transform_0, window_bounds = array<i64: 256, 4>}, {pipeline_mode = #tpu.pipeline_mode<synchronous>, transform_indices = @transform_1, window_bounds = array<i64: 4, 128>}, {pipeline_mode = #tpu.pipeline_mode<synchronous>, transform_indices = @transform_2, window_bounds = array<i64: 1, 128>}, {transform_indices = @transform_3, window_bounds = array<i64: 256, 128>}]} {
    %c0 = arith.constant 0 : index
    %c0_0 = arith.constant 0 : index
    %0 = vector.load %arg1[%c0, %c0_0] : memref<256x4xbf16, #tpu.memory_space<vmem>>, vector<256x4xbf16>
    %c0_1 = arith.constant 0 : index
    %c0_2 = arith.constant 0 : index
    %1 = vector.load %arg2[%c0_1, %c0_2] : memref<4x128xbf16, #tpu.memory_space<vmem>>, vector<4x128xbf16>
    %cst = arith.constant dense<0.000000e+00> : vector<256x128xf32>
    %2 = tpu.matmul %0, %1, %cst {dimension_numbers = #tpu.dot_dimension_numbers<[1], [0], [0], [1], [0, 0, 1, 1], [], []>} : vector<256x4xbf16>, vector<4x128xbf16>, vector<256x128xf32> -> vector<256x128xf32>
    %c0_3 = arith.constant 0 : index
    %c0_4 = arith.constant 0 : index
    %3 = vector.load %arg3[%c0_3, %c0_4] : memref<1x128xf32, #tpu.memory_space<vmem>>, vector<1x128xf32>
    %4 = vector.broadcast %3 : vector<1x128xf32> to vector<256x128xf32>
    %5 = arith.addf %2, %4 : vector<256x128xf32>
    %c0_5 = arith.constant 0 : index
    %c0_6 = arith.constant 0 : index
    %6 = vector.load %arg4[%c0_5, %c0_6] : memref<256x128xf32, #tpu.memory_space<vmem>>, vector<256x128xf32>
    tpu.vector_store %arg4[%c0_5, %c0_6], %5 {strides = array<i32>} : memref<256x128xf32, #tpu.memory_space<vmem>>, vector<256x128xf32>,
    return
  }
  func.func @transform_0(%arg0: i32) -> (i32, i32) {
    %c0_i32 = arith.constant 0 : i32
    %c0_i32_0 = arith.constant 0 : i32
    return %arg0, %c0_i32 : i32, i32
  }
  func.func @transform_1(%arg0: i32) -> (i32, i32) {
    %c0_i32 = arith.constant 0 : i32
    %c0_i32_0 = arith.constant 0 : i32
    %c0_i32_1 = arith.constant 0 : i32
    return %c0_i32, %c0_i32_0 : i32, i32
  }
  func.func @transform_2(%arg0: i32) -> (i32, i32) {
    %c0_i32 = arith.constant 0 : i32
    %c0_i32_0 = arith.constant 0 : i32
    %c0_i32_1 = arith.constant 0 : i32
    return %c0_i32, %c0_i32_0 : i32, i32
  }
  func.func @transform_3(%arg0: i32) -> (i32, i32) {
    %c0_i32 = arith.constant 0 : i32
    %c0_i32_0 = arith.constant 0 : i32
    return %arg0, %c0_i32 : i32, i32
  }
}

</mosaic_0001>

<llo_original>
// kernel: attention_augmented_conv2d.5
$region0: #{attention_augmented_conv2d.5}
  #allocation0 [shape = 'u32[]', space=smem, size = 0x4, offset = 0x4, fixed_abs, tag = 'smem constant byte address 0x4 - core index']
  #allocation1 [shape = 'u32[144,128]{1,0:T(1,128)}', space=vmem, size = 0x12000, scoped, tag = 'internal scratch']
  %s0 = inlined_call_operand.vmem [shape: bf16[512,36], index: 0, kind: input, shape index: {}]
  %s1 = inlined_call_operand.vmem [shape: bf16[36,128], index: 1, kind: input, shape index: {}]
  %s2 = inlined_call_operand.vmem [shape: f32[1,128], index: 2, kind: input, shape index: {}]
  %s3 = inlined_call_operand.vmem [shape: f32[512,128], index: 3, kind: output, shape index: {}]
  %s4 = sld [smem:[#allocation0]]
  $region45: #{attention_augmented_conv2d.5} parent=0
    _
  %s6 = ssub.s32 1, %s4
  %s7 = scalar_select 0, %s6, %s4
  loop: start=0, step=1, limit=4
  $region2: #{attention_augmented_conv2d.5} parent=0 // loop_pre_header
    _
  $region3: #{attention_augmented_conv2d.5} parent=0 // loop_header
    %s9 = sphi 0, %s13
    %p10 = scmp.ge.s32.totalorder %s9, 4
    %s19 = sphi 0, %s21
    %s22 = sphi 0, %s19
    %s23 = sphi 0, %s22
    %s39 = sphi 0, %s23
    %s43 = sphi 0, %s43
    %s45 = sphi 0, %s43
    %s46 = sphi 0, %s45
    %s60 = sphi 0, %s46
    %s64 = sphi 0, %s64
    %s66 = sphi 0, %s64
    %s67 = sphi 0, %s66
    %s81 = sphi 0, %s67
    %s87 = sphi 0, %s89
    %s90 = sphi 0, %s87
    %s91 = sphi 0, %s90
    %s107 = sphi 0, %s91
  $region4: #{attention_augmented_conv2d.5} parent=0 // loop_header_branch
    %12 = sbr.rel (%p10) target = $region8
  $region5: #{attention_augmented_conv2d.5} parent=0 // loop_body
    %s14 = ssub.s32 %s9, 1
    %s15 = ssub.s32 %s9, 2
    %s16 = sadd.s32 %s9, 1
    %s17 = ssub.s32 %s9, %s16
    %p18 = scmp.eq.s32.totalorder %s17, 0
    %s20 = sadd.s32 %s19, 1
    %s21 = scalar_select %p18, %s19, %s20
    %p24 = pneg %p18
    %p25 = scmp.eq.s32.totalorder %s9, 1
    %p26 = por %p24, %p25
    %p27 = scmp.ne.s32.totalorder %s19, %s22
    %p28 = scmp.eq.s32.totalorder %s9, 0
    %p29 = por %p27, %p28
    %p30 = scmp.ne.s32.totalorder %s19, %s22
    %p31 = scmp.eq.s32.totalorder %s14, 1
    %p32 = por %p30, %p31
    %p33 = scmp.ne.s32.totalorder %s22, %s23
    %p34 = scmp.eq.s32.totalorder %s14, 0
    %p35 = por %p33, %p34
    %p36 = scmp.ne.s32.totalorder %s22, %s23
    %p37 = scmp.eq.s32.totalorder %s15, 1
    %p38 = por %p36, %p37
    %p40 = scmp.ne.s32.totalorder %s23, %s39
    %p41 = scmp.eq.s32.totalorder %s15, 0
    %p42 = por %p40, %p41
    %s44 = sadd.s32 %s43, 1
    %p47 = scmp.eq.s32.totalorder %s9, 1
    %p48 = scmp.ne.s32.totalorder %s43, %s45
    %p49 = scmp.eq.s32.totalorder %s9, 0
    %p50 = por %p48, %p49
    %p51 = scmp.ne.s32.totalorder %s43, %s45
    %p52 = scmp.eq.s32.totalorder %s14, 1
    %p53 = por %p51, %p52
    %p54 = scmp.ne.s32.totalorder %s45, %s46
    %p55 = scmp.eq.s32.totalorder %s14, 0
    %p56 = por %p54, %p55
    %p57 = scmp.ne.s32.totalorder %s45, %s46
    %p58 = scmp.eq.s32.totalorder %s15, 1
    %p59 = por %p57, %p58
    %p61 = scmp.ne.s32.totalorder %s46, %s60
    %p62 = scmp.eq.s32.totalorder %s15, 0
    %p63 = por %p61, %p62
    %s65 = sadd.s32 %s64, 1
    %p68 = scmp.eq.s32.totalorder %s9, 1
    %p69 = scmp.ne.s32.totalorder %s64, %s66
    %p70 = scmp.eq.s32.totalorder %s9, 0
    %p71 = por %p69, %p70
    %p72 = scmp.ne.s32.totalorder %s64, %s66
    %p73 = scmp.eq.s32.totalorder %s14, 1
    %p74 = por %p72, %p73
    %p75 = scmp.ne.s32.totalorder %s66, %s67
    %p76 = scmp.eq.s32.totalorder %s14, 0
    %p77 = por %p75, %p76
    %p78 = scmp.ne.s32.totalorder %s66, %s67
    %p79 = scmp.eq.s32.totalorder %s15, 1
    %p80 = por %p78, %p79
    %p82 = scmp.ne.s32.totalorder %s67, %s81
    %p83 = scmp.eq.s32.totalorder %s15, 0
    %p84 = por %p82, %p83
    %s85 = ssub.s32 %s9, %s16
    %p86 = scmp.eq.s32.totalorder %s85, 0
    %s88 = sadd.s32 %s87, 1
    %s89 = scalar_select %p86, %s87, %s88
    %p92 = pneg %p86
    %p93 = scmp.eq.s32.totalorder %s9, 1
    %p94 = por %p92, %p93
    %p95 = scmp.ne.s32.totalorder %s87, %s90
    %p96 = scmp.eq.s32.totalorder %s9, 0
    %p97 = por %p95, %p96
    %p98 = scmp.ne.s32.totalorder %s87, %s90
    %p99 = scmp.eq.s32.totalorder %s14, 1
    %p100 = por %p98, %p99
    %p101 = scmp.ne.s32.totalorder %s90, %s91
    %p102 = scmp.eq.s32.totalorder %s14, 0
    %p103 = por %p101, %p102
    %p104 = scmp.ne.s32.totalorder %s90, %s91
    %p105 = scmp.eq.s32.totalorder %s15, 1
    %p106 = por %p104, %p105
    %p108 = scmp.ne.s32.totalorder %s91, %s107
    %p109 = scmp.eq.s32.totalorder %s15, 0
    %p110 = por %p108, %p109
    %p111 = scmp.le.s32.totalorder 1, %s9
    %p112 = scmp.lt.s32.totalorder %s9, 3
    %p113 = pnand %p111, %p112
    %p114 = pneg %p113
    // Predicated region
    $region9: #{attention_augmented_conv2d.5} parent=5 // pred_check
      _
    $region10: #{attention_augmented_conv2d.5} parent=5 // pred_check_branch
      %116 = sbr.rel (%p113) target = $region12
    $region11: #{attention_augmented_conv2d.5} parent=5 // pred_region
      %s117 = ssub.s32 %s9, 1
      // Predicated region
      $region13: #{attention_augmented_conv2d.5} parent=11 // pred_check
        %p118 = pneg %p56
      $region14: #{attention_augmented_conv2d.5} parent=11 // pred_check_branch
        %120 = sbr.rel (%p118) target = $region16
      $region15: #{attention_augmented_conv2d.5} parent=11 // pred_region
        _
      $region16: #{attention_augmented_conv2d.5} parent=11 // pred_fallthru
        _
      // Predicated region
      $region17: #{attention_augmented_conv2d.5} parent=11 // pred_check
        %p121 = pneg %p77
      $region18: #{attention_augmented_conv2d.5} parent=11 // pred_check_branch
        %123 = sbr.rel (%p121) target = $region20
      $region19: #{attention_augmented_conv2d.5} parent=11 // pred_region
        _
      $region20: #{attention_augmented_conv2d.5} parent=11 // pred_fallthru
        _
    $region12: #{attention_augmented_conv2d.5} parent=5 // pred_fallthru
      _
    %p124 = scmp.lt.s32.totalorder %s9, 2
    // Predicated region
    $region21: #{attention_augmented_conv2d.5} parent=5 // pred_check
      %p125 = pneg %p124
    $region22: #{attention_augmented_conv2d.5} parent=5 // pred_check_branch
      %127 = sbr.rel (%p125) target = $region24
    $region23: #{attention_augmented_conv2d.5} parent=5 // pred_region
      // Predicated region
      $region25: #{attention_augmented_conv2d.5} parent=23 // pred_check
        %p128 = pneg %p29
      $region26: #{attention_augmented_conv2d.5} parent=23 // pred_check_branch
        %130 = sbr.rel (%p128) target = $region28
      $region27: #{attention_augmented_conv2d.5} parent=23 // pred_region
        %s131 = smul.u32 32, %s9
        %p132 = scmp.lt.s32.totalorder %s131, 63
        %s133 = scalar_select %p132, %s131, 63
        %s134 = smul.addr %s133, 4
        %s135 = scalar_lea.vmem %s0, %s134
        %s136 = smul.u32 32, %s9
      $region28: #{attention_augmented_conv2d.5} parent=23 // pred_fallthru
        _
    $region24: #{attention_augmented_conv2d.5} parent=5 // pred_fallthru
      _
    %p137 = scmp.le.s32.totalorder 1, %s9
    %p138 = scmp.lt.s32.totalorder %s9, 3
    %p139 = pnand %p137, %p138
    %p140 = pneg %p139
    // Predicated region
    $region29: #{attention_augmented_conv2d.5} parent=5 // pred_check
      _
    $region30: #{attention_augmented_conv2d.5} parent=5 // pred_check_branch
      %142 = sbr.rel (%p139) target = $region32
    $region31: #{attention_augmented_conv2d.5} parent=5 // pred_region
      %s143 = ssub.s32 %s9, 1
      %s144 = smul.u32 32, %s14
      %p145 = scmp.lt.s32.totalorder %s144, 63
      %s146 = scalar_select %p145, %s144, 63
      %s147 = smul.addr %s146, 4
      %s148 = scalar_lea.vmem %s0, %s147
      %p149 = pneg %p35
      %p150 = pneg %p32
      %p151 = pneg %p56
      %p152 = pneg %p53
      %p153 = pneg %p77
      %p154 = pneg %p74
      %p155 = pneg %p103
      %p156 = pneg %p100
      %s157 = smul.u32 32, %s14
      %p158 = scmp.lt.s32.totalorder %s157, 63
      %s159 = scalar_select %p158, %s157, 63
      %s160 = smul.addr %s159, 8
      %s161 = scalar_lea.vmem %s3, %s160
      %s162 = smul.u32 32, %s14
      %p163 = scmp.lt.s32.totalorder %s162, 63
      %s164 = scalar_select %p163, %s162, 63
      %s165 = smul.addr %s164, 4
      %s166 = scalar_lea.vmem %s0, %s165
      %s167 = smul.u32 32, %s14
      %s168 = smul.u32 32, %s14
      %p169 = scmp.lt.s32.totalorder %s168, 63
      %s170 = scalar_select %p169, %s168, 63
      %s171 = smul.addr %s170, 8
      %s172 = scalar_lea.vmem %s3, %s171
      %s173 = smul.u32 32, %s14
      %v175 = vld [vmem:[%s166] sm:$0xf]
      %v176 = vld [vmem:[%s166 + $0x4] sm:$0xf]
      %v177 = vld [vmem:[%s166 + $0x8] sm:$0xf]
      %v178 = vld [vmem:[%s166 + $0xc] sm:$0xf]
      %v179 = vld [vmem:[%s166 + $0x10] sm:$0xf]
      %v180 = vld [vmem:[%s166 + $0x14] sm:$0xf]
      %v181 = vld [vmem:[%s166 + $0x18] sm:$0xf]
      %v182 = vld [vmem:[%s166 + $0x1c] sm:$0xf]
      %v183 = vld [vmem:[%s166 + $0x20] sm:$0xf]
      %v184 = vld [vmem:[%s166 + $0x24] sm:$0xf]
      %v185 = vld [vmem:[%s166 + $0x28] sm:$0xf]
      %v186 = vld [vmem:[%s166 + $0x2c] sm:$0xf]
      %v187 = vld [vmem:[%s166 + $0x30] sm:$0xf]
      %v188 = vld [vmem:[%s166 + $0x34] sm:$0xf]
      %v189 = vld [vmem:[%s166 + $0x38] sm:$0xf]
      %v190 = vld [vmem:[%s166 + $0x3c] sm:$0xf]
      %v191 = vld [vmem:[%s166 + $0x40] sm:$0xf]
      %v192 = vld [vmem:[%s166 + $0x44] sm:$0xf]
      %v193 = vld [vmem:[%s166 + $0x48] sm:$0xf]
      %v194 = vld [vmem:[%s166 + $0x4c] sm:$0xf]
      %v195 = vld [vmem:[%s166 + $0x50] sm:$0xf]
      %v196 = vld [vmem:[%s166 + $0x54] sm:$0xf]
      %v197 = vld [vmem:[%s166 + $0x58] sm:$0xf]
      %v198 = vld [vmem:[%s166 + $0x5c] sm:$0xf]
      %v199 = vld [vmem:[%s166 + $0x60] sm:$0xf]
      %v200 = vld [vmem:[%s166 + $0x64] sm:$0xf]
      %v201 = vld [vmem:[%s166 + $0x68] sm:$0xf]
      %v202 = vld [vmem:[%s166 + $0x6c] sm:$0xf]
      %v203 = vld [vmem:[%s166 + $0x70] sm:$0xf]
      %v204 = vld [vmem:[%s166 + $0x74] sm:$0xf]
      %v205 = vld [vmem:[%s166 + $0x78] sm:$0xf]
      %v206 = vld [vmem:[%s166 + $0x7c] sm:$0xf]
      %v207 = vld [vmem:[%s1] sm:$0xf]
      %v208 = vld [vmem:[%s1 + $0x4] sm:$0xf]
      %v209 = vld [vmem:[%s1 + $0x8] sm:$0xf]
      %v210 = vld [vmem:[%s1 + $0xc] sm:$0xf]
      %v211 = vld [vmem:[%s1 + $0x10] sm:$0x3]
      %v212 = vld [vmem:[%s2] sm:$0x1]
      %v214 = vlaneseq
      %v215 = vshrl.u32 %v214, 7
      %v216 = vsub.s32 0, %v215
      %v217 = vrot.slane %v212, %v216
      %v251 = vunpack.c.l.b16 %v175
      %v252 = vunpack.c.l.b16 %v176
      %v253 = vunpack.c.l.b16 %v177
      %v254 = vunpack.c.l.b16 %v178
      %v255 = vunpack.c.l.b16 %v179
      %v256 = vunpack.c.l.b16 %v180
      %v257 = vunpack.c.l.b16 %v181
      %v258 = vunpack.c.l.b16 %v182
      %v259 = vunpack.c.l.b16 %v183
      %v260 = vunpack.c.l.b16 %v184
      %v261 = vunpack.c.l.b16 %v185
      %v262 = vunpack.c.l.b16 %v186
      %v263 = vunpack.c.l.b16 %v187
      %v264 = vunpack.c.l.b16 %v188
      %v265 = vunpack.c.l.b16 %v189
      %v266 = vunpack.c.l.b16 %v190
      %v267 = vunpack.c.l.b16 %v191
      %v268 = vunpack.c.l.b16 %v192
      %v269 = vunpack.c.l.b16 %v193
      %v270 = vunpack.c.l.b16 %v194
      %v271 = vunpack.c.l.b16 %v195
      %v272 = vunpack.c.l.b16 %v196
      %v273 = vunpack.c.l.b16 %v197
      %v274 = vunpack.c.l.b16 %v198
      %v275 = vunpack.c.l.b16 %v199
      %v276 = vunpack.c.l.b16 %v200
      %v277 = vunpack.c.l.b16 %v201
      %v278 = vunpack.c.l.b16 %v202
      %v279 = vunpack.c.l.b16 %v203
      %v280 = vunpack.c.l.b16 %v204
      %v281 = vunpack.c.l.b16 %v205
      %v282 = vunpack.c.l.b16 %v206
      %v283 = vpack.c.b16 %v252, %v251
      %v284 = vpack.c.b16 %v254, %v253
      %v285 = vpack.c.b16 %v256, %v255
      %v286 = vpack.c.b16 %v258, %v257
      %v287 = vpack.c.b16 %v260, %v259
      %v288 = vpack.c.b16 %v262, %v261
      %v289 = vpack.c.b16 %v264, %v263
      %v290 = vpack.c.b16 %v266, %v265
      %v291 = vpack.c.b16 %v268, %v267
      %v292 = vpack.c.b16 %v270, %v269
      %v293 = vpack.c.b16 %v272, %v271
      %v294 = vpack.c.b16 %v274, %v273
      %v295 = vpack.c.b16 %v276, %v275
      %v296 = vpack.c.b16 %v278, %v277
      %v297 = vpack.c.b16 %v280, %v279
      %v298 = vpack.c.b16 %v282, %v281
      %v304 = vunpack.c.l.b16 %v207
      %v305 = vunpack.c.l.b16 %v208
      %v306 = vunpack.c.l.b16 %v209
      %v307 = vunpack.c.l.b16 %v210
      %v308 = vunpack.c.l.b16 %v211
      %v309 = vpack.c.b16 %v305, %v304
      %v310 = vpack.c.b16 %v307, %v306
      %v311 = vpack.c.b16 %v308, %v308
      %vm314 = vcmask 293888
      %v316 = vsel %vm314, %v283, 0
      %v319 = vsel %vm314, %v284, 0
      %v322 = vsel %vm314, %v285, 0
      %v325 = vsel %vm314, %v286, 0
      %v328 = vsel %vm314, %v287, 0
      %v331 = vsel %vm314, %v288, 0
      %v334 = vsel %vm314, %v289, 0
      %v337 = vsel %vm314, %v290, 0
      %v340 = vsel %vm314, %v291, 0
      %v343 = vsel %vm314, %v292, 0
      %v346 = vsel %vm314, %v293, 0
      %v349 = vsel %vm314, %v294, 0
      %v352 = vsel %vm314, %v295, 0
      %v355 = vsel %vm314, %v296, 0
      %v358 = vsel %vm314, %v297, 0
      %v361 = vsel %vm314, %v298, 0
      %vm363 = vcmask 1041408
      %v365 = vsel %vm363, %v311, 0
      %367 = vmatprep.subr.bf16.mxu0 0
      %368 = vmatpush1.bf16.msra.mxu0 %v309
      %369 = vmatprep.subr.bf16.mxu0 0
      %370 = vmatpush1.bf16.msra.mxu0 %v310
      %371 = vmatprep.subr.bf16.mxu0 0
      %372 = vmatpush1.bf16.msra.mxu0 %v365
      %373 = vmatprep.subr.bf16.mxu0 0
      %374 = vmatpush1.bf16.msra.mxu0 0
      %375 = vmatprep.subr.bf16.mxu0 0
      %376 = vmatpush1.bf16.msra.mxu0 0
      %377 = vmatprep.subr.bf16.mxu0 0
      %378 = vmatpush1.bf16.msra.mxu0 0
      %379 = vmatprep.subr.bf16.mxu0 0
      %380 = vmatpush1.bf16.msra.mxu0 0
      %381 = vmatprep.subr.bf16.mxu0 0
      %382 = vmatpush1.bf16.msra.mxu0 0
      %383 = vmatprep.subr.bf16.mxu0 0
      %384 = vmatpush1.bf16.msra.mxu0 0
      %385 = vmatprep.subr.bf16.mxu0 0
      %386 = vmatpush1.bf16.msra.mxu0 0
      %387 = vmatprep.subr.bf16.mxu0 0
      %388 = vmatpush1.bf16.msra.mxu0 0
      %389 = vmatprep.subr.bf16.mxu0 0
      %390 = vmatpush1.bf16.msra.mxu0 0
      %391 = vmatprep.subr.bf16.mxu0 0
      %392 = vmatpush1.bf16.msra.mxu0 0
      %393 = vmatprep.subr.bf16.mxu0 0
      %394 = vmatpush1.bf16.msra.mxu0 0
      %395 = vmatprep.subr.bf16.mxu0 0
      %396 = vmatpush1.bf16.msra.mxu0 0
      %397 = vmatprep.subr.bf16.mxu0 0
      %398 = vmatpush1.bf16.msra.mxu0 0
      %399 = vmatprep.mubr.bf16.mxu0 0
      %400 = vmatmul.mubr.bf16.gmra.mrb[0].mxu0 %v316
      %v401 = vpop.f32.mrb[0].mxu0
      %v402 = vadd.f32 %v217, %v401
      %v403 = vpop.f32.mrb[0].mxu0
      %v404 = vpop.f32.mrb[0].mxu0
      %v405 = vadd.f32 %v217, %v404
      %v406 = vpop.f32.mrb[0].mxu0
      %407 = vmatprep.mubr.bf16.mxu0 0
      %408 = vmatmul.mubr.bf16.gmra.mrb[0].mxu0 %v319
      %v409 = vpop.f32.mrb[0].mxu0
      %v410 = vadd.f32 %v217, %v409
      %v411 = vpop.f32.mrb[0].mxu0
      %v412 = vpop.f32.mrb[0].mxu0
      %v413 = vadd.f32 %v217, %v412
      %v414 = vpop.f32.mrb[0].mxu0
      %415 = vmatprep.mubr.bf16.mxu0 0
      %416 = vmatmul.mubr.bf16.gmra.mrb[0].mxu0 %v322
      %v417 = vpop.f32.mrb[0].mxu0
      %v418 = vadd.f32 %v217, %v417
      %v419 = vpop.f32.mrb[0].mxu0
      %v420 = vpop.f32.mrb[0].mxu0
      %v421 = vadd.f32 %v217, %v420
      %v422 = vpop.f32.mrb[0].mxu0
      %423 = vmatprep.mubr.bf16.mxu0 0
      %424 = vmatmul.mubr.bf16.gmra.mrb[0].mxu0 %v325
      %v425 = vpop.f32.mrb[0].mxu0
      %v426 = vadd.f32 %v217, %v425
      %v427 = vpop.f32.mrb[0].mxu0
      %v428 = vpop.f32.mrb[0].mxu0
      %v429 = vadd.f32 %v217, %v428
      %v430 = vpop.f32.mrb[0].mxu0
      %431 = vmatprep.mubr.bf16.mxu0 0
      %432 = vmatmul.mubr.bf16.gmra.mrb[0].mxu0 %v328
      %v433 = vpop.f32.mrb[0].mxu0
      %v434 = vadd.f32 %v217, %v433
      %v435 = vpop.f32.mrb[0].mxu0
      %v436 = vpop.f32.mrb[0].mxu0
      %v437 = vadd.f32 %v217, %v436
      %v438 = vpop.f32.mrb[0].mxu0
      %439 = vmatprep.mubr.bf16.mxu0 0
      %440 = vmatmul.mubr.bf16.gmra.mrb[0].mxu0 %v331
      %v441 = vpop.f32.mrb[0].mxu0
      %v442 = vadd.f32 %v217, %v441
      %v443 = vpop.f32.mrb[0].mxu0
      %v444 = vpop.f32.mrb[0].mxu0
      %v445 = vadd.f32 %v217, %v444
      %v446 = vpop.f32.mrb[0].mxu0
      %447 = vmatprep.mubr.bf16.mxu0 0
      %448 = vmatmul.mubr.bf16.gmra.mrb[0].mxu0 %v334
      %v449 = vpop.f32.mrb[0].mxu0
      %v450 = vadd.f32 %v217, %v449
      %v451 = vpop.f32.mrb[0].mxu0
      %v452 = vpop.f32.mrb[0].mxu0
      %v453 = vadd.f32 %v217, %v452
      %v454 = vpop.f32.mrb[0].mxu0
      %455 = vmatprep.mubr.bf16.mxu0 0
      %456 = vmatmul.mubr.bf16.gmra.mrb[0].mxu0 %v337
      %v457 = vpop.f32.mrb[0].mxu0
      %v458 = vadd.f32 %v217, %v457
      %v459 = vpop.f32.mrb[0].mxu0
      %v460 = vpop.f32.mrb[0].mxu0
      %v461 = vadd.f32 %v217, %v460
      %v462 = vpop.f32.mrb[0].mxu0
      %463 = vmatprep.mubr.bf16.mxu0 0
      %464 = vmatmul.mubr.bf16.gmra.mrb[0].mxu0 %v340
      %v465 = vpop.f32.mrb[0].mxu0
      %v466 = vadd.f32 %v217, %v465
      %v467 = vpop.f32.mrb[0].mxu0
      %v468 = vpop.f32.mrb[0].mxu0
      %v469 = vadd.f32 %v217, %v468
      %v470 = vpop.f32.mrb[0].mxu0
      %471 = vmatprep.mubr.bf16.mxu0 0
      %472 = vmatmul.mubr.bf16.gmra.mrb[0].mxu0 %v343
      %v473 = vpop.f32.mrb[0].mxu0
      %v474 = vadd.f32 %v217, %v473
      %v475 = vpop.f32.mrb[0].mxu0
      %v476 = vpop.f32.mrb[0].mxu0
      %v477 = vadd.f32 %v217, %v476
      %v478 = vpop.f32.mrb[0].mxu0
      %479 = vmatprep.mubr.bf16.mxu0 0
      %480 = vmatmul.mubr.bf16.gmra.mrb[0].mxu0 %v346
      %v481 = vpop.f32.mrb[0].mxu0
      %v482 = vadd.f32 %v217, %v481
      %v483 = vpop.f32.mrb[0].mxu0
      %v484 = vpop.f32.mrb[0].mxu0
      %v485 = vadd.f32 %v217, %v484
      %v486 = vpop.f32.mrb[0].mxu0
      %487 = vmatprep.mubr.bf16.mxu0 0
      %488 = vmatmul.mubr.bf16.gmra.mrb[0].mxu0 %v349
      %v489 = vpop.f32.mrb[0].mxu0
      %v490 = vadd.f32 %v217, %v489
      %v491 = vpop.f32.mrb[0].mxu0
      %v492 = vpop.f32.mrb[0].mxu0
      %v493 = vadd.f32 %v217, %v492
      %v494 = vpop.f32.mrb[0].mxu0
      %495 = vmatprep.mubr.bf16.mxu0 0
      %496 = vmatmul.mubr.bf16.gmra.mrb[0].mxu0 %v352
      %v497 = vpop.f32.mrb[0].mxu0
      %v498 = vadd.f32 %v217, %v497
      %v499 = vpop.f32.mrb[0].mxu0
      %v500 = vpop.f32.mrb[0].mxu0
      %v501 = vadd.f32 %v217, %v500
      %v502 = vpop.f32.mrb[0].mxu0
      %503 = vmatprep.mubr.bf16.mxu0 0
      %504 = vmatmul.mubr.bf16.gmra.mrb[0].mxu0 %v355
      %v505 = vpop.f32.mrb[0].mxu0
      %v506 = vadd.f32 %v217, %v505
      %v507 = vpop.f32.mrb[0].mxu0
      %v508 = vpop.f32.mrb[0].mxu0
      %v509 = vadd.f32 %v217, %v508
      %v510 = vpop.f32.mrb[0].mxu0
      %511 = vmatprep.mubr.bf16.mxu0 0
      %512 = vmatmul.mubr.bf16.gmra.mrb[0].mxu0 %v358
      %v513 = vpop.f32.mrb[0].mxu0
      %v514 = vadd.f32 %v217, %v513
      %v515 = vpop.f32.mrb[0].mxu0
      %v516 = vpop.f32.mrb[0].mxu0
      %v517 = vadd.f32 %v217, %v516
      %v518 = vpop.f32.mrb[0].mxu0
      %519 = vmatprep.mubr.bf16.mxu0 0
      %520 = vmatmul.mubr.bf16.gmra.mrb[0].mxu0 %v361
      %v521 = vpop.f32.mrb[0].mxu0
      %v522 = vadd.f32 %v217, %v521
      %v523 = vpop.f32.mrb[0].mxu0
      %v524 = vpop.f32.mrb[0].mxu0
      %v525 = vadd.f32 %v217, %v524
      %v526 = vpop.f32.mrb[0].mxu0
      %527 = vdwg.mxu0
      %528 = vst [vmem:[%s172] sm:$0xff] %v402
      %529 = vst [vmem:[%s172 + $0x8] sm:$0xff] %v405
      %530 = vst [vmem:[%s172 + $0x10] sm:$0xff] %v410
      %531 = vst [vmem:[%s172 + $0x18] sm:$0xff] %v413
      %532 = vst [vmem:[%s172 + $0x20] sm:$0xff] %v418
      %533 = vst [vmem:[%s172 + $0x28] sm:$0xff] %v421
      %534 = vst [vmem:[%s172 + $0x30] sm:$0xff] %v426
      %535 = vst [vmem:[%s172 + $0x38] sm:$0xff] %v429
      %536 = vst [vmem:[%s172 + $0x40] sm:$0xff] %v434
      %537 = vst [vmem:[%s172 + $0x48] sm:$0xff] %v437
      %538 = vst [vmem:[%s172 + $0x50] sm:$0xff] %v442
      %539 = vst [vmem:[%s172 + $0x58] sm:$0xff] %v445
      %540 = vst [vmem:[%s172 + $0x60] sm:$0xff] %v450
      %541 = vst [vmem:[%s172 + $0x68] sm:$0xff] %v453
      %542 = vst [vmem:[%s172 + $0x70] sm:$0xff] %v458
      %543 = vst [vmem:[%s172 + $0x78] sm:$0xff] %v461
      %544 = vst [vmem:[%s172 + $0x80] sm:$0xff] %v466
      %545 = vst [vmem:[%s172 + $0x88] sm:$0xff] %v469
      %546 = vst [vmem:[%s172 + $0x90] sm:$0xff] %v474
      %547 = vst [vmem:[%s172 + $0x98] sm:$0xff] %v477
      %548 = vst [vmem:[%s172 + $0xa0] sm:$0xff] %v482
      %549 = vst [vmem:[%s172 + $0xa8] sm:$0xff] %v485
      %550 = vst [vmem:[%s172 + $0xb0] sm:$0xff] %v490
      %551 = vst [vmem:[%s172 + $0xb8] sm:$0xff] %v493
      %552 = vst [vmem:[%s172 + $0xc0] sm:$0xff] %v498
      %553 = vst [vmem:[%s172 + $0xc8] sm:$0xff] %v501
      %554 = vst [vmem:[%s172 + $0xd0] sm:$0xff] %v506
      %555 = vst [vmem:[%s172 + $0xd8] sm:$0xff] %v509
      %556 = vst [vmem:[%s172 + $0xe0] sm:$0xff] %v514
      %557 = vst [vmem:[%s172 + $0xe8] sm:$0xff] %v517
      %558 = vst [vmem:[%s172 + $0xf0] sm:$0xff] %v522
      %559 = vst [vmem:[%s172 + $0xf8] sm:$0xff] %v525
      %s560 = smul.u32 32, %s14
      %p561 = scmp.lt.s32.totalorder %s560, 63
      %s562 = scalar_select %p561, %s560, 63
      %s563 = smul.addr %s562, 8
      %s564 = scalar_lea.vmem %s3, %s563
      // Predicated region
      $region33: #{attention_augmented_conv2d.5} parent=31 // pred_check
        %p565 = pneg %p100
      $region34: #{attention_augmented_conv2d.5} parent=31 // pred_check_branch
        %567 = sbr.rel (%p565) target = $region36
      $region35: #{attention_augmented_conv2d.5} parent=31 // pred_region
        %s568 = smul.u32 32, %s14
      $region36: #{attention_augmented_conv2d.5} parent=31 // pred_fallthru
        _
    $region32: #{attention_augmented_conv2d.5} parent=5 // pred_fallthru
      _
    %p569 = scmp.le.s32.totalorder 2, %s9
    // Predicated region
    $region37: #{attention_augmented_conv2d.5} parent=5 // pred_check
      %p570 = pneg %p569
    $region38: #{attention_augmented_conv2d.5} parent=5 // pred_check_branch
      %572 = sbr.rel (%p570) target = $region40
    $region39: #{attention_augmented_conv2d.5} parent=5 // pred_region
      %s573 = ssub.s32 %s9, 2
      // Predicated region
      $region41: #{attention_augmented_conv2d.5} parent=39 // pred_check
        %p574 = pneg %p106
      $region42: #{attention_augmented_conv2d.5} parent=39 // pred_check_branch
        %576 = sbr.rel (%p574) target = $region44
      $region43: #{attention_augmented_conv2d.5} parent=39 // pred_region
        %s577 = smul.u32 32, %s15
        %p578 = scmp.lt.s32.totalorder %s577, 63
        %s579 = scalar_select %p578, %s577, 63
        %s580 = smul.addr %s579, 8
        %s581 = scalar_lea.vmem %s3, %s580
      $region44: #{attention_augmented_conv2d.5} parent=39 // pred_fallthru
        _
    $region40: #{attention_augmented_conv2d.5} parent=5 // pred_fallthru
      _
  $region6: #{attention_augmented_conv2d.5} parent=0 // loop_footer
    %s13 = sadd.s32 1, %s9
  $region7: #{attention_augmented_conv2d.5} parent=0 // loop_footer_branch
    %8 = sbr.rel target = $region3
  $region8: #{attention_augmented_conv2d.5} parent=0 // loop_exit
    _

// kernel: attention_augmented_conv2d.6
$region0: #{attention_augmented_conv2d.6}
  #allocation0 [shape = 'u32[]', space=smem, size = 0x4, offset = 0x4, fixed_abs, tag = 'smem constant byte address 0x4 - core index']
  #allocation1 [shape = 'u32[144,128]{1,0:T(1,128)}', space=vmem, size = 0x12000, scoped, tag = 'internal scratch']
  %s0 = inlined_call_operand.vmem [shape: bf16[1024,4], index: 0, kind: input, shape index: {}]
  %s1 = inlined_call_operand.vmem [shape: bf16[4,128], index: 1, kind: input, shape index: {}]
  %s2 = inlined_call_operand.vmem [shape: f32[1,128], index: 2, kind: input, shape index: {}]
  %s3 = inlined_call_operand.vmem [shape: f32[1024,128], index: 3, kind: output, shape index: {}]
  %s4 = sld [smem:[#allocation0]]
  $region45: #{attention_augmented_conv2d.6} parent=0
    _
  %s6 = ssub.s32 1, %s4
  %s7 = scalar_select 0, %s6, %s4
  loop: start=0, step=1, limit=4
  $region2: #{attention_augmented_conv2d.6} parent=0 // loop_pre_header
    _
  $region3: #{attention_augmented_conv2d.6} parent=0 // loop_header
    %s9 = sphi 0, %s13
    %p10 = scmp.ge.s32.totalorder %s9, 4
    %s19 = sphi 0, %s21
    %s22 = sphi 0, %s19
    %s23 = sphi 0, %s22
    %s39 = sphi 0, %s23
    %s43 = sphi 0, %s43
    %s45 = sphi 0, %s43
    %s46 = sphi 0, %s45
    %s60 = sphi 0, %s46
    %s64 = sphi 0, %s64
    %s66 = sphi 0, %s64
    %s67 = sphi 0, %s66
    %s81 = sphi 0, %s67
    %s87 = sphi 0, %s89
    %s90 = sphi 0, %s87
    %s91 = sphi 0, %s90
    %s107 = sphi 0, %s91
  $region4: #{attention_augmented_conv2d.6} parent=0 // loop_header_branch
    %12 = sbr.rel (%p10) target = $region8
  $region5: #{attention_augmented_conv2d.6} parent=0 // loop_body
    %s14 = ssub.s32 %s9, 1
    %s15 = ssub.s32 %s9, 2
    %s16 = sadd.s32 %s9, 1
    %s17 = ssub.s32 %s9, %s16
    %p18 = scmp.eq.s32.totalorder %s17, 0
    %s20 = sadd.s32 %s19, 1
    %s21 = scalar_select %p18, %s19, %s20
    %p24 = pneg %p18
    %p25 = scmp.eq.s32.totalorder %s9, 1
    %p26 = por %p24, %p25
    %p27 = scmp.ne.s32.totalorder %s19, %s22
    %p28 = scmp.eq.s32.totalorder %s9, 0
    %p29 = por %p27, %p28
    %p30 = scmp.ne.s32.totalorder %s19, %s22
    %p31 = scmp.eq.s32.totalorder %s14, 1
    %p32 = por %p30, %p31
    %p33 = scmp.ne.s32.totalorder %s22, %s23
    %p34 = scmp.eq.s32.totalorder %s14, 0
    %p35 = por %p33, %p34
    %p36 = scmp.ne.s32.totalorder %s22, %s23
    %p37 = scmp.eq.s32.totalorder %s15, 1
    %p38 = por %p36, %p37
    %p40 = scmp.ne.s32.totalorder %s23, %s39
    %p41 = scmp.eq.s32.totalorder %s15, 0
    %p42 = por %p40, %p41
    %s44 = sadd.s32 %s43, 1
    %p47 = scmp.eq.s32.totalorder %s9, 1
    %p48 = scmp.ne.s32.totalorder %s43, %s45
    %p49 = scmp.eq.s32.totalorder %s9, 0
    %p50 = por %p48, %p49
    %p51 = scmp.ne.s32.totalorder %s43, %s45
    %p52 = scmp.eq.s32.totalorder %s14, 1
    %p53 = por %p51, %p52
    %p54 = scmp.ne.s32.totalorder %s45, %s46
    %p55 = scmp.eq.s32.totalorder %s14, 0
    %p56 = por %p54, %p55
    %p57 = scmp.ne.s32.totalorder %s45, %s46
    %p58 = scmp.eq.s32.totalorder %s15, 1
    %p59 = por %p57, %p58
    %p61 = scmp.ne.s32.totalorder %s46, %s60
    %p62 = scmp.eq.s32.totalorder %s15, 0
    %p63 = por %p61, %p62
    %s65 = sadd.s32 %s64, 1
    %p68 = scmp.eq.s32.totalorder %s9, 1
    %p69 = scmp.ne.s32.totalorder %s64, %s66
    %p70 = scmp.eq.s32.totalorder %s9, 0
    %p71 = por %p69, %p70
    %p72 = scmp.ne.s32.totalorder %s64, %s66
    %p73 = scmp.eq.s32.totalorder %s14, 1
    %p74 = por %p72, %p73
    %p75 = scmp.ne.s32.totalorder %s66, %s67
    %p76 = scmp.eq.s32.totalorder %s14, 0
    %p77 = por %p75, %p76
    %p78 = scmp.ne.s32.totalorder %s66, %s67
    %p79 = scmp.eq.s32.totalorder %s15, 1
    %p80 = por %p78, %p79
    %p82 = scmp.ne.s32.totalorder %s67, %s81
    %p83 = scmp.eq.s32.totalorder %s15, 0
    %p84 = por %p82, %p83
    %s85 = ssub.s32 %s9, %s16
    %p86 = scmp.eq.s32.totalorder %s85, 0
    %s88 = sadd.s32 %s87, 1
    %s89 = scalar_select %p86, %s87, %s88
    %p92 = pneg %p86
    %p93 = scmp.eq.s32.totalorder %s9, 1
    %p94 = por %p92, %p93
    %p95 = scmp.ne.s32.totalorder %s87, %s90
    %p96 = scmp.eq.s32.totalorder %s9, 0
    %p97 = por %p95, %p96
    %p98 = scmp.ne.s32.totalorder %s87, %s90
    %p99 = scmp.eq.s32.totalorder %s14, 1
    %p100 = por %p98, %p99
    %p101 = scmp.ne.s32.totalorder %s90, %s91
    %p102 = scmp.eq.s32.totalorder %s14, 0
    %p103 = por %p101, %p102
    %p104 = scmp.ne.s32.totalorder %s90, %s91
    %p105 = scmp.eq.s32.totalorder %s15, 1
    %p106 = por %p104, %p105
    %p108 = scmp.ne.s32.totalorder %s91, %s107
    %p109 = scmp.eq.s32.totalorder %s15, 0
    %p110 = por %p108, %p109
    %p111 = scmp.le.s32.totalorder 1, %s9
    %p112 = scmp.lt.s32.totalorder %s9, 3
    %p113 = pnand %p111, %p112
    %p114 = pneg %p113
    // Predicated region
    $region9: #{attention_augmented_conv2d.6} parent=5 // pred_check
      _
    $region10: #{attention_augmented_conv2d.6} parent=5 // pred_check_branch
      %116 = sbr.rel (%p113) target = $region12
    $region11: #{attention_augmented_conv2d.6} parent=5 // pred_region
      %s117 = ssub.s32 %s9, 1
      // Predicated region
      $region13: #{attention_augmented_conv2d.6} parent=11 // pred_check
        %p118 = pneg %p56
      $region14: #{attention_augmented_conv2d.6} parent=11 // pred_check_branch
        %120 = sbr.rel (%p118) target = $region16
      $region15: #{attention_augmented_conv2d.6} parent=11 // pred_region
        _
      $region16: #{attention_augmented_conv2d.6} parent=11 // pred_fallthru
        _
      // Predicated region
      $region17: #{attention_augmented_conv2d.6} parent=11 // pred_check
        %p121 = pneg %p77
      $region18: #{attention_augmented_conv2d.6} parent=11 // pred_check_branch
        %123 = sbr.rel (%p121) target = $region20
      $region19: #{attention_augmented_conv2d.6} parent=11 // pred_region
        _
      $region20: #{attention_augmented_conv2d.6} parent=11 // pred_fallthru
        _
    $region12: #{attention_augmented_conv2d.6} parent=5 // pred_fallthru
      _
    %p124 = scmp.lt.s32.totalorder %s9, 2
    // Predicated region
    $region21: #{attention_augmented_conv2d.6} parent=5 // pred_check
      %p125 = pneg %p124
    $region22: #{attention_augmented_conv2d.6} parent=5 // pred_check_branch
      %127 = sbr.rel (%p125) target = $region24
    $region23: #{attention_augmented_conv2d.6} parent=5 // pred_region
      // Predicated region
      $region25: #{attention_augmented_conv2d.6} parent=23 // pred_check
        %p128 = pneg %p29
      $region26: #{attention_augmented_conv2d.6} parent=23 // pred_check_branch
        %130 = sbr.rel (%p128) target = $region28
      $region27: #{attention_augmented_conv2d.6} parent=23 // pred_region
        %s131 = smul.u32 64, %s9
        %p132 = scmp.lt.s32.totalorder %s131, 127
        %s133 = scalar_select %p132, %s131, 127
        %s134 = smul.addr %s133, 4
        %s135 = scalar_lea.vmem %s0, %s134
        %s136 = smul.u32 64, %s9
      $region28: #{attention_augmented_conv2d.6} parent=23 // pred_fallthru
        _
    $region24: #{attention_augmented_conv2d.6} parent=5 // pred_fallthru
      _
    %p137 = scmp.le.s32.totalorder 1, %s9
    %p138 = scmp.lt.s32.totalorder %s9, 3
    %p139 = pnand %p137, %p138
    %p140 = pneg %p139
    // Predicated region
    $region29: #{attention_augmented_conv2d.6} parent=5 // pred_check
      _
    $region30: #{attention_augmented_conv2d.6} parent=5 // pred_check_branch
      %142 = sbr.rel (%p139) target = $region32
    $region31: #{attention_augmented_conv2d.6} parent=5 // pred_region
      %s143 = ssub.s32 %s9, 1
      %s144 = smul.u32 64, %s14
      %p145 = scmp.lt.s32.totalorder %s144, 127
      %s146 = scalar_select %p145, %s144, 127
      %s147 = smul.addr %s146, 4
      %s148 = scalar_lea.vmem %s0, %s147
      %p149 = pneg %p35
      %p150 = pneg %p32
      %p151 = pneg %p56
      %p152 = pneg %p53
      %p153 = pneg %p77
      %p154 = pneg %p74
      %p155 = pneg %p103
      %p156 = pneg %p100
      %s157 = smul.u32 64, %s14
      %p158 = scmp.lt.s32.totalorder %s157, 127
      %s159 = scalar_select %p158, %s157, 127
      %s160 = smul.addr %s159, 8
      %s161 = scalar_lea.vmem %s3, %s160
      %s162 = smul.u32 64, %s14
      %p163 = scmp.lt.s32.totalorder %s162, 127
      %s164 = scalar_select %p163, %s162, 127
      %s165 = smul.addr %s164, 4
      %s166 = scalar_lea.vmem %s0, %s165
      %s167 = smul.u32 64, %s14
      %s168 = smul.u32 64, %s14
      %p169 = scmp.lt.s32.totalorder %s168, 127
      %s170 = scalar_select %p169, %s168, 127
      %s171 = smul.addr %s170, 8
      %s172 = scalar_lea.vmem %s3, %s171
      %s173 = smul.u32 64, %s14
      %v175 = vld [vmem:[%s166] sm:$0xf]
      %v176 = vld [vmem:[%s166 + $0x4] sm:$0xf]
      %v177 = vld [vmem:[%s166 + $0x8] sm:$0xf]
      %v178 = vld [vmem:[%s166 + $0xc] sm:$0xf]
      %v179 = vld [vmem:[%s166 + $0x10] sm:$0xf]
      %v180 = vld [vmem:[%s166 + $0x14] sm:$0xf]
      %v181 = vld [vmem:[%s166 + $0x18] sm:$0xf]
      %v182 = vld [vmem:[%s166 + $0x1c] sm:$0xf]
      %v183 = vld [vmem:[%s166 + $0x20] sm:$0xf]
      %v184 = vld [vmem:[%s166 + $0x24] sm:$0xf]
      %v185 = vld [vmem:[%s166 + $0x28] sm:$0xf]
      %v186 = vld [vmem:[%s166 + $0x2c] sm:$0xf]
      %v187 = vld [vmem:[%s166 + $0x30] sm:$0xf]
      %v188 = vld [vmem:[%s166 + $0x34] sm:$0xf]
      %v189 = vld [vmem:[%s166 + $0x38] sm:$0xf]
      %v190 = vld [vmem:[%s166 + $0x3c] sm:$0xf]
      %v191 = vld [vmem:[%s166 + $0x40] sm:$0xf]
      %v192 = vld [vmem:[%s166 + $0x44] sm:$0xf]
      %v193 = vld [vmem:[%s166 + $0x48] sm:$0xf]
      %v194 = vld [vmem:[%s166 + $0x4c] sm:$0xf]
      %v195 = vld [vmem:[%s166 + $0x50] sm:$0xf]
      %v196 = vld [vmem:[%s166 + $0x54] sm:$0xf]
      %v197 = vld [vmem:[%s166 + $0x58] sm:$0xf]
      %v198 = vld [vmem:[%s166 + $0x5c] sm:$0xf]
      %v199 = vld [vmem:[%s166 + $0x60] sm:$0xf]
      %v200 = vld [vmem:[%s166 + $0x64] sm:$0xf]
      %v201 = vld [vmem:[%s166 + $0x68] sm:$0xf]
      %v202 = vld [vmem:[%s166 + $0x6c] sm:$0xf]
      %v203 = vld [vmem:[%s166 + $0x70] sm:$0xf]
      %v204 = vld [vmem:[%s166 + $0x74] sm:$0xf]
      %v205 = vld [vmem:[%s166 + $0x78] sm:$0xf]
      %v206 = vld [vmem:[%s166 + $0x7c] sm:$0xf]
      %v207 = vld [vmem:[%s166 + $0x80] sm:$0xf]
      %v208 = vld [vmem:[%s166 + $0x84] sm:$0xf]
      %v209 = vld [vmem:[%s166 + $0x88] sm:$0xf]
      %v210 = vld [vmem:[%s166 + $0x8c] sm:$0xf]
      %v211 = vld [vmem:[%s166 + $0x90] sm:$0xf]
      %v212 = vld [vmem:[%s166 + $0x94] sm:$0xf]
      %v213 = vld [vmem:[%s166 + $0x98] sm:$0xf]
      %v214 = vld [vmem:[%s166 + $0x9c] sm:$0xf]
      %v215 = vld [vmem:[%s166 + $0xa0] sm:$0xf]
      %v216 = vld [vmem:[%s166 + $0xa4] sm:$0xf]
      %v217 = vld [vmem:[%s166 + $0xa8] sm:$0xf]
      %v218 = vld [vmem:[%s166 + $0xac] sm:$0xf]
      %v219 = vld [vmem:[%s166 + $0xb0] sm:$0xf]
      %v220 = vld [vmem:[%s166 + $0xb4] sm:$0xf]
      %v221 = vld [vmem:[%s166 + $0xb8] sm:$0xf]
      %v222 = vld [vmem:[%s166 + $0xbc] sm:$0xf]
      %v223 = vld [vmem:[%s166 + $0xc0] sm:$0xf]
      %v224 = vld [vmem:[%s166 + $0xc4] sm:$0xf]
      %v225 = vld [vmem:[%s166 + $0xc8] sm:$0xf]
      %v226 = vld [vmem:[%s166 + $0xcc] sm:$0xf]
      %v227 = vld [vmem:[%s166 + $0xd0] sm:$0xf]
      %v228 = vld [vmem:[%s166 + $0xd4] sm:$0xf]
      %v229 = vld [vmem:[%s166 + $0xd8] sm:$0xf]
      %v230 = vld [vmem:[%s166 + $0xdc] sm:$0xf]
      %v231 = vld [vmem:[%s166 + $0xe0] sm:$0xf]
      %v232 = vld [vmem:[%s166 + $0xe4] sm:$0xf]
      %v233 = vld [vmem:[%s166 + $0xe8] sm:$0xf]
      %v234 = vld [vmem:[%s166 + $0xec] sm:$0xf]
      %v235 = vld [vmem:[%s166 + $0xf0] sm:$0xf]
      %v236 = vld [vmem:[%s166 + $0xf4] sm:$0xf]
      %v237 = vld [vmem:[%s166 + $0xf8] sm:$0xf]
      %v238 = vld [vmem:[%s166 + $0xfc] sm:$0xf]
      %v239 = vld [vmem:[%s1] sm:$0x3]
      %v240 = vld [vmem:[%s2] sm:$0x1]
      %v242 = vlaneseq
      %v243 = vshrl.u32 %v242, 7
      %v244 = vsub.s32 0, %v243
      %v245 = vrot.slane %v240, %v244
      %v311 = vunpack.c.l.b16 %v175
      %v312 = vunpack.c.l.b16 %v176
      %v313 = vunpack.c.l.b16 %v177
      %v314 = vunpack.c.l.b16 %v178
      %v315 = vunpack.c.l.b16 %v179
      %v316 = vunpack.c.l.b16 %v180
      %v317 = vunpack.c.l.b16 %v181
      %v318 = vunpack.c.l.b16 %v182
      %v319 = vunpack.c.l.b16 %v183
      %v320 = vunpack.c.l.b16 %v184
      %v321 = vunpack.c.l.b16 %v185
      %v322 = vunpack.c.l.b16 %v186
      %v323 = vunpack.c.l.b16 %v187
      %v324 = vunpack.c.l.b16 %v188
      %v325 = vunpack.c.l.b16 %v189
      %v326 = vunpack.c.l.b16 %v190
      %v327 = vunpack.c.l.b16 %v191
      %v328 = vunpack.c.l.b16 %v192
      %v329 = vunpack.c.l.b16 %v193
      %v330 = vunpack.c.l.b16 %v194
      %v331 = vunpack.c.l.b16 %v195
      %v332 = vunpack.c.l.b16 %v196
      %v333 = vunpack.c.l.b16 %v197
      %v334 = vunpack.c.l.b16 %v198
      %v335 = vunpack.c.l.b16 %v199
      %v336 = vunpack.c.l.b16 %v200
      %v337 = vunpack.c.l.b16 %v201
      %v338 = vunpack.c.l.b16 %v202
      %v339 = vunpack.c.l.b16 %v203
      %v340 = vunpack.c.l.b16 %v204
      %v341 = vunpack.c.l.b16 %v205
      %v342 = vunpack.c.l.b16 %v206
      %v343 = vunpack.c.l.b16 %v207
      %v344 = vunpack.c.l.b16 %v208
      %v345 = vunpack.c.l.b16 %v209
      %v346 = vunpack.c.l.b16 %v210
      %v347 = vunpack.c.l.b16 %v211
      %v348 = vunpack.c.l.b16 %v212
      %v349 = vunpack.c.l.b16 %v213
      %v350 = vunpack.c.l.b16 %v214
      %v351 = vunpack.c.l.b16 %v215
      %v352 = vunpack.c.l.b16 %v216
      %v353 = vunpack.c.l.b16 %v217
      %v354 = vunpack.c.l.b16 %v218
      %v355 = vunpack.c.l.b16 %v219
      %v356 = vunpack.c.l.b16 %v220
      %v357 = vunpack.c.l.b16 %v221
      %v358 = vunpack.c.l.b16 %v222
      %v359 = vunpack.c.l.b16 %v223
      %v360 = vunpack.c.l.b16 %v224
      %v361 = vunpack.c.l.b16 %v225
      %v362 = vunpack.c.l.b16 %v226
      %v363 = vunpack.c.l.b16 %v227
      %v364 = vunpack.c.l.b16 %v228
      %v365 = vunpack.c.l.b16 %v229
      %v366 = vunpack.c.l.b16 %v230
      %v367 = vunpack.c.l.b16 %v231
      %v368 = vunpack.c.l.b16 %v232
      %v369 = vunpack.c.l.b16 %v233
      %v370 = vunpack.c.l.b16 %v234
      %v371 = vunpack.c.l.b16 %v235
      %v372 = vunpack.c.l.b16 %v236
      %v373 = vunpack.c.l.b16 %v237
      %v374 = vunpack.c.l.b16 %v238
      %v375 = vpack.c.b16 %v312, %v311
      %v376 = vpack.c.b16 %v314, %v313
      %v377 = vpack.c.b16 %v316, %v315
      %v378 = vpack.c.b16 %v318, %v317
      %v379 = vpack.c.b16 %v320, %v319
      %v380 = vpack.c.b16 %v322, %v321
      %v381 = vpack.c.b16 %v324, %v323
      %v382 = vpack.c.b16 %v326, %v325
      %v383 = vpack.c.b16 %v328, %v327
      %v384 = vpack.c.b16 %v330, %v329
      %v385 = vpack.c.b16 %v332, %v331
      %v386 = vpack.c.b16 %v334, %v333
      %v387 = vpack.c.b16 %v336, %v335
      %v388 = vpack.c.b16 %v338, %v337
      %v389 = vpack.c.b16 %v340, %v339
      %v390 = vpack.c.b16 %v342, %v341
      %v391 = vpack.c.b16 %v344, %v343
      %v392 = vpack.c.b16 %v346, %v345
      %v393 = vpack.c.b16 %v348, %v347
      %v394 = vpack.c.b16 %v350, %v349
      %v395 = vpack.c.b16 %v352, %v351
      %v396 = vpack.c.b16 %v354, %v353
      %v397 = vpack.c.b16 %v356, %v355
      %v398 = vpack.c.b16 %v358, %v357
      %v399 = vpack.c.b16 %v360, %v359
      %v400 = vpack.c.b16 %v362, %v361
      %v401 = vpack.c.b16 %v364, %v363
      %v402 = vpack.c.b16 %v366, %v365
      %v403 = vpack.c.b16 %v368, %v367
      %v404 = vpack.c.b16 %v370, %v369
      %v405 = vpack.c.b16 %v372, %v371
      %v406 = vpack.c.b16 %v374, %v373
      %vm407 = vcmask 31744
      %v409 = vsel %vm407, %v375, 0
      %v412 = vsel %vm407, %v376, 0
      %v415 = vsel %vm407, %v377, 0
      %v418 = vsel %vm407, %v378, 0
      %v421 = vsel %vm407, %v379, 0
      %v424 = vsel %vm407, %v380, 0
      %v427 = vsel %vm407, %v381, 0
      %v430 = vsel %vm407, %v382, 0
      %v433 = vsel %vm407, %v383, 0
      %v436 = vsel %vm407, %v384, 0
      %v439 = vsel %vm407, %v385, 0
      %v442 = vsel %vm407, %v386, 0
      %v445 = vsel %vm407, %v387, 0
      %v448 = vsel %vm407, %v388, 0
      %v451 = vsel %vm407, %v389, 0
      %v454 = vsel %vm407, %v390, 0
      %v457 = vsel %vm407, %v391, 0
      %v460 = vsel %vm407, %v392, 0
      %v463 = vsel %vm407, %v393, 0
      %v466 = vsel %vm407, %v394, 0
      %v469 = vsel %vm407, %v395, 0
      %v472 = vsel %vm407, %v396, 0
      %v475 = vsel %vm407, %v397, 0
      %v478 = vsel %vm407, %v398, 0
      %v481 = vsel %vm407, %v399, 0
      %v484 = vsel %vm407, %v400, 0
      %v487 = vsel %vm407, %v401, 0
      %v490 = vsel %vm407, %v402, 0
      %v493 = vsel %vm407, %v403, 0
      %v496 = vsel %vm407, %v404, 0
      %v499 = vsel %vm407, %v405, 0
      %v502 = vsel %vm407, %v406, 0
      %vm504 = vcmask 1041408
      %v506 = vsel %vm504, %v239, 0
      %508 = vmatprep.subr.bf16.mxu0 0
      %509 = vmatpush1.bf16.msra.mxu0 %v506
      %510 = vmatprep.subr.bf16.mxu0 0
      %511 = vmatpush1.bf16.msra.mxu0 0
      %512 = vmatprep.subr.bf16.mxu0 0
      %513 = vmatpush1.bf16.msra.mxu0 0
      %514 = vmatprep.subr.bf16.mxu0 0
      %515 = vmatpush1.bf16.msra.mxu0 0
      %516 = vmatprep.subr.bf16.mxu0 0
      %517 = vmatpush1.bf16.msra.mxu0 0
      %518 = vmatprep.subr.bf16.mxu0 0
      %519 = vmatpush1.bf16.msra.mxu0 0
      %520 = vmatprep.subr.bf16.mxu0 0
      %521 = vmatpush1.bf16.msra.mxu0 0
      %522 = vmatprep.subr.bf16.mxu0 0
      %523 = vmatpush1.bf16.msra.mxu0 0
      %524 = vmatprep.subr.bf16.mxu0 0
      %525 = vmatpush1.bf16.msra.mxu0 0
      %526 = vmatprep.subr.bf16.mxu0 0
      %527 = vmatpush1.bf16.msra.mxu0 0
      %528 = vmatprep.subr.bf16.mxu0 0
      %529 = vmatpush1.bf16.msra.mxu0 0
      %530 = vmatprep.subr.bf16.mxu0 0
      %531 = vmatpush1.bf16.msra.mxu0 0
      %532 = vmatprep.subr.bf16.mxu0 0
      %533 = vmatpush1.bf16.msra.mxu0 0
      %534 = vmatprep.subr.bf16.mxu0 0
      %535 = vmatpush1.bf16.msra.mxu0 0
      %536 = vmatprep.subr.bf16.mxu0 0
      %537 = vmatpush1.bf16.msra.mxu0 0
      %538 = vmatprep.subr.bf16.mxu0 0
      %539 = vmatpush1.bf16.msra.mxu0 0
      %540 = vmatprep.mubr.bf16.mxu0 0
      %541 = vmatmul.mubr.bf16.gmra.mrb[0].mxu0 %v409
      %v542 = vpop.f32.mrb[0].mxu0
      %v543 = vadd.f32 %v245, %v542
      %v544 = vpop.f32.mrb[0].mxu0
      %v545 = vpop.f32.mrb[0].mxu0
      %v546 = vadd.f32 %v245, %v545
      %v547 = vpop.f32.mrb[0].mxu0
      %548 = vmatprep.mubr.bf16.mxu0 0
      %549 = vmatmul.mubr.bf16.gmra.mrb[0].mxu0 %v412
      %v550 = vpop.f32.mrb[0].mxu0
      %v551 = vadd.f32 %v245, %v550
      %v552 = vpop.f32.mrb[0].mxu0
      %v553 = vpop.f32.mrb[0].mxu0
      %v554 = vadd.f32 %v245, %v553
      %v555 = vpop.f32.mrb[0].mxu0
      %556 = vmatprep.mubr.bf16.mxu0 0
      %557 = vmatmul.mubr.bf16.gmra.mrb[0].mxu0 %v415
      %v558 = vpop.f32.mrb[0].mxu0
      %v559 = vadd.f32 %v245, %v558
      %v560 = vpop.f32.mrb[0].mxu0
      %v561 = vpop.f32.mrb[0].mxu0
      %v562 = vadd.f32 %v245, %v561
      %v563 = vpop.f32.mrb[0].mxu0
      %564 = vmatprep.mubr.bf16.mxu0 0
      %565 = vmatmul.mubr.bf16.gmra.mrb[0].mxu0 %v418
      %v566 = vpop.f32.mrb[0].mxu0
      %v567 = vadd.f32 %v245, %v566
      %v568 = vpop.f32.mrb[0].mxu0
      %v569 = vpop.f32.mrb[0].mxu0
      %v570 = vadd.f32 %v245, %v569
      %v571 = vpop.f32.mrb[0].mxu0
      %572 = vmatprep.mubr.bf16.mxu0 0
      %573 = vmatmul.mubr.bf16.gmra.mrb[0].mxu0 %v421
      %v574 = vpop.f32.mrb[0].mxu0
      %v575 = vadd.f32 %v245, %v574
      %v576 = vpop.f32.mrb[0].mxu0
      %v577 = vpop.f32.mrb[0].mxu0
      %v578 = vadd.f32 %v245, %v577
      %v579 = vpop.f32.mrb[0].mxu0
      %580 = vmatprep.mubr.bf16.mxu0 0
      %581 = vmatmul.mubr.bf16.gmra.mrb[0].mxu0 %v424
      %v582 = vpop.f32.mrb[0].mxu0
      %v583 = vadd.f32 %v245, %v582
      %v584 = vpop.f32.mrb[0].mxu0
      %v585 = vpop.f32.mrb[0].mxu0
      %v586 = vadd.f32 %v245, %v585
      %v587 = vpop.f32.mrb[0].mxu0
      %588 = vmatprep.mubr.bf16.mxu0 0
      %589 = vmatmul.mubr.bf16.gmra.mrb[0].mxu0 %v427
      %v590 = vpop.f32.mrb[0].mxu0
      %v591 = vadd.f32 %v245, %v590
      %v592 = vpop.f32.mrb[0].mxu0
      %v593 = vpop.f32.mrb[0].mxu0
      %v594 = vadd.f32 %v245, %v593
      %v595 = vpop.f32.mrb[0].mxu0
      %596 = vmatprep.mubr.bf16.mxu0 0
      %597 = vmatmul.mubr.bf16.gmra.mrb[0].mxu0 %v430
      %v598 = vpop.f32.mrb[0].mxu0
      %v599 = vadd.f32 %v245, %v598
      %v600 = vpop.f32.mrb[0].mxu0
      %v601 = vpop.f32.mrb[0].mxu0
      %v602 = vadd.f32 %v245, %v601
      %v603 = vpop.f32.mrb[0].mxu0
      %604 = vmatprep.mubr.bf16.mxu0 0
      %605 = vmatmul.mubr.bf16.gmra.mrb[0].mxu0 %v433
      %v606 = vpop.f32.mrb[0].mxu0
      %v607 = vadd.f32 %v245, %v606
      %v608 = vpop.f32.mrb[0].mxu0
      %v609 = vpop.f32.mrb[0].mxu0
      %v610 = vadd.f32 %v245, %v609
      %v611 = vpop.f32.mrb[0].mxu0
      %612 = vmatprep.mubr.bf16.mxu0 0
      %613 = vmatmul.mubr.bf16.gmra.mrb[0].mxu0 %v436
      %v614 = vpop.f32.mrb[0].mxu0
      %v615 = vadd.f32 %v245, %v614
      %v616 = vpop.f32.mrb[0].mxu0
      %v617 = vpop.f32.mrb[0].mxu0
      %v618 = vadd.f32 %v245, %v617
      %v619 = vpop.f32.mrb[0].mxu0
      %620 = vmatprep.mubr.bf16.mxu0 0
      %621 = vmatmul.mubr.bf16.gmra.mrb[0].mxu0 %v439
      %v622 = vpop.f32.mrb[0].mxu0
      %v623 = vadd.f32 %v245, %v622
      %v624 = vpop.f32.mrb[0].mxu0
      %v625 = vpop.f32.mrb[0].mxu0
      %v626 = vadd.f32 %v245, %v625
      %v627 = vpop.f32.mrb[0].mxu0
      %628 = vmatprep.mubr.bf16.mxu0 0
      %629 = vmatmul.mubr.bf16.gmra.mrb[0].mxu0 %v442
      %v630 = vpop.f32.mrb[0].mxu0
      %v631 = vadd.f32 %v245, %v630
      %v632 = vpop.f32.mrb[0].mxu0
      %v633 = vpop.f32.mrb[0].mxu0
      %v634 = vadd.f32 %v245, %v633
      %v635 = vpop.f32.mrb[0].mxu0
      %636 = vmatprep.mubr.bf16.mxu0 0
      %637 = vmatmul.mubr.bf16.gmra.mrb[0].mxu0 %v445
      %v638 = vpop.f32.mrb[0].mxu0
      %v639 = vadd.f32 %v245, %v638
      %v640 = vpop.f32.mrb[0].mxu0
      %v641 = vpop.f32.mrb[0].mxu0
      %v642 = vadd.f32 %v245, %v641
      %v643 = vpop.f32.mrb[0].mxu0
      %644 = vmatprep.mubr.bf16.mxu0 0
      %645 = vmatmul.mubr.bf16.gmra.mrb[0].mxu0 %v448
      %v646 = vpop.f32.mrb[0].mxu0
      %v647 = vadd.f32 %v245, %v646
      %v648 = vpop.f32.mrb[0].mxu0
      %v649 = vpop.f32.mrb[0].mxu0
      %v650 = vadd.f32 %v245, %v649
      %v651 = vpop.f32.mrb[0].mxu0
      %652 = vmatprep.mubr.bf16.mxu0 0
      %653 = vmatmul.mubr.bf16.gmra.mrb[0].mxu0 %v451
      %v654 = vpop.f32.mrb[0].mxu0
      %v655 = vadd.f32 %v245, %v654
      %v656 = vpop.f32.mrb[0].mxu0
      %v657 = vpop.f32.mrb[0].mxu0
      %v658 = vadd.f32 %v245, %v657
      %v659 = vpop.f32.mrb[0].mxu0
      %660 = vmatprep.mubr.bf16.mxu0 0
      %661 = vmatmul.mubr.bf16.gmra.mrb[0].mxu0 %v454
      %v662 = vpop.f32.mrb[0].mxu0
      %v663 = vadd.f32 %v245, %v662
      %v664 = vpop.f32.mrb[0].mxu0
      %v665 = vpop.f32.mrb[0].mxu0
      %v666 = vadd.f32 %v245, %v665
      %v667 = vpop.f32.mrb[0].mxu0
      %668 = vmatprep.mubr.bf16.mxu0 0
      %669 = vmatmul.mubr.bf16.gmra.mrb[0].mxu0 %v457
      %v670 = vpop.f32.mrb[0].mxu0
      %v671 = vadd.f32 %v245, %v670
      %v672 = vpop.f32.mrb[0].mxu0
      %v673 = vpop.f32.mrb[0].mxu0
      %v674 = vadd.f32 %v245, %v673
      %v675 = vpop.f32.mrb[0].mxu0
      %676 = vmatprep.mubr.bf16.mxu0 0
      %677 = vmatmul.mubr.bf16.gmra.mrb[0].mxu0 %v460
      %v678 = vpop.f32.mrb[0].mxu0
      %v679 = vadd.f32 %v245, %v678
      %v680 = vpop.f32.mrb[0].mxu0
      %v681 = vpop.f32.mrb[0].mxu0
      %v682 = vadd.f32 %v245, %v681
      %v683 = vpop.f32.mrb[0].mxu0
      %684 = vmatprep.mubr.bf16.mxu0 0
      %685 = vmatmul.mubr.bf16.gmra.mrb[0].mxu0 %v463
      %v686 = vpop.f32.mrb[0].mxu0
      %v687 = vadd.f32 %v245, %v686
      %v688 = vpop.f32.mrb[0].mxu0
      %v689 = vpop.f32.mrb[0].mxu0
      %v690 = vadd.f32 %v245, %v689
      %v691 = vpop.f32.mrb[0].mxu0
      %692 = vmatprep.mubr.bf16.mxu0 0
      %693 = vmatmul.mubr.bf16.gmra.mrb[0].mxu0 %v466
      %v694 = vpop.f32.mrb[0].mxu0
      %v695 = vadd.f32 %v245, %v694
      %v696 = vpop.f32.mrb[0].mxu0
      %v697 = vpop.f32.mrb[0].mxu0
      %v698 = vadd.f32 %v245, %v697
      %v699 = vpop.f32.mrb[0].mxu0
      %700 = vmatprep.mubr.bf16.mxu0 0
      %701 = vmatmul.mubr.bf16.gmra.mrb[0].mxu0 %v469
      %v702 = vpop.f32.mrb[0].mxu0
      %v703 = vadd.f32 %v245, %v702
      %v704 = vpop.f32.mrb[0].mxu0
      %v705 = vpop.f32.mrb[0].mxu0
      %v706 = vadd.f32 %v245, %v705
      %v707 = vpop.f32.mrb[0].mxu0
      %708 = vmatprep.mubr.bf16.mxu0 0
      %709 = vmatmul.mubr.bf16.gmra.mrb[0].mxu0 %v472
      %v710 = vpop.f32.mrb[0].mxu0
      %v711 = vadd.f32 %v245, %v710
      %v712 = vpop.f32.mrb[0].mxu0
      %v713 = vpop.f32.mrb[0].mxu0
      %v714 = vadd.f32 %v245, %v713
      %v715 = vpop.f32.mrb[0].mxu0
      %716 = vmatprep.mubr.bf16.mxu0 0
      %717 = vmatmul.mubr.bf16.gmra.mrb[0].mxu0 %v475
      %v718 = vpop.f32.mrb[0].mxu0
      %v719 = vadd.f32 %v245, %v718
      %v720 = vpop.f32.mrb[0].mxu0
      %v721 = vpop.f32.mrb[0].mxu0
      %v722 = vadd.f32 %v245, %v721
      %v723 = vpop.f32.mrb[0].mxu0
      %724 = vmatprep.mubr.bf16.mxu0 0
      %725 = vmatmul.mubr.bf16.gmra.mrb[0].mxu0 %v478
      %v726 = vpop.f32.mrb[0].mxu0
      %v727 = vadd.f32 %v245, %v726
      %v728 = vpop.f32.mrb[0].mxu0
      %v729 = vpop.f32.mrb[0].mxu0
      %v730 = vadd.f32 %v245, %v729
      %v731 = vpop.f32.mrb[0].mxu0
      %732 = vmatprep.mubr.bf16.mxu0 0
      %733 = vmatmul.mubr.bf16.gmra.mrb[0].mxu0 %v481
      %v734 = vpop.f32.mrb[0].mxu0
      %v735 = vadd.f32 %v245, %v734
      %v736 = vpop.f32.mrb[0].mxu0
      %v737 = vpop.f32.mrb[0].mxu0
      %v738 = vadd.f32 %v245, %v737
      %v739 = vpop.f32.mrb[0].mxu0
      %740 = vmatprep.mubr.bf16.mxu0 0
      %741 = vmatmul.mubr.bf16.gmra.mrb[0].mxu0 %v484
      %v742 = vpop.f32.mrb[0].mxu0
      %v743 = vadd.f32 %v245, %v742
      %v744 = vpop.f32.mrb[0].mxu0
      %v745 = vpop.f32.mrb[0].mxu0
      %v746 = vadd.f32 %v245, %v745
      %v747 = vpop.f32.mrb[0].mxu0
      %748 = vmatprep.mubr.bf16.mxu0 0
      %749 = vmatmul.mubr.bf16.gmra.mrb[0].mxu0 %v487
      %v750 = vpop.f32.mrb[0].mxu0
      %v751 = vadd.f32 %v245, %v750
      %v752 = vpop.f32.mrb[0].mxu0
      %v753 = vpop.f32.mrb[0].mxu0
      %v754 = vadd.f32 %v245, %v753
      %v755 = vpop.f32.mrb[0].mxu0
      %756 = vmatprep.mubr.bf16.mxu0 0
      %757 = vmatmul.mubr.bf16.gmra.mrb[0].mxu0 %v490
      %v758 = vpop.f32.mrb[0].mxu0
      %v759 = vadd.f32 %v245, %v758
      %v760 = vpop.f32.mrb[0].mxu0
      %v761 = vpop.f32.mrb[0].mxu0
      %v762 = vadd.f32 %v245, %v761
      %v763 = vpop.f32.mrb[0].mxu0
      %764 = vmatprep.mubr.bf16.mxu0 0
      %765 = vmatmul.mubr.bf16.gmra.mrb[0].mxu0 %v493
      %v766 = vpop.f32.mrb[0].mxu0
      %v767 = vadd.f32 %v245, %v766
      %v768 = vpop.f32.mrb[0].mxu0
      %v769 = vpop.f32.mrb[0].mxu0
      %v770 = vadd.f32 %v245, %v769
      %v771 = vpop.f32.mrb[0].mxu0
      %772 = vmatprep.mubr.bf16.mxu0 0
      %773 = vmatmul.mubr.bf16.gmra.mrb[0].mxu0 %v496
      %v774 = vpop.f32.mrb[0].mxu0
      %v775 = vadd.f32 %v245, %v774
      %v776 = vpop.f32.mrb[0].mxu0
      %v777 = vpop.f32.mrb[0].mxu0
      %v778 = vadd.f32 %v245, %v777
      %v779 = vpop.f32.mrb[0].mxu0
      %780 = vmatprep.mubr.bf16.mxu0 0
      %781 = vmatmul.mubr.bf16.gmra.mrb[0].mxu0 %v499
      %v782 = vpop.f32.mrb[0].mxu0
      %v783 = vadd.f32 %v245, %v782
      %v784 = vpop.f32.mrb[0].mxu0
      %v785 = vpop.f32.mrb[0].mxu0
      %v786 = vadd.f32 %v245, %v785
      %v787 = vpop.f32.mrb[0].mxu0
      %788 = vmatprep.mubr.bf16.mxu0 0
      %789 = vmatmul.mubr.bf16.gmra.mrb[0].mxu0 %v502
      %v790 = vpop.f32.mrb[0].mxu0
      %v791 = vadd.f32 %v245, %v790
      %v792 = vpop.f32.mrb[0].mxu0
      %v793 = vpop.f32.mrb[0].mxu0
      %v794 = vadd.f32 %v245, %v793
      %v795 = vpop.f32.mrb[0].mxu0
      %796 = vdwg.mxu0
      %797 = vst [vmem:[%s172] sm:$0xff] %v543
      %798 = vst [vmem:[%s172 + $0x8] sm:$0xff] %v546
      %799 = vst [vmem:[%s172 + $0x10] sm:$0xff] %v551
      %800 = vst [vmem:[%s172 + $0x18] sm:$0xff] %v554
      %801 = vst [vmem:[%s172 + $0x20] sm:$0xff] %v559
      %802 = vst [vmem:[%s172 + $0x28] sm:$0xff] %v562
      %803 = vst [vmem:[%s172 + $0x30] sm:$0xff] %v567
      %804 = vst [vmem:[%s172 + $0x38] sm:$0xff] %v570
      %805 = vst [vmem:[%s172 + $0x40] sm:$0xff] %v575
      %806 = vst [vmem:[%s172 + $0x48] sm:$0xff] %v578
      %807 = vst [vmem:[%s172 + $0x50] sm:$0xff] %v583
      %808 = vst [vmem:[%s172 + $0x58] sm:$0xff] %v586
      %809 = vst [vmem:[%s172 + $0x60] sm:$0xff] %v591
      %810 = vst [vmem:[%s172 + $0x68] sm:$0xff] %v594
      %811 = vst [vmem:[%s172 + $0x70] sm:$0xff] %v599
      %812 = vst [vmem:[%s172 + $0x78] sm:$0xff] %v602
      %813 = vst [vmem:[%s172 + $0x80] sm:$0xff] %v607
      %814 = vst [vmem:[%s172 + $0x88] sm:$0xff] %v610
      %815 = vst [vmem:[%s172 + $0x90] sm:$0xff] %v615
      %816 = vst [vmem:[%s172 + $0x98] sm:$0xff] %v618
      %817 = vst [vmem:[%s172 + $0xa0] sm:$0xff] %v623
      %818 = vst [vmem:[%s172 + $0xa8] sm:$0xff] %v626
      %819 = vst [vmem:[%s172 + $0xb0] sm:$0xff] %v631
      %820 = vst [vmem:[%s172 + $0xb8] sm:$0xff] %v634
      %821 = vst [vmem:[%s172 + $0xc0] sm:$0xff] %v639
      %822 = vst [vmem:[%s172 + $0xc8] sm:$0xff] %v642
      %823 = vst [vmem:[%s172 + $0xd0] sm:$0xff] %v647
      %824 = vst [vmem:[%s172 + $0xd8] sm:$0xff] %v650
      %825 = vst [vmem:[%s172 + $0xe0] sm:$0xff] %v655
      %826 = vst [vmem:[%s172 + $0xe8] sm:$0xff] %v658
      %827 = vst [vmem:[%s172 + $0xf0] sm:$0xff] %v663
      %828 = vst [vmem:[%s172 + $0xf8] sm:$0xff] %v666
      %829 = vst [vmem:[%s172 + $0x100] sm:$0xff] %v671
      %830 = vst [vmem:[%s172 + $0x108] sm:$0xff] %v674
      %831 = vst [vmem:[%s172 + $0x110] sm:$0xff] %v679
      %832 = vst [vmem:[%s172 + $0x118] sm:$0xff] %v682
      %833 = vst [vmem:[%s172 + $0x120] sm:$0xff] %v687
      %834 = vst [vmem:[%s172 + $0x128] sm:$0xff] %v690
      %835 = vst [vmem:[%s172 + $0x130] sm:$0xff] %v695
      %836 = vst [vmem:[%s172 + $0x138] sm:$0xff] %v698
      %837 = vst [vmem:[%s172 + $0x140] sm:$0xff] %v703
      %838 = vst [vmem:[%s172 + $0x148] sm:$0xff] %v706
      %839 = vst [vmem:[%s172 + $0x150] sm:$0xff] %v711
      %840 = vst [vmem:[%s172 + $0x158] sm:$0xff] %v714
      %841 = vst [vmem:[%s172 + $0x160] sm:$0xff] %v719
      %842 = vst [vmem:[%s172 + $0x168] sm:$0xff] %v722
      %843 = vst [vmem:[%s172 + $0x170] sm:$0xff] %v727
      %844 = vst [vmem:[%s172 + $0x178] sm:$0xff] %v730
      %845 = vst [vmem:[%s172 + $0x180] sm:$0xff] %v735
      %846 = vst [vmem:[%s172 + $0x188] sm:$0xff] %v738
      %847 = vst [vmem:[%s172 + $0x190] sm:$0xff] %v743
      %848 = vst [vmem:[%s172 + $0x198] sm:$0xff] %v746
      %849 = vst [vmem:[%s172 + $0x1a0] sm:$0xff] %v751
      %850 = vst [vmem:[%s172 + $0x1a8] sm:$0xff] %v754
      %851 = vst [vmem:[%s172 + $0x1b0] sm:$0xff] %v759
      %852 = vst [vmem:[%s172 + $0x1b8] sm:$0xff] %v762
      %853 = vst [vmem:[%s172 + $0x1c0] sm:$0xff] %v767
      %854 = vst [vmem:[%s172 + $0x1c8] sm:$0xff] %v770
      %855 = vst [vmem:[%s172 + $0x1d0] sm:$0xff] %v775
      %856 = vst [vmem:[%s172 + $0x1d8] sm:$0xff] %v778
      %857 = vst [vmem:[%s172 + $0x1e0] sm:$0xff] %v783
      %858 = vst [vmem:[%s172 + $0x1e8] sm:$0xff] %v786
      %859 = vst [vmem:[%s172 + $0x1f0] sm:$0xff] %v791
      %860 = vst [vmem:[%s172 + $0x1f8] sm:$0xff] %v794
      %s861 = smul.u32 64, %s14
      %p862 = scmp.lt.s32.totalorder %s861, 127
      %s863 = scalar_select %p862, %s861, 127
      %s864 = smul.addr %s863, 8
      %s865 = scalar_lea.vmem %s3, %s864
      // Predicated region
      $region33: #{attention_augmented_conv2d.6} parent=31 // pred_check
        %p866 = pneg %p100
      $region34: #{attention_augmented_conv2d.6} parent=31 // pred_check_branch
        %868 = sbr.rel (%p866) target = $region36
      $region35: #{attention_augmented_conv2d.6} parent=31 // pred_region
        %s869 = smul.u32 64, %s14
      $region36: #{attention_augmented_conv2d.6} parent=31 // pred_fallthru
        _
    $region32: #{attention_augmented_conv2d.6} parent=5 // pred_fallthru
      _
    %p870 = scmp.le.s32.totalorder 2, %s9
    // Predicated region
    $region37: #{attention_augmented_conv2d.6} parent=5 // pred_check
      %p871 = pneg %p870
    $region38: #{attention_augmented_conv2d.6} parent=5 // pred_check_branch
      %873 = sbr.rel (%p871) target = $region40
    $region39: #{attention_augmented_conv2d.6} parent=5 // pred_region
      %s874 = ssub.s32 %s9, 2
      // Predicated region
      $region41: #{attention_augmented_conv2d.6} parent=39 // pred_check
        %p875 = pneg %p106
      $region42: #{attention_augmented_conv2d.6} parent=39 // pred_check_branch
        %877 = sbr.rel (%p875) target = $region44
      $region43: #{attention_augmented_conv2d.6} parent=39 // pred_region
        %s878 = smul.u32 64, %s15
        %p879 = scmp.lt.s32.totalorder %s878, 127
        %s880 = scalar_select %p879, %s878, 127
        %s881 = smul.addr %s880, 8
        %s882 = scalar_lea.vmem %s3, %s881
      $region44: #{attention_augmented_conv2d.6} parent=39 // pred_fallthru
        _
    $region40: #{attention_augmented_conv2d.6} parent=5 // pred_fallthru
      _
  $region6: #{attention_augmented_conv2d.6} parent=0 // loop_footer
    %s13 = sadd.s32 1, %s9
  $region7: #{attention_augmented_conv2d.6} parent=0 // loop_footer_branch
    %8 = sbr.rel target = $region3
  $region8: #{attention_augmented_conv2d.6} parent=0 // loop_exit
    _

// kernel: attention_augmented_conv2d.8
$region0: #{attention_augmented_conv2d.8}
  #allocation0 [shape = 'u32[]', space=smem, size = 0x4, offset = 0x4, fixed_abs, tag = 'smem constant byte address 0x4 - core index']
  #allocation1 [shape = 'u32[144,128]{1,0:T(1,128)}', space=vmem, size = 0x12000, scoped, tag = 'internal scratch']
  %s0 = inlined_call_operand.vmem [shape: bf16[512,4], index: 0, kind: input, shape index: {}]
  %s1 = inlined_call_operand.vmem [shape: bf16[4,128], index: 1, kind: input, shape index: {}]
  %s2 = inlined_call_operand.vmem [shape: f32[1,128], index: 2, kind: input, shape index: {}]
  %s3 = inlined_call_operand.vmem [shape: f32[512,128], index: 3, kind: output, shape index: {}]
  %s4 = sld [smem:[#allocation0]]
  $region45: #{attention_augmented_conv2d.8} parent=0
    _
  %s6 = ssub.s32 1, %s4
  %s7 = scalar_select 0, %s6, %s4
  loop: start=0, step=1, limit=4
  $region2: #{attention_augmented_conv2d.8} parent=0 // loop_pre_header
    _
  $region3: #{attention_augmented_conv2d.8} parent=0 // loop_header
    %s9 = sphi 0, %s13
    %p10 = scmp.ge.s32.totalorder %s9, 4
    %s19 = sphi 0, %s21
    %s22 = sphi 0, %s19
    %s23 = sphi 0, %s22
    %s39 = sphi 0, %s23
    %s43 = sphi 0, %s43
    %s45 = sphi 0, %s43
    %s46 = sphi 0, %s45
    %s60 = sphi 0, %s46
    %s64 = sphi 0, %s64
    %s66 = sphi 0, %s64
    %s67 = sphi 0, %s66
    %s81 = sphi 0, %s67
    %s87 = sphi 0, %s89
    %s90 = sphi 0, %s87
    %s91 = sphi 0, %s90
    %s107 = sphi 0, %s91
  $region4: #{attention_augmented_conv2d.8} parent=0 // loop_header_branch
    %12 = sbr.rel (%p10) target = $region8
  $region5: #{attention_augmented_conv2d.8} parent=0 // loop_body
    %s14 = ssub.s32 %s9, 1
    %s15 = ssub.s32 %s9, 2
    %s16 = sadd.s32 %s9, 1
    %s17 = ssub.s32 %s9, %s16
    %p18 = scmp.eq.s32.totalorder %s17, 0
    %s20 = sadd.s32 %s19, 1
    %s21 = scalar_select %p18, %s19, %s20
    %p24 = pneg %p18
    %p25 = scmp.eq.s32.totalorder %s9, 1
    %p26 = por %p24, %p25
    %p27 = scmp.ne.s32.totalorder %s19, %s22
    %p28 = scmp.eq.s32.totalorder %s9, 0
    %p29 = por %p27, %p28
    %p30 = scmp.ne.s32.totalorder %s19, %s22
    %p31 = scmp.eq.s32.totalorder %s14, 1
    %p32 = por %p30, %p31
    %p33 = scmp.ne.s32.totalorder %s22, %s23
    %p34 = scmp.eq.s32.totalorder %s14, 0
    %p35 = por %p33, %p34
    %p36 = scmp.ne.s32.totalorder %s22, %s23
    %p37 = scmp.eq.s32.totalorder %s15, 1
    %p38 = por %p36, %p37
    %p40 = scmp.ne.s32.totalorder %s23, %s39
    %p41 = scmp.eq.s32.totalorder %s15, 0
    %p42 = por %p40, %p41
    %s44 = sadd.s32 %s43, 1
    %p47 = scmp.eq.s32.totalorder %s9, 1
    %p48 = scmp.ne.s32.totalorder %s43, %s45
    %p49 = scmp.eq.s32.totalorder %s9, 0
    %p50 = por %p48, %p49
    %p51 = scmp.ne.s32.totalorder %s43, %s45
    %p52 = scmp.eq.s32.totalorder %s14, 1
    %p53 = por %p51, %p52
    %p54 = scmp.ne.s32.totalorder %s45, %s46
    %p55 = scmp.eq.s32.totalorder %s14, 0
    %p56 = por %p54, %p55
    %p57 = scmp.ne.s32.totalorder %s45, %s46
    %p58 = scmp.eq.s32.totalorder %s15, 1
    %p59 = por %p57, %p58
    %p61 = scmp.ne.s32.totalorder %s46, %s60
    %p62 = scmp.eq.s32.totalorder %s15, 0
    %p63 = por %p61, %p62
    %s65 = sadd.s32 %s64, 1
    %p68 = scmp.eq.s32.totalorder %s9, 1
    %p69 = scmp.ne.s32.totalorder %s64, %s66
    %p70 = scmp.eq.s32.totalorder %s9, 0
    %p71 = por %p69, %p70
    %p72 = scmp.ne.s32.totalorder %s64, %s66
    %p73 = scmp.eq.s32.totalorder %s14, 1
    %p74 = por %p72, %p73
    %p75 = scmp.ne.s32.totalorder %s66, %s67
    %p76 = scmp.eq.s32.totalorder %s14, 0
    %p77 = por %p75, %p76
    %p78 = scmp.ne.s32.totalorder %s66, %s67
    %p79 = scmp.eq.s32.totalorder %s15, 1
    %p80 = por %p78, %p79
    %p82 = scmp.ne.s32.totalorder %s67, %s81
    %p83 = scmp.eq.s32.totalorder %s15, 0
    %p84 = por %p82, %p83
    %s85 = ssub.s32 %s9, %s16
    %p86 = scmp.eq.s32.totalorder %s85, 0
    %s88 = sadd.s32 %s87, 1
    %s89 = scalar_select %p86, %s87, %s88
    %p92 = pneg %p86
    %p93 = scmp.eq.s32.totalorder %s9, 1
    %p94 = por %p92, %p93
    %p95 = scmp.ne.s32.totalorder %s87, %s90
    %p96 = scmp.eq.s32.totalorder %s9, 0
    %p97 = por %p95, %p96
    %p98 = scmp.ne.s32.totalorder %s87, %s90
    %p99 = scmp.eq.s32.totalorder %s14, 1
    %p100 = por %p98, %p99
    %p101 = scmp.ne.s32.totalorder %s90, %s91
    %p102 = scmp.eq.s32.totalorder %s14, 0
    %p103 = por %p101, %p102
    %p104 = scmp.ne.s32.totalorder %s90, %s91
    %p105 = scmp.eq.s32.totalorder %s15, 1
    %p106 = por %p104, %p105
    %p108 = scmp.ne.s32.totalorder %s91, %s107
    %p109 = scmp.eq.s32.totalorder %s15, 0
    %p110 = por %p108, %p109
    %p111 = scmp.le.s32.totalorder 1, %s9
    %p112 = scmp.lt.s32.totalorder %s9, 3
    %p113 = pnand %p111, %p112
    %p114 = pneg %p113
    // Predicated region
    $region9: #{attention_augmented_conv2d.8} parent=5 // pred_check
      _
    $region10: #{attention_augmented_conv2d.8} parent=5 // pred_check_branch
      %116 = sbr.rel (%p113) target = $region12
    $region11: #{attention_augmented_conv2d.8} parent=5 // pred_region
      %s117 = ssub.s32 %s9, 1
      // Predicated region
      $region13: #{attention_augmented_conv2d.8} parent=11 // pred_check
        %p118 = pneg %p56
      $region14: #{attention_augmented_conv2d.8} parent=11 // pred_check_branch
        %120 = sbr.rel (%p118) target = $region16
      $region15: #{attention_augmented_conv2d.8} parent=11 // pred_region
        _
      $region16: #{attention_augmented_conv2d.8} parent=11 // pred_fallthru
        _
      // Predicated region
      $region17: #{attention_augmented_conv2d.8} parent=11 // pred_check
        %p121 = pneg %p77
      $region18: #{attention_augmented_conv2d.8} parent=11 // pred_check_branch
        %123 = sbr.rel (%p121) target = $region20
      $region19: #{attention_augmented_conv2d.8} parent=11 // pred_region
        _
      $region20: #{attention_augmented_conv2d.8} parent=11 // pred_fallthru
        _
    $region12: #{attention_augmented_conv2d.8} parent=5 // pred_fallthru
      _
    %p124 = scmp.lt.s32.totalorder %s9, 2
    // Predicated region
    $region21: #{attention_augmented_conv2d.8} parent=5 // pred_check
      %p125 = pneg %p124
    $region22: #{attention_augmented_conv2d.8} parent=5 // pred_check_branch
      %127 = sbr.rel (%p125) target = $region24
    $region23: #{attention_augmented_conv2d.8} parent=5 // pred_region
      // Predicated region
      $region25: #{attention_augmented_conv2d.8} parent=23 // pred_check
        %p128 = pneg %p29
      $region26: #{attention_augmented_conv2d.8} parent=23 // pred_check_branch
        %130 = sbr.rel (%p128) target = $region28
      $region27: #{attention_augmented_conv2d.8} parent=23 // pred_region
        %s131 = smul.u32 32, %s9
        %p132 = scmp.lt.s32.totalorder %s131, 63
        %s133 = scalar_select %p132, %s131, 63
        %s134 = smul.addr %s133, 4
        %s135 = scalar_lea.vmem %s0, %s134
        %s136 = smul.u32 32, %s9
      $region28: #{attention_augmented_conv2d.8} parent=23 // pred_fallthru
        _
    $region24: #{attention_augmented_conv2d.8} parent=5 // pred_fallthru
      _
    %p137 = scmp.le.s32.totalorder 1, %s9
    %p138 = scmp.lt.s32.totalorder %s9, 3
    %p139 = pnand %p137, %p138
    %p140 = pneg %p139
    // Predicated region
    $region29: #{attention_augmented_conv2d.8} parent=5 // pred_check
      _
    $region30: #{attention_augmented_conv2d.8} parent=5 // pred_check_branch
      %142 = sbr.rel (%p139) target = $region32
    $region31: #{attention_augmented_conv2d.8} parent=5 // pred_region
      %s143 = ssub.s32 %s9, 1
      %s144 = smul.u32 32, %s14
      %p145 = scmp.lt.s32.totalorder %s144, 63
      %s146 = scalar_select %p145, %s144, 63
      %s147 = smul.addr %s146, 4
      %s148 = scalar_lea.vmem %s0, %s147
      %p149 = pneg %p35
      %p150 = pneg %p32
      %p151 = pneg %p56
      %p152 = pneg %p53
      %p153 = pneg %p77
      %p154 = pneg %p74
      %p155 = pneg %p103
      %p156 = pneg %p100
      %s157 = smul.u32 32, %s14
      %p158 = scmp.lt.s32.totalorder %s157, 63
      %s159 = scalar_select %p158, %s157, 63
      %s160 = smul.addr %s159, 8
      %s161 = scalar_lea.vmem %s3, %s160
      %s162 = smul.u32 32, %s14
      %p163 = scmp.lt.s32.totalorder %s162, 63
      %s164 = scalar_select %p163, %s162, 63
      %s165 = smul.addr %s164, 4
      %s166 = scalar_lea.vmem %s0, %s165
      %s167 = smul.u32 32, %s14
      %s168 = smul.u32 32, %s14
      %p169 = scmp.lt.s32.totalorder %s168, 63
      %s170 = scalar_select %p169, %s168, 63
      %s171 = smul.addr %s170, 8
      %s172 = scalar_lea.vmem %s3, %s171
      %s173 = smul.u32 32, %s14
      %v175 = vld [vmem:[%s166] sm:$0xf]
      %v176 = vld [vmem:[%s166 + $0x4] sm:$0xf]
      %v177 = vld [vmem:[%s166 + $0x8] sm:$0xf]
      %v178 = vld [vmem:[%s166 + $0xc] sm:$0xf]
      %v179 = vld [vmem:[%s166 + $0x10] sm:$0xf]
      %v180 = vld [vmem:[%s166 + $0x14] sm:$0xf]
      %v181 = vld [vmem:[%s166 + $0x18] sm:$0xf]
      %v182 = vld [vmem:[%s166 + $0x1c] sm:$0xf]
      %v183 = vld [vmem:[%s166 + $0x20] sm:$0xf]
      %v184 = vld [vmem:[%s166 + $0x24] sm:$0xf]
      %v185 = vld [vmem:[%s166 + $0x28] sm:$0xf]
      %v186 = vld [vmem:[%s166 + $0x2c] sm:$0xf]
      %v187 = vld [vmem:[%s166 + $0x30] sm:$0xf]
      %v188 = vld [vmem:[%s166 + $0x34] sm:$0xf]
      %v189 = vld [vmem:[%s166 + $0x38] sm:$0xf]
      %v190 = vld [vmem:[%s166 + $0x3c] sm:$0xf]
      %v191 = vld [vmem:[%s166 + $0x40] sm:$0xf]
      %v192 = vld [vmem:[%s166 + $0x44] sm:$0xf]
      %v193 = vld [vmem:[%s166 + $0x48] sm:$0xf]
      %v194 = vld [vmem:[%s166 + $0x4c] sm:$0xf]
      %v195 = vld [vmem:[%s166 + $0x50] sm:$0xf]
      %v196 = vld [vmem:[%s166 + $0x54] sm:$0xf]
      %v197 = vld [vmem:[%s166 + $0x58] sm:$0xf]
      %v198 = vld [vmem:[%s166 + $0x5c] sm:$0xf]
      %v199 = vld [vmem:[%s166 + $0x60] sm:$0xf]
      %v200 = vld [vmem:[%s166 + $0x64] sm:$0xf]
      %v201 = vld [vmem:[%s166 + $0x68] sm:$0xf]
      %v202 = vld [vmem:[%s166 + $0x6c] sm:$0xf]
      %v203 = vld [vmem:[%s166 + $0x70] sm:$0xf]
      %v204 = vld [vmem:[%s166 + $0x74] sm:$0xf]
      %v205 = vld [vmem:[%s166 + $0x78] sm:$0xf]
      %v206 = vld [vmem:[%s166 + $0x7c] sm:$0xf]
      %v207 = vld [vmem:[%s1] sm:$0x3]
      %v208 = vld [vmem:[%s2] sm:$0x1]
      %v210 = vlaneseq
      %v211 = vshrl.u32 %v210, 7
      %v212 = vsub.s32 0, %v211
      %v213 = vrot.slane %v208, %v212
      %v247 = vunpack.c.l.b16 %v175
      %v248 = vunpack.c.l.b16 %v176
      %v249 = vunpack.c.l.b16 %v177
      %v250 = vunpack.c.l.b16 %v178
      %v251 = vunpack.c.l.b16 %v179
      %v252 = vunpack.c.l.b16 %v180
      %v253 = vunpack.c.l.b16 %v181
      %v254 = vunpack.c.l.b16 %v182
      %v255 = vunpack.c.l.b16 %v183
      %v256 = vunpack.c.l.b16 %v184
      %v257 = vunpack.c.l.b16 %v185
      %v258 = vunpack.c.l.b16 %v186
      %v259 = vunpack.c.l.b16 %v187
      %v260 = vunpack.c.l.b16 %v188
      %v261 = vunpack.c.l.b16 %v189
      %v262 = vunpack.c.l.b16 %v190
      %v263 = vunpack.c.l.b16 %v191
      %v264 = vunpack.c.l.b16 %v192
      %v265 = vunpack.c.l.b16 %v193
      %v266 = vunpack.c.l.b16 %v194
      %v267 = vunpack.c.l.b16 %v195
      %v268 = vunpack.c.l.b16 %v196
      %v269 = vunpack.c.l.b16 %v197
      %v270 = vunpack.c.l.b16 %v198
      %v271 = vunpack.c.l.b16 %v199
      %v272 = vunpack.c.l.b16 %v200
      %v273 = vunpack.c.l.b16 %v201
      %v274 = vunpack.c.l.b16 %v202
      %v275 = vunpack.c.l.b16 %v203
      %v276 = vunpack.c.l.b16 %v204
      %v277 = vunpack.c.l.b16 %v205
      %v278 = vunpack.c.l.b16 %v206
      %v279 = vpack.c.b16 %v248, %v247
      %v280 = vpack.c.b16 %v250, %v249
      %v281 = vpack.c.b16 %v252, %v251
      %v282 = vpack.c.b16 %v254, %v253
      %v283 = vpack.c.b16 %v256, %v255
      %v284 = vpack.c.b16 %v258, %v257
      %v285 = vpack.c.b16 %v260, %v259
      %v286 = vpack.c.b16 %v262, %v261
      %v287 = vpack.c.b16 %v264, %v263
      %v288 = vpack.c.b16 %v266, %v265
      %v289 = vpack.c.b16 %v268, %v267
      %v290 = vpack.c.b16 %v270, %v269
      %v291 = vpack.c.b16 %v272, %v271
      %v292 = vpack.c.b16 %v274, %v273
      %v293 = vpack.c.b16 %v276, %v275
      %v294 = vpack.c.b16 %v278, %v277
      %vm295 = vcmask 31744
      %v297 = vsel %vm295, %v279, 0
      %v300 = vsel %vm295, %v280, 0
      %v303 = vsel %vm295, %v281, 0
      %v306 = vsel %vm295, %v282, 0
      %v309 = vsel %vm295, %v283, 0
      %v312 = vsel %vm295, %v284, 0
      %v315 = vsel %vm295, %v285, 0
      %v318 = vsel %vm295, %v286, 0
      %v321 = vsel %vm295, %v287, 0
      %v324 = vsel %vm295, %v288, 0
      %v327 = vsel %vm295, %v289, 0
      %v330 = vsel %vm295, %v290, 0
      %v333 = vsel %vm295, %v291, 0
      %v336 = vsel %vm295, %v292, 0
      %v339 = vsel %vm295, %v293, 0
      %v342 = vsel %vm295, %v294, 0
      %vm344 = vcmask 1041408
      %v346 = vsel %vm344, %v207, 0
      %348 = vmatprep.subr.bf16.mxu0 0
      %349 = vmatpush1.bf16.msra.mxu0 %v346
      %350 = vmatprep.subr.bf16.mxu0 0
      %351 = vmatpush1.bf16.msra.mxu0 0
      %352 = vmatprep.subr.bf16.mxu0 0
      %353 = vmatpush1.bf16.msra.mxu0 0
      %354 = vmatprep.subr.bf16.mxu0 0
      %355 = vmatpush1.bf16.msra.mxu0 0
      %356 = vmatprep.subr.bf16.mxu0 0
      %357 = vmatpush1.bf16.msra.mxu0 0
      %358 = vmatprep.subr.bf16.mxu0 0
      %359 = vmatpush1.bf16.msra.mxu0 0
      %360 = vmatprep.subr.bf16.mxu0 0
      %361 = vmatpush1.bf16.msra.mxu0 0
      %362 = vmatprep.subr.bf16.mxu0 0
      %363 = vmatpush1.bf16.msra.mxu0 0
      %364 = vmatprep.subr.bf16.mxu0 0
      %365 = vmatpush1.bf16.msra.mxu0 0
      %366 = vmatprep.subr.bf16.mxu0 0
      %367 = vmatpush1.bf16.msra.mxu0 0
      %368 = vmatprep.subr.bf16.mxu0 0
      %369 = vmatpush1.bf16.msra.mxu0 0
      %370 = vmatprep.subr.bf16.mxu0 0
      %371 = vmatpush1.bf16.msra.mxu0 0
      %372 = vmatprep.subr.bf16.mxu0 0
      %373 = vmatpush1.bf16.msra.mxu0 0
      %374 = vmatprep.subr.bf16.mxu0 0
      %375 = vmatpush1.bf16.msra.mxu0 0
      %376 = vmatprep.subr.bf16.mxu0 0
      %377 = vmatpush1.bf16.msra.mxu0 0
      %378 = vmatprep.subr.bf16.mxu0 0
      %379 = vmatpush1.bf16.msra.mxu0 0
      %380 = vmatprep.mubr.bf16.mxu0 0
      %381 = vmatmul.mubr.bf16.gmra.mrb[0].mxu0 %v297
      %v382 = vpop.f32.mrb[0].mxu0
      %v383 = vadd.f32 %v213, %v382
      %v384 = vpop.f32.mrb[0].mxu0
      %v385 = vpop.f32.mrb[0].mxu0
      %v386 = vadd.f32 %v213, %v385
      %v387 = vpop.f32.mrb[0].mxu0
      %388 = vmatprep.mubr.bf16.mxu0 0
      %389 = vmatmul.mubr.bf16.gmra.mrb[0].mxu0 %v300
      %v390 = vpop.f32.mrb[0].mxu0
      %v391 = vadd.f32 %v213, %v390
      %v392 = vpop.f32.mrb[0].mxu0
      %v393 = vpop.f32.mrb[0].mxu0
      %v394 = vadd.f32 %v213, %v393
      %v395 = vpop.f32.mrb[0].mxu0
      %396 = vmatprep.mubr.bf16.mxu0 0
      %397 = vmatmul.mubr.bf16.gmra.mrb[0].mxu0 %v303
      %v398 = vpop.f32.mrb[0].mxu0
      %v399 = vadd.f32 %v213, %v398
      %v400 = vpop.f32.mrb[0].mxu0
      %v401 = vpop.f32.mrb[0].mxu0
      %v402 = vadd.f32 %v213, %v401
      %v403 = vpop.f32.mrb[0].mxu0
      %404 = vmatprep.mubr.bf16.mxu0 0
      %405 = vmatmul.mubr.bf16.gmra.mrb[0].mxu0 %v306
      %v406 = vpop.f32.mrb[0].mxu0
      %v407 = vadd.f32 %v213, %v406
      %v408 = vpop.f32.mrb[0].mxu0
      %v409 = vpop.f32.mrb[0].mxu0
      %v410 = vadd.f32 %v213, %v409
      %v411 = vpop.f32.mrb[0].mxu0
      %412 = vmatprep.mubr.bf16.mxu0 0
      %413 = vmatmul.mubr.bf16.gmra.mrb[0].mxu0 %v309
      %v414 = vpop.f32.mrb[0].mxu0
      %v415 = vadd.f32 %v213, %v414
      %v416 = vpop.f32.mrb[0].mxu0
      %v417 = vpop.f32.mrb[0].mxu0
      %v418 = vadd.f32 %v213, %v417
      %v419 = vpop.f32.mrb[0].mxu0
      %420 = vmatprep.mubr.bf16.mxu0 0
      %421 = vmatmul.mubr.bf16.gmra.mrb[0].mxu0 %v312
      %v422 = vpop.f32.mrb[0].mxu0
      %v423 = vadd.f32 %v213, %v422
      %v424 = vpop.f32.mrb[0].mxu0
      %v425 = vpop.f32.mrb[0].mxu0
      %v426 = vadd.f32 %v213, %v425
      %v427 = vpop.f32.mrb[0].mxu0
      %428 = vmatprep.mubr.bf16.mxu0 0
      %429 = vmatmul.mubr.bf16.gmra.mrb[0].mxu0 %v315
      %v430 = vpop.f32.mrb[0].mxu0
      %v431 = vadd.f32 %v213, %v430
      %v432 = vpop.f32.mrb[0].mxu0
      %v433 = vpop.f32.mrb[0].mxu0
      %v434 = vadd.f32 %v213, %v433
      %v435 = vpop.f32.mrb[0].mxu0
      %436 = vmatprep.mubr.bf16.mxu0 0
      %437 = vmatmul.mubr.bf16.gmra.mrb[0].mxu0 %v318
      %v438 = vpop.f32.mrb[0].mxu0
      %v439 = vadd.f32 %v213, %v438
      %v440 = vpop.f32.mrb[0].mxu0
      %v441 = vpop.f32.mrb[0].mxu0
      %v442 = vadd.f32 %v213, %v441
      %v443 = vpop.f32.mrb[0].mxu0
      %444 = vmatprep.mubr.bf16.mxu0 0
      %445 = vmatmul.mubr.bf16.gmra.mrb[0].mxu0 %v321
      %v446 = vpop.f32.mrb[0].mxu0
      %v447 = vadd.f32 %v213, %v446
      %v448 = vpop.f32.mrb[0].mxu0
      %v449 = vpop.f32.mrb[0].mxu0
      %v450 = vadd.f32 %v213, %v449
      %v451 = vpop.f32.mrb[0].mxu0
      %452 = vmatprep.mubr.bf16.mxu0 0
      %453 = vmatmul.mubr.bf16.gmra.mrb[0].mxu0 %v324
      %v454 = vpop.f32.mrb[0].mxu0
      %v455 = vadd.f32 %v213, %v454
      %v456 = vpop.f32.mrb[0].mxu0
      %v457 = vpop.f32.mrb[0].mxu0
      %v458 = vadd.f32 %v213, %v457
      %v459 = vpop.f32.mrb[0].mxu0
      %460 = vmatprep.mubr.bf16.mxu0 0
      %461 = vmatmul.mubr.bf16.gmra.mrb[0].mxu0 %v327
      %v462 = vpop.f32.mrb[0].mxu0
      %v463 = vadd.f32 %v213, %v462
      %v464 = vpop.f32.mrb[0].mxu0
      %v465 = vpop.f32.mrb[0].mxu0
      %v466 = vadd.f32 %v213, %v465
      %v467 = vpop.f32.mrb[0].mxu0
      %468 = vmatprep.mubr.bf16.mxu0 0
      %469 = vmatmul.mubr.bf16.gmra.mrb[0].mxu0 %v330
      %v470 = vpop.f32.mrb[0].mxu0
      %v471 = vadd.f32 %v213, %v470
      %v472 = vpop.f32.mrb[0].mxu0
      %v473 = vpop.f32.mrb[0].mxu0
      %v474 = vadd.f32 %v213, %v473
      %v475 = vpop.f32.mrb[0].mxu0
      %476 = vmatprep.mubr.bf16.mxu0 0
      %477 = vmatmul.mubr.bf16.gmra.mrb[0].mxu0 %v333
      %v478 = vpop.f32.mrb[0].mxu0
      %v479 = vadd.f32 %v213, %v478
      %v480 = vpop.f32.mrb[0].mxu0
      %v481 = vpop.f32.mrb[0].mxu0
      %v482 = vadd.f32 %v213, %v481
      %v483 = vpop.f32.mrb[0].mxu0
      %484 = vmatprep.mubr.bf16.mxu0 0
      %485 = vmatmul.mubr.bf16.gmra.mrb[0].mxu0 %v336
      %v486 = vpop.f32.mrb[0].mxu0
      %v487 = vadd.f32 %v213, %v486
      %v488 = vpop.f32.mrb[0].mxu0
      %v489 = vpop.f32.mrb[0].mxu0
      %v490 = vadd.f32 %v213, %v489
      %v491 = vpop.f32.mrb[0].mxu0
      %492 = vmatprep.mubr.bf16.mxu0 0
      %493 = vmatmul.mubr.bf16.gmra.mrb[0].mxu0 %v339
      %v494 = vpop.f32.mrb[0].mxu0
      %v495 = vadd.f32 %v213, %v494
      %v496 = vpop.f32.mrb[0].mxu0
      %v497 = vpop.f32.mrb[0].mxu0
      %v498 = vadd.f32 %v213, %v497
      %v499 = vpop.f32.mrb[0].mxu0
      %500 = vmatprep.mubr.bf16.mxu0 0
      %501 = vmatmul.mubr.bf16.gmra.mrb[0].mxu0 %v342
      %v502 = vpop.f32.mrb[0].mxu0
      %v503 = vadd.f32 %v213, %v502
      %v504 = vpop.f32.mrb[0].mxu0
      %v505 = vpop.f32.mrb[0].mxu0
      %v506 = vadd.f32 %v213, %v505
      %v507 = vpop.f32.mrb[0].mxu0
      %508 = vdwg.mxu0
      %509 = vst [vmem:[%s172] sm:$0xff] %v383
      %510 = vst [vmem:[%s172 + $0x8] sm:$0xff] %v386
      %511 = vst [vmem:[%s172 + $0x10] sm:$0xff] %v391
      %512 = vst [vmem:[%s172 + $0x18] sm:$0xff] %v394
      %513 = vst [vmem:[%s172 + $0x20] sm:$0xff] %v399
      %514 = vst [vmem:[%s172 + $0x28] sm:$0xff] %v402
      %515 = vst [vmem:[%s172 + $0x30] sm:$0xff] %v407
      %516 = vst [vmem:[%s172 + $0x38] sm:$0xff] %v410
      %517 = vst [vmem:[%s172 + $0x40] sm:$0xff] %v415
      %518 = vst [vmem:[%s172 + $0x48] sm:$0xff] %v418
      %519 = vst [vmem:[%s172 + $0x50] sm:$0xff] %v423
      %520 = vst [vmem:[%s172 + $0x58] sm:$0xff] %v426
      %521 = vst [vmem:[%s172 + $0x60] sm:$0xff] %v431
      %522 = vst [vmem:[%s172 + $0x68] sm:$0xff] %v434
      %523 = vst [vmem:[%s172 + $0x70] sm:$0xff] %v439
      %524 = vst [vmem:[%s172 + $0x78] sm:$0xff] %v442
      %525 = vst [vmem:[%s172 + $0x80] sm:$0xff] %v447
      %526 = vst [vmem:[%s172 + $0x88] sm:$0xff] %v450
      %527 = vst [vmem:[%s172 + $0x90] sm:$0xff] %v455
      %528 = vst [vmem:[%s172 + $0x98] sm:$0xff] %v458
      %529 = vst [vmem:[%s172 + $0xa0] sm:$0xff] %v463
      %530 = vst [vmem:[%s172 + $0xa8] sm:$0xff] %v466
      %531 = vst [vmem:[%s172 + $0xb0] sm:$0xff] %v471
      %532 = vst [vmem:[%s172 + $0xb8] sm:$0xff] %v474
      %533 = vst [vmem:[%s172 + $0xc0] sm:$0xff] %v479
      %534 = vst [vmem:[%s172 + $0xc8] sm:$0xff] %v482
      %535 = vst [vmem:[%s172 + $0xd0] sm:$0xff] %v487
      %536 = vst [vmem:[%s172 + $0xd8] sm:$0xff] %v490
      %537 = vst [vmem:[%s172 + $0xe0] sm:$0xff] %v495
      %538 = vst [vmem:[%s172 + $0xe8] sm:$0xff] %v498
      %539 = vst [vmem:[%s172 + $0xf0] sm:$0xff] %v503
      %540 = vst [vmem:[%s172 + $0xf8] sm:$0xff] %v506
      %s541 = smul.u32 32, %s14
      %p542 = scmp.lt.s32.totalorder %s541, 63
      %s543 = scalar_select %p542, %s541, 63
      %s544 = smul.addr %s543, 8
      %s545 = scalar_lea.vmem %s3, %s544
      // Predicated region
      $region33: #{attention_augmented_conv2d.8} parent=31 // pred_check
        %p546 = pneg %p100
      $region34: #{attention_augmented_conv2d.8} parent=31 // pred_check_branch
        %548 = sbr.rel (%p546) target = $region36
      $region35: #{attention_augmented_conv2d.8} parent=31 // pred_region
        %s549 = smul.u32 32, %s14
      $region36: #{attention_augmented_conv2d.8} parent=31 // pred_fallthru
        _
    $region32: #{attention_augmented_conv2d.8} parent=5 // pred_fallthru
      _
    %p550 = scmp.le.s32.totalorder 2, %s9
    // Predicated region
    $region37: #{attention_augmented_conv2d.8} parent=5 // pred_check
      %p551 = pneg %p550
    $region38: #{attention_augmented_conv2d.8} parent=5 // pred_check_branch
      %553 = sbr.rel (%p551) target = $region40
    $region39: #{attention_augmented_conv2d.8} parent=5 // pred_region
      %s554 = ssub.s32 %s9, 2
      // Predicated region
      $region41: #{attention_augmented_conv2d.8} parent=39 // pred_check
        %p555 = pneg %p106
      $region42: #{attention_augmented_conv2d.8} parent=39 // pred_check_branch
        %557 = sbr.rel (%p555) target = $region44
      $region43: #{attention_augmented_conv2d.8} parent=39 // pred_region
        %s558 = smul.u32 32, %s15
        %p559 = scmp.lt.s32.totalorder %s558, 63
        %s560 = scalar_select %p559, %s558, 63
        %s561 = smul.addr %s560, 8
        %s562 = scalar_lea.vmem %s3, %s561
      $region44: #{attention_augmented_conv2d.8} parent=39 // pred_fallthru
        _
    $region40: #{attention_augmented_conv2d.8} parent=5 // pred_fallthru
      _
  $region6: #{attention_augmented_conv2d.8} parent=0 // loop_footer
    %s13 = sadd.s32 1, %s9
  $region7: #{attention_augmented_conv2d.8} parent=0 // loop_footer_branch
    %8 = sbr.rel target = $region3
  $region8: #{attention_augmented_conv2d.8} parent=0 // loop_exit
    _

// kernel: attention_augmented_conv2d.7
$region0: #{attention_augmented_conv2d.7}
  #allocation0 [shape = 'u32[]', space=smem, size = 0x4, offset = 0x4, fixed_abs, tag = 'smem constant byte address 0x4 - core index']
  #allocation1 [shape = 'u32[144,128]{1,0:T(1,128)}', space=vmem, size = 0x12000, scoped, tag = 'internal scratch']
  #allocation2 [shape = 'f32[2,1,256]{2,1,0:T(1,128)}', space=vmem, size = 0x800, scoped, tag = 'scratch operand']
  #allocation3 [shape = 'f32[2,3,256]{2,1,0:T(4,128)}', space=vmem, size = 0x2000, scoped, tag = 'scratch operand']
  %s0 = inlined_call_operand.vmem [shape: bf16[4,36,256], index: 0, kind: input, shape index: {}]
  %s1 = inlined_call_operand.vmem [shape: bf16[4,36,256], index: 1, kind: input, shape index: {}]
  %s2 = inlined_call_operand.vmem [shape: bf16[4,3,256], index: 2, kind: input, shape index: {}]
  %s3 = inlined_call_operand.vmem [shape: f32[4,2,256], index: 3, kind: output, shape index: {}]
  %s4 = sld [smem:[#allocation0]]
  $region53: #{attention_augmented_conv2d.7} parent=0
    _
  %s6 = ssub.s32 1, %s4
  %s7 = scalar_select 0, %s6, %s4
  loop: start=0, step=1, limit=4
  $region2: #{attention_augmented_conv2d.7} parent=0 // loop_pre_header
    _
  $region3: #{attention_augmented_conv2d.7} parent=0 // loop_header
    %s9 = sphi 0, %s13
    %p10 = scmp.ge.s32.totalorder %s9, 4
    %s16 = sphi 0, %s35
    %s17 = sphi 0, %s31
    %s18 = sphi 0, %s27
    %s19 = sphi 0, %s16
    %s20 = sphi 0, %s17
    %s21 = sphi 0, %s18
    %s22 = sphi 0, %s19
    %s23 = sphi 0, %s20
    %s24 = sphi 0, %s21
    %s40 = sphi 0, %s42
    %s43 = sphi 0, %s40
    %s44 = sphi 0, %s43
    %s60 = sphi 0, %s44
    %s68 = sphi 0, %s70
    %s71 = sphi 0, %s68
    %s72 = sphi 0, %s71
    %s88 = sphi 0, %s72
    %s96 = sphi 0, %s98
    %s99 = sphi 0, %s96
    %s100 = sphi 0, %s99
    %s116 = sphi 0, %s100
    %s124 = sphi 0, %s126
    %s127 = sphi 0, %s124
    %s128 = sphi 0, %s127
    %s144 = sphi 0, %s128
  $region4: #{attention_augmented_conv2d.7} parent=0 // loop_header_branch
    %12 = sbr.rel (%p10) target = $region8
  $region5: #{attention_augmented_conv2d.7} parent=0 // loop_body
    %s14 = ssub.s32 %s9, 1
    %s15 = ssub.s32 %s9, 2
    %s25 = sadd.s32 1, %s18
    %p26 = scmp.ge.s32.totalorder %s25, 1
    %s27 = scalar_select %p26, 0, %s25
    %s28 = sadd.s32 1, %s17
    %s29 = scalar_select %p26, %s28, %s17
    %p30 = scmp.ge.s32.totalorder %s29, 1
    %s31 = scalar_select %p30, 0, %s29
    %s32 = sadd.s32 1, %s16
    %s33 = scalar_select %p30, %s32, %s16
    %p34 = scmp.ge.s32.totalorder %s33, 2
    %s35 = scalar_select %p34, 0, %s33
    %s36 = ssub.s32 %s16, %s35
    %s37 = ssub.s32 %s17, %s31
    %s38 = sor.u32 %s36, %s37
    %p39 = scmp.eq.s32.totalorder %s38, 0
    %s41 = sadd.s32 %s40, 1
    %s42 = scalar_select %p39, %s40, %s41
    %p45 = pneg %p39
    %p46 = scmp.eq.s32.totalorder %s9, 1
    %p47 = por %p45, %p46
    %p48 = scmp.ne.s32.totalorder %s40, %s43
    %p49 = scmp.eq.s32.totalorder %s9, 0
    %p50 = por %p48, %p49
    %p51 = scmp.ne.s32.totalorder %s40, %s43
    %p52 = scmp.eq.s32.totalorder %s14, 1
    %p53 = por %p51, %p52
    %p54 = scmp.ne.s32.totalorder %s43, %s44
    %p55 = scmp.eq.s32.totalorder %s14, 0
    %p56 = por %p54, %p55
    %p57 = scmp.ne.s32.totalorder %s43, %s44
    %p58 = scmp.eq.s32.totalorder %s15, 1
    %p59 = por %p57, %p58
    %p61 = scmp.ne.s32.totalorder %s44, %s60
    %p62 = scmp.eq.s32.totalorder %s15, 0
    %p63 = por %p61, %p62
    %s64 = ssub.s32 %s16, %s35
    %s65 = ssub.s32 %s18, %s27
    %s66 = sor.u32 %s64, %s65
    %p67 = scmp.eq.s32.totalorder %s66, 0
    %s69 = sadd.s32 %s68, 1
    %s70 = scalar_select %p67, %s68, %s69
    %p73 = pneg %p67
    %p74 = scmp.eq.s32.totalorder %s9, 1
    %p75 = por %p73, %p74
    %p76 = scmp.ne.s32.totalorder %s68, %s71
    %p77 = scmp.eq.s32.totalorder %s9, 0
    %p78 = por %p76, %p77
    %p79 = scmp.ne.s32.totalorder %s68, %s71
    %p80 = scmp.eq.s32.totalorder %s14, 1
    %p81 = por %p79, %p80
    %p82 = scmp.ne.s32.totalorder %s71, %s72
    %p83 = scmp.eq.s32.totalorder %s14, 0
    %p84 = por %p82, %p83
    %p85 = scmp.ne.s32.totalorder %s71, %s72
    %p86 = scmp.eq.s32.totalorder %s15, 1
    %p87 = por %p85, %p86
    %p89 = scmp.ne.s32.totalorder %s72, %s88
    %p90 = scmp.eq.s32.totalorder %s15, 0
    %p91 = por %p89, %p90
    %s92 = ssub.s32 %s16, %s35
    %s93 = ssub.s32 %s18, %s27
    %s94 = sor.u32 %s92, %s93
    %p95 = scmp.eq.s32.totalorder %s94, 0
    %s97 = sadd.s32 %s96, 1
    %s98 = scalar_select %p95, %s96, %s97
    %p101 = pneg %p95
    %p102 = scmp.eq.s32.totalorder %s9, 1
    %p103 = por %p101, %p102
    %p104 = scmp.ne.s32.totalorder %s96, %s99
    %p105 = scmp.eq.s32.totalorder %s9, 0
    %p106 = por %p104, %p105
    %p107 = scmp.ne.s32.totalorder %s96, %s99
    %p108 = scmp.eq.s32.totalorder %s14, 1
    %p109 = por %p107, %p108
    %p110 = scmp.ne.s32.totalorder %s99, %s100
    %p111 = scmp.eq.s32.totalorder %s14, 0
    %p112 = por %p110, %p111
    %p113 = scmp.ne.s32.totalorder %s99, %s100
    %p114 = scmp.eq.s32.totalorder %s15, 1
    %p115 = por %p113, %p114
    %p117 = scmp.ne.s32.totalorder %s100, %s116
    %p118 = scmp.eq.s32.totalorder %s15, 0
    %p119 = por %p117, %p118
    %s120 = ssub.s32 %s16, %s35
    %s121 = ssub.s32 %s17, %s31
    %s122 = sor.u32 %s120, %s121
    %p123 = scmp.eq.s32.totalorder %s122, 0
    %s125 = sadd.s32 %s124, 1
    %s126 = scalar_select %p123, %s124, %s125
    %p129 = pneg %p123
    %p130 = scmp.eq.s32.totalorder %s9, 1
    %p131 = por %p129, %p130
    %p132 = scmp.ne.s32.totalorder %s124, %s127
    %p133 = scmp.eq.s32.totalorder %s9, 0
    %p134 = por %p132, %p133
    %p135 = scmp.ne.s32.totalorder %s124, %s127
    %p136 = scmp.eq.s32.totalorder %s14, 1
    %p137 = por %p135, %p136
    %p138 = scmp.ne.s32.totalorder %s127, %s128
    %p139 = scmp.eq.s32.totalorder %s14, 0
    %p140 = por %p138, %p139
    %p141 = scmp.ne.s32.totalorder %s127, %s128
    %p142 = scmp.eq.s32.totalorder %s15, 1
    %p143 = por %p141, %p142
    %p145 = scmp.ne.s32.totalorder %s128, %s144
    %p146 = scmp.eq.s32.totalorder %s15, 0
    %p147 = por %p145, %p146
    %p148 = scmp.le.s32.totalorder 1, %s9
    %p149 = scmp.lt.s32.totalorder %s9, 3
    %p150 = pnand %p148, %p149
    %p151 = pneg %p150
    // Predicated region
    $region9: #{attention_augmented_conv2d.7} parent=5 // pred_check
      _
    $region10: #{attention_augmented_conv2d.7} parent=5 // pred_check_branch
      %153 = sbr.rel (%p150) target = $region12
    $region11: #{attention_augmented_conv2d.7} parent=5 // pred_region
      %s154 = ssub.s32 %s9, 1
    $region12: #{attention_augmented_conv2d.7} parent=5 // pred_fallthru
      _
    %p155 = scmp.lt.s32.totalorder %s9, 2
    // Predicated region
    $region13: #{attention_augmented_conv2d.7} parent=5 // pred_check
      %p156 = pneg %p155
    $region14: #{attention_augmented_conv2d.7} parent=5 // pred_check_branch
      %158 = sbr.rel (%p156) target = $region16
    $region15: #{attention_augmented_conv2d.7} parent=5 // pred_region
      // Predicated region
      $region17: #{attention_augmented_conv2d.7} parent=15 // pred_check
        %p159 = pneg %p50
      $region18: #{attention_augmented_conv2d.7} parent=15 // pred_check_branch
        %161 = sbr.rel (%p159) target = $region20
      $region19: #{attention_augmented_conv2d.7} parent=15 // pred_region
        %s162 = smul.u32 2, %s16
        %s163 = smul.u32 2, %s17
        %p164 = scmp.lt.s32.totalorder %s162, 3
        %s165 = scalar_select %p164, %s162, 3
        %p166 = scmp.lt.s32.totalorder %s163, 1
        %s167 = scalar_select %p166, %s163, 1
        %s168 = smul.addr %s165, 10
        %s169 = sadd.s32 %s167, %s168
        %s170 = smul.addr %s169, 4
        %s171 = scalar_lea.vmem %s0, %s170
        %s172 = smul.u32 2, %s16
        %s173 = smul.u32 2, %s17
      $region20: #{attention_augmented_conv2d.7} parent=15 // pred_fallthru
        _
      // Predicated region
      $region21: #{attention_augmented_conv2d.7} parent=15 // pred_check
        %p174 = pneg %p78
      $region22: #{attention_augmented_conv2d.7} parent=15 // pred_check_branch
        %176 = sbr.rel (%p174) target = $region24
      $region23: #{attention_augmented_conv2d.7} parent=15 // pred_region
        %s177 = smul.u32 2, %s16
        %s178 = smul.u32 2, %s18
        %p179 = scmp.lt.s32.totalorder %s177, 3
        %s180 = scalar_select %p179, %s177, 3
        %p181 = scmp.lt.s32.totalorder %s178, 1
        %s182 = scalar_select %p181, %s178, 1
        %s183 = smul.addr %s180, 10
        %s184 = sadd.s32 %s182, %s183
        %s185 = smul.addr %s184, 4
        %s186 = scalar_lea.vmem %s1, %s185
        %s187 = smul.u32 2, %s16
        %s188 = smul.u32 2, %s18
      $region24: #{attention_augmented_conv2d.7} parent=15 // pred_fallthru
        _
      // Predicated region
      $region25: #{attention_augmented_conv2d.7} parent=15 // pred_check
        %p189 = pneg %p106
      $region26: #{attention_augmented_conv2d.7} parent=15 // pred_check_branch
        %191 = sbr.rel (%p189) target = $region28
      $region27: #{attention_augmented_conv2d.7} parent=15 // pred_region
        %s192 = smul.u32 2, %s16
        %s193 = smul.u32 2, %s18
        %p194 = scmp.lt.s32.totalorder %s192, 3
        %s195 = scalar_select %p194, %s192, 3
        %p196 = scmp.lt.s32.totalorder %s193, 1
        %s197 = scalar_select %p196, %s193, 1
        %s198 = smul.addr %s195, 2
        %s199 = sadd.s32 %s197, %s198
        %s200 = smul.addr %s199, 2
        %s201 = scalar_lea.vmem %s2, %s200
        %s202 = smul.u32 2, %s16
        %s203 = smul.u32 2, %s18
      $region28: #{attention_augmented_conv2d.7} parent=15 // pred_fallthru
        _
    $region16: #{attention_augmented_conv2d.7} parent=5 // pred_fallthru
      _
    %p204 = scmp.le.s32.totalorder 1, %s9
    %p205 = scmp.lt.s32.totalorder %s9, 3
    %p206 = pnand %p204, %p205
    %p207 = pneg %p206
    // Predicated region
    $region29: #{attention_augmented_conv2d.7} parent=5 // pred_check
      _
    $region30: #{attention_augmented_conv2d.7} parent=5 // pred_check_branch
      %209 = sbr.rel (%p206) target = $region32
    $region31: #{attention_augmented_conv2d.7} parent=5 // pred_region
      %s210 = ssub.s32 %s9, 1
      %s211 = smul.u32 2, %s19
      %s212 = smul.u32 2, %s20
      %p213 = scmp.lt.s32.totalorder %s211, 3
      %s214 = scalar_select %p213, %s211, 3
      %p215 = scmp.lt.s32.totalorder %s212, 1
      %s216 = scalar_select %p215, %s212, 1
      %s217 = smul.addr %s214, 10
      %s218 = sadd.s32 %s216, %s217
      %s219 = smul.addr %s218, 4
      %s220 = scalar_lea.vmem %s0, %s219
      %p221 = pneg %p56
      %p222 = pneg %p53
      %s223 = smul.u32 2, %s19
      %s224 = smul.u32 2, %s21
      %p225 = scmp.lt.s32.totalorder %s223, 3
      %s226 = scalar_select %p225, %s223, 3
      %p227 = scmp.lt.s32.totalorder %s224, 1
      %s228 = scalar_select %p227, %s224, 1
      %s229 = smul.addr %s226, 10
      %s230 = sadd.s32 %s228, %s229
      %s231 = smul.addr %s230, 4
      %s232 = scalar_lea.vmem %s1, %s231
      %p233 = pneg %p84
      %p234 = pneg %p81
      %s235 = smul.u32 2, %s19
      %s236 = smul.u32 2, %s21
      %p237 = scmp.lt.s32.totalorder %s235, 3
      %s238 = scalar_select %p237, %s235, 3
      %p239 = scmp.lt.s32.totalorder %s236, 1
      %s240 = scalar_select %p239, %s236, 1
      %s241 = smul.addr %s238, 2
      %s242 = sadd.s32 %s240, %s241
      %s243 = smul.addr %s242, 2
      %s244 = scalar_lea.vmem %s2, %s243
      %p245 = pneg %p112
      %p246 = pneg %p109
      %p247 = pneg %p140
      %p248 = pneg %p137
      %s249 = smul.u32 2, %s19
      %s250 = smul.u32 2, %s20
      %p251 = scmp.lt.s32.totalorder %s249, 3
      %s252 = scalar_select %p251, %s249, 3
      %p253 = scmp.lt.s32.totalorder %s250, 1
      %s254 = scalar_select %p253, %s250, 1
      %s255 = smul.addr %s252, 2
      %s256 = sadd.s32 %s254, %s255
      %s257 = smul.addr %s256, 2
      %s258 = scalar_lea.vmem %s3, %s257
      %s259 = smul.u32 2, %s19
      %s260 = smul.u32 2, %s20
      %p261 = scmp.lt.s32.totalorder %s259, 3
      %s262 = scalar_select %p261, %s259, 3
      %p263 = scmp.lt.s32.totalorder %s260, 1
      %s264 = scalar_select %p263, %s260, 1
      %s265 = smul.addr %s262, 10
      %s266 = sadd.s32 %s264, %s265
      %s267 = smul.addr %s266, 4
      %s268 = scalar_lea.vmem %s0, %s267
      %s269 = smul.u32 2, %s19
      %s270 = smul.u32 2, %s20
      %s271 = smul.u32 2, %s19
      %s272 = smul.u32 2, %s21
      %p273 = scmp.lt.s32.totalorder %s271, 3
      %s274 = scalar_select %p273, %s271, 3
      %p275 = scmp.lt.s32.totalorder %s272, 1
      %s276 = scalar_select %p275, %s272, 1
      %s277 = smul.addr %s274, 10
      %s278 = sadd.s32 %s276, %s277
      %s279 = smul.addr %s278, 4
      %s280 = scalar_lea.vmem %s1, %s279
      %s281 = smul.u32 2, %s19
      %s282 = smul.u32 2, %s21
      %s283 = smul.u32 2, %s19
      %s284 = smul.u32 2, %s21
      %p285 = scmp.lt.s32.totalorder %s283, 3
      %s286 = scalar_select %p285, %s283, 3
      %p287 = scmp.lt.s32.totalorder %s284, 1
      %s288 = scalar_select %p287, %s284, 1
      %s289 = smul.addr %s286, 2
      %s290 = sadd.s32 %s288, %s289
      %s291 = smul.addr %s290, 2
      %s292 = scalar_lea.vmem %s2, %s291
      %s293 = smul.u32 2, %s19
      %s294 = smul.u32 2, %s21
      %s295 = smul.u32 2, %s19
      %s296 = smul.u32 2, %s20
      %p297 = scmp.lt.s32.totalorder %s295, 3
      %s298 = scalar_select %p297, %s295, 3
      %p299 = scmp.lt.s32.totalorder %s296, 1
      %s300 = scalar_select %p299, %s296, 1
      %s301 = smul.addr %s298, 2
      %s302 = sadd.s32 %s300, %s301
      %s303 = smul.addr %s302, 2
      %s304 = scalar_lea.vmem %s3, %s303
      %s305 = smul.u32 2, %s19
      %s306 = smul.u32 2, %s20
      %p308 = scmp.eq.s32.totalorder %s21, 0
      // Predicated region
      $region33: #{attention_augmented_conv2d.7} parent=31 // pred_check
        %p309 = pneg %p308
      $region34: #{attention_augmented_conv2d.7} parent=31 // pred_check_branch
        %311 = sbr.rel (%p309) target = $region36
      $region35: #{attention_augmented_conv2d.7} parent=31 // pred_region
        %v312 = vlaneseq
        %vm313 = vcmp.ge.s32.totalorder %v312, 0
        %vm314 = vcmp.lt.s32.totalorder %v312, 256
        %vm315 = vmand %vm313, %vm314
        %316 = vst.msk [vmem:[#allocation2] sm:$0x3] %vm315, -inf
        %317 = vst.msk [vmem:[#allocation2 + $0x2] sm:$0x3] %vm315, -inf
        %318 = vst [vmem:[#allocation3] sm:$0x77] 0.0
        %319 = vst [vmem:[#allocation3 + $0x8] sm:$0x77] 0.0
      $region36: #{attention_augmented_conv2d.7} parent=31 // pred_fallthru
        _
      %v320 = vld [vmem:[%s280] sm:$0xff]
      %v321 = vld [vmem:[%s280 + $0x8] sm:$0xff]
      %v322 = vld [vmem:[%s280 + $0x10] sm:$0xff]
      %v323 = vld [vmem:[%s280 + $0x18] sm:$0xff]
      %v324 = vld [vmem:[%s280 + $0x20] sm:$0x33]
      %v325 = vld [vmem:[%s268] sm:$0xff]
      %v326 = vld [vmem:[%s268 + $0x8] sm:$0xff]
      %v327 = vld [vmem:[%s268 + $0x10] sm:$0xff]
      %v328 = vld [vmem:[%s268 + $0x18] sm:$0xff]
      %v329 = vld [vmem:[%s268 + $0x20] sm:$0x33]
      %v335 = vunpack.c.l.b16 %v320
      %v336 = vunpack.c.h.b16 %v320
      %v337 = vunpack.c.l.b16 %v321
      %v338 = vunpack.c.h.b16 %v321
      %v339 = vunpack.c.l.b16 %v322
      %v340 = vunpack.c.h.b16 %v322
      %v341 = vunpack.c.l.b16 %v323
      %v342 = vunpack.c.h.b16 %v323
      %v343 = vunpack.c.l.b16 %v324
      %v344 = vunpack.c.h.b16 %v324
      %v345 = vpack.c.b16 %v337, %v335
      %v346 = vpack.c.b16 %v338, %v336
      %v347 = vpack.c.b16 %v341, %v339
      %v348 = vpack.c.b16 %v342, %v340
      %v349 = vpack.c.b16 %v343, %v343
      %v350 = vpack.c.b16 %v344, %v344
      %357 = vxpose.xlu0.c.b16.start [1/8] %v345, 128
      %358 = vxpose.xlu0.c.b16.cont [2/8] %v347, 128
      %359 = vxpose.xlu0.c.b16.cont [3/8] %v349, 128
      %360 = vxpose.xlu0.c.b16.cont [4/8] 0, 128
      %361 = vxpose.xlu0.c.b16.cont [5/8] 0, 128
      %362 = vxpose.xlu0.c.b16.cont [6/8] 0, 128
      %363 = vxpose.xlu0.c.b16.cont [7/8] 0, 128
      %364 = vxpose.xlu0.c.b16.end [8/8] 0, 128
      %v365 = vpop.trf.xlu0
      %v366 = vpop.trf.xlu0
      %v367 = vpop.trf.xlu0
      %v368 = vpop.trf.xlu0
      %v369 = vpop.trf.xlu0
      %v370 = vpop.trf.xlu0
      %v371 = vpop.trf.xlu0
      %v372 = vpop.trf.xlu0
      %373 = vxpose.xlu0.c.b16.start [1/8] %v346, 128
      %374 = vxpose.xlu0.c.b16.cont [2/8] %v348, 128
      %375 = vxpose.xlu0.c.b16.cont [3/8] %v350, 128
      %376 = vxpose.xlu0.c.b16.cont [4/8] 0, 128
      %377 = vxpose.xlu0.c.b16.cont [5/8] 0, 128
      %378 = vxpose.xlu0.c.b16.cont [6/8] 0, 128
      %379 = vxpose.xlu0.c.b16.cont [7/8] 0, 128
      %380 = vxpose.xlu0.c.b16.end [8/8] 0, 128
      %v381 = vpop.trf.xlu0
      %v382 = vpop.trf.xlu0
      %v383 = vpop.trf.xlu0
      %v384 = vpop.trf.xlu0
      %v385 = vpop.trf.xlu0
      %v386 = vpop.trf.xlu0
      %v387 = vpop.trf.xlu0
      %v388 = vpop.trf.xlu0
      %v394 = vunpack.c.l.b16 %v325
      %v395 = vunpack.c.h.b16 %v325
      %v396 = vunpack.c.l.b16 %v326
      %v397 = vunpack.c.h.b16 %v326
      %v398 = vunpack.c.l.b16 %v327
      %v399 = vunpack.c.h.b16 %v327
      %v400 = vunpack.c.l.b16 %v328
      %v401 = vunpack.c.h.b16 %v328
      %v402 = vunpack.c.l.b16 %v329
      %v403 = vunpack.c.h.b16 %v329
      %v404 = vpack.c.b16 %v396, %v394
      %v405 = vpack.c.b16 %v397, %v395
      %v406 = vpack.c.b16 %v400, %v398
      %v407 = vpack.c.b16 %v401, %v399
      %v408 = vpack.c.b16 %v402, %v402
      %v409 = vpack.c.b16 %v403, %v403
      %vm414 = vcmask 293888
      %v416 = vsel %vm414, %v365, 0
      %v419 = vsel %vm414, %v366, 0
      %v422 = vsel %vm414, %v367, 0
      %v425 = vsel %vm414, %v368, 0
      %v428 = vsel %vm414, %v369, 0
      %v431 = vsel %vm414, %v370, 0
      %v434 = vsel %vm414, %v371, 0
      %v437 = vsel %vm414, %v372, 0
      %v440 = vsel %vm414, %v381, 0
      %v443 = vsel %vm414, %v382, 0
      %v446 = vsel %vm414, %v383, 0
      %v449 = vsel %vm414, %v384, 0
      %v452 = vsel %vm414, %v385, 0
      %v455 = vsel %vm414, %v386, 0
      %v458 = vsel %vm414, %v387, 0
      %v461 = vsel %vm414, %v388, 0
      %vm463 = vcmask 1041408
      %v465 = vsel %vm463, %v408, 0
      %v468 = vsel %vm463, %v409, 0
      %470 = vmatprep.subr.bf16.mxu0 %v405
      %471 = vmatpush1.bf16.msra.mxu0 %v404
      %472 = vmatprep.subr.bf16.mxu0 %v407
      %473 = vmatpush1.bf16.msra.mxu0 %v406
      %474 = vmatprep.subr.bf16.mxu0 %v468
      %475 = vmatpush1.bf16.msra.mxu0 %v465
      %476 = vmatprep.subr.bf16.mxu0 0
      %477 = vmatpush1.bf16.msra.mxu0 0
      %478 = vmatprep.subr.bf16.mxu0 0
      %479 = vmatpush1.bf16.msra.mxu0 0
      %480 = vmatprep.subr.bf16.mxu0 0
      %481 = vmatpush1.bf16.msra.mxu0 0
      %482 = vmatprep.subr.bf16.mxu0 0
      %483 = vmatpush1.bf16.msra.mxu0 0
      %484 = vmatprep.subr.bf16.mxu0 0
      %485 = vmatpush1.bf16.msra.mxu0 0
      %486 = vmatprep.subr.bf16.mxu0 0
      %487 = vmatpush1.bf16.msra.mxu0 0
      %488 = vmatprep.subr.bf16.mxu0 0
      %489 = vmatpush1.bf16.msra.mxu0 0
      %490 = vmatprep.subr.bf16.mxu0 0
      %491 = vmatpush1.bf16.msra.mxu0 0
      %492 = vmatprep.subr.bf16.mxu0 0
      %493 = vmatpush1.bf16.msra.mxu0 0
      %494 = vmatprep.subr.bf16.mxu0 0
      %495 = vmatpush1.bf16.msra.mxu0 0
      %496 = vmatprep.subr.bf16.mxu0 0
      %497 = vmatpush1.bf16.msra.mxu0 0
      %498 = vmatprep.subr.bf16.mxu0 0
      %499 = vmatpush1.bf16.msra.mxu0 0
      %500 = vmatprep.subr.bf16.mxu0 0
      %501 = vmatpush1.bf16.msra.mxu0 0
      %502 = vmatprep.mubr.bf16.mxu0 0
      %503 = vmatmul.mubr.bf16.gmra.mrb[0].mxu0 %v416
      %v504 = vpop.f32.mrb[0].mxu0
      %v505 = vadd.f32 0.0, %v504
      %v506 = vpop.f32.mrb[0].mxu0
      %v507 = vadd.f32 0.0, %v506
      %v508 = vpop.f32.mrb[0].mxu0
      %v509 = vadd.f32 0.0, %v508
      %v510 = vpop.f32.mrb[0].mxu0
      %v511 = vadd.f32 0.0, %v510
      %512 = vmatprep.mubr.bf16.mxu0 0
      %513 = vmatmul.mubr.bf16.gmra.mrb[0].mxu0 %v419
      %v514 = vpop.f32.mrb[0].mxu0
      %v515 = vadd.f32 0.0, %v514
      %v516 = vpop.f32.mrb[0].mxu0
      %v517 = vadd.f32 0.0, %v516
      %v518 = vpop.f32.mrb[0].mxu0
      %v519 = vadd.f32 0.0, %v518
      %v520 = vpop.f32.mrb[0].mxu0
      %v521 = vadd.f32 0.0, %v520
      %522 = vmatprep.mubr.bf16.mxu0 0
      %523 = vmatmul.mubr.bf16.gmra.mrb[0].mxu0 %v422
      %v524 = vpop.f32.mrb[0].mxu0
      %v525 = vadd.f32 0.0, %v524
      %v526 = vpop.f32.mrb[0].mxu0
      %v527 = vadd.f32 0.0, %v526
      %v528 = vpop.f32.mrb[0].mxu0
      %v529 = vadd.f32 0.0, %v528
      %v530 = vpop.f32.mrb[0].mxu0
      %v531 = vadd.f32 0.0, %v530
      %532 = vmatprep.mubr.bf16.mxu0 0
      %533 = vmatmul.mubr.bf16.gmra.mrb[0].mxu0 %v425
      %v534 = vpop.f32.mrb[0].mxu0
      %v535 = vadd.f32 0.0, %v534
      %v536 = vpop.f32.mrb[0].mxu0
      %v537 = vadd.f32 0.0, %v536
      %v538 = vpop.f32.mrb[0].mxu0
      %v539 = vadd.f32 0.0, %v538
      %v540 = vpop.f32.mrb[0].mxu0
      %v541 = vadd.f32 0.0, %v540
      %542 = vmatprep.mubr.bf16.mxu0 0
      %543 = vmatmul.mubr.bf16.gmra.mrb[0].mxu0 %v428
      %v544 = vpop.f32.mrb[0].mxu0
      %v545 = vadd.f32 0.0, %v544
      %v546 = vpop.f32.mrb[0].mxu0
      %v547 = vadd.f32 0.0, %v546
      %v548 = vpop.f32.mrb[0].mxu0
      %v549 = vadd.f32 0.0, %v548
      %v550 = vpop.f32.mrb[0].mxu0
      %v551 = vadd.f32 0.0, %v550
      %552 = vmatprep.mubr.bf16.mxu0 0
      %553 = vmatmul.mubr.bf16.gmra.mrb[0].mxu0 %v431
      %v554 = vpop.f32.mrb[0].mxu0
      %v555 = vadd.f32 0.0, %v554
      %v556 = vpop.f32.mrb[0].mxu0
      %v557 = vadd.f32 0.0, %v556
      %v558 = vpop.f32.mrb[0].mxu0
      %v559 = vadd.f32 0.0, %v558
      %v560 = vpop.f32.mrb[0].mxu0
      %v561 = vadd.f32 0.0, %v560
      %562 = vmatprep.mubr.bf16.mxu0 0
      %563 = vmatmul.mubr.bf16.gmra.mrb[0].mxu0 %v434
      %v564 = vpop.f32.mrb[0].mxu0
      %v565 = vadd.f32 0.0, %v564
      %v566 = vpop.f32.mrb[0].mxu0
      %v567 = vadd.f32 0.0, %v566
      %v568 = vpop.f32.mrb[0].mxu0
      %v569 = vadd.f32 0.0, %v568
      %v570 = vpop.f32.mrb[0].mxu0
      %v571 = vadd.f32 0.0, %v570
      %572 = vmatprep.mubr.bf16.mxu0 0
      %573 = vmatmul.mubr.bf16.gmra.mrb[0].mxu0 %v437
      %v574 = vpop.f32.mrb[0].mxu0
      %v575 = vadd.f32 0.0, %v574
      %v576 = vpop.f32.mrb[0].mxu0
      %v577 = vadd.f32 0.0, %v576
      %v578 = vpop.f32.mrb[0].mxu0
      %v579 = vadd.f32 0.0, %v578
      %v580 = vpop.f32.mrb[0].mxu0
      %v581 = vadd.f32 0.0, %v580
      %582 = vmatprep.mubr.bf16.mxu0 0
      %583 = vmatmul.mubr.bf16.gmra.mrb[0].mxu0 %v440
      %v584 = vpop.f32.mrb[0].mxu0
      %v585 = vadd.f32 0.0, %v584
      %v586 = vpop.f32.mrb[0].mxu0
      %v587 = vadd.f32 0.0, %v586
      %v588 = vpop.f32.mrb[0].mxu0
      %v589 = vadd.f32 0.0, %v588
      %v590 = vpop.f32.mrb[0].mxu0
      %v591 = vadd.f32 0.0, %v590
      %592 = vmatprep.mubr.bf16.mxu0 0
      %593 = vmatmul.mubr.bf16.gmra.mrb[0].mxu0 %v443
      %v594 = vpop.f32.mrb[0].mxu0
      %v595 = vadd.f32 0.0, %v594
      %v596 = vpop.f32.mrb[0].mxu0
      %v597 = vadd.f32 0.0, %v596
      %v598 = vpop.f32.mrb[0].mxu0
      %v599 = vadd.f32 0.0, %v598
      %v600 = vpop.f32.mrb[0].mxu0
      %v601 = vadd.f32 0.0, %v600
      %602 = vmatprep.mubr.bf16.mxu0 0
      %603 = vmatmul.mubr.bf16.gmra.mrb[0].mxu0 %v446
      %v604 = vpop.f32.mrb[0].mxu0
      %v605 = vadd.f32 0.0, %v604
      %v606 = vpop.f32.mrb[0].mxu0
      %v607 = vadd.f32 0.0, %v606
      %v608 = vpop.f32.mrb[0].mxu0
      %v609 = vadd.f32 0.0, %v608
      %v610 = vpop.f32.mrb[0].mxu0
      %v611 = vadd.f32 0.0, %v610
      %612 = vmatprep.mubr.bf16.mxu0 0
      %613 = vmatmul.mubr.bf16.gmra.mrb[0].mxu0 %v449
      %v614 = vpop.f32.mrb[0].mxu0
      %v615 = vadd.f32 0.0, %v614
      %v616 = vpop.f32.mrb[0].mxu0
      %v617 = vadd.f32 0.0, %v616
      %v618 = vpop.f32.mrb[0].mxu0
      %v619 = vadd.f32 0.0, %v618
      %v620 = vpop.f32.mrb[0].mxu0
      %v621 = vadd.f32 0.0, %v620
      %622 = vmatprep.mubr.bf16.mxu0 0
      %623 = vmatmul.mubr.bf16.gmra.mrb[0].mxu0 %v452
      %v624 = vpop.f32.mrb[0].mxu0
      %v625 = vadd.f32 0.0, %v624
      %v626 = vpop.f32.mrb[0].mxu0
      %v627 = vadd.f32 0.0, %v626
      %v628 = vpop.f32.mrb[0].mxu0
      %v629 = vadd.f32 0.0, %v628
      %v630 = vpop.f32.mrb[0].mxu0
      %v631 = vadd.f32 0.0, %v630
      %632 = vmatprep.mubr.bf16.mxu0 0
      %633 = vmatmul.mubr.bf16.gmra.mrb[0].mxu0 %v455
      %v634 = vpop.f32.mrb[0].mxu0
      %v635 = vadd.f32 0.0, %v634
      %v636 = vpop.f32.mrb[0].mxu0
      %v637 = vadd.f32 0.0, %v636
      %v638 = vpop.f32.mrb[0].mxu0
      %v639 = vadd.f32 0.0, %v638
      %v640 = vpop.f32.mrb[0].mxu0
      %v641 = vadd.f32 0.0, %v640
      %642 = vmatprep.mubr.bf16.mxu0 0
      %643 = vmatmul.mubr.bf16.gmra.mrb[0].mxu0 %v458
      %v644 = vpop.f32.mrb[0].mxu0
      %v645 = vadd.f32 0.0, %v644
      %v646 = vpop.f32.mrb[0].mxu0
      %v647 = vadd.f32 0.0, %v646
      %v648 = vpop.f32.mrb[0].mxu0
      %v649 = vadd.f32 0.0, %v648
      %v650 = vpop.f32.mrb[0].mxu0
      %v651 = vadd.f32 0.0, %v650
      %652 = vmatprep.mubr.bf16.mxu0 0
      %653 = vmatmul.mubr.bf16.gmra.mrb[0].mxu0 %v461
      %v654 = vpop.f32.mrb[0].mxu0
      %v655 = vadd.f32 0.0, %v654
      %v656 = vpop.f32.mrb[0].mxu0
      %v657 = vadd.f32 0.0, %v656
      %v658 = vpop.f32.mrb[0].mxu0
      %v659 = vadd.f32 0.0, %v658
      %v660 = vpop.f32.mrb[0].mxu0
      %v661 = vadd.f32 0.0, %v660
      %662 = vdwg.mxu0
      %v663 = vld [vmem:[#allocation2] sm:$0x3]
      %v664 = vmax.f32 %v505, %v515
      %v665 = vmax.f32 %v509, %v519
      %v666 = vmax.f32 %v664, %v525
      %v667 = vmax.f32 %v665, %v529
      %v668 = vmax.f32 %v666, %v535
      %v669 = vmax.f32 %v667, %v539
      %v670 = vmax.f32 %v668, %v545
      %v671 = vmax.f32 %v669, %v549
      %v672 = vmax.f32 %v670, %v555
      %v673 = vmax.f32 %v671, %v559
      %v674 = vmax.f32 %v672, %v565
      %v675 = vmax.f32 %v673, %v569
      %v676 = vmax.f32 %v674, %v575
      %v677 = vmax.f32 %v675, %v579
      %v678 = vmax.f32 %v676, %v585
      %v679 = vmax.f32 %v677, %v589
      %v680 = vmax.f32 %v678, %v595
      %v681 = vmax.f32 %v679, %v599
      %v682 = vmax.f32 %v680, %v605
      %v683 = vmax.f32 %v681, %v609
      %v684 = vmax.f32 %v682, %v615
      %v685 = vmax.f32 %v683, %v619
      %v686 = vmax.f32 %v684, %v625
      %v687 = vmax.f32 %v685, %v629
      %v688 = vmax.f32 %v686, %v635
      %v689 = vmax.f32 %v687, %v639
      %v690 = vmax.f32 %v688, %v645
      %v691 = vmax.f32 %v689, %v649
      %v692 = vmax.f32 %v690, %v655
      %v693 = vmax.f32 %v691, %v659
      %v694 = vmax.f32 %v692, %v693
      %v695 = vrot.slane %v694, 4
      %v696 = vmax.f32 %v694, %v695
      %v697 = vrot.slane %v696, 2
      %v698 = vmax.f32 %v696, %v697
      %v699 = vrot.slane %v698, 1
      %v700 = vmax.f32 %v698, %v699
      %v701 = vmax.f32 %v507, %v517
      %v702 = vmax.f32 %v511, %v521
      %v703 = vmax.f32 %v701, %v527
      %v704 = vmax.f32 %v702, %v531
      %v705 = vmax.f32 %v703, %v537
      %v706 = vmax.f32 %v704, %v541
      %v707 = vmax.f32 %v705, %v547
      %v708 = vmax.f32 %v706, %v551
      %v709 = vmax.f32 %v707, %v557
      %v710 = vmax.f32 %v708, %v561
      %v711 = vmax.f32 %v709, %v567
      %v712 = vmax.f32 %v710, %v571
      %v713 = vmax.f32 %v711, %v577
      %v714 = vmax.f32 %v712, %v581
      %v715 = vmax.f32 %v713, %v587
      %v716 = vmax.f32 %v714, %v591
      %v717 = vmax.f32 %v715, %v597
      %v718 = vmax.f32 %v716, %v601
      %v719 = vmax.f32 %v717, %v607
      %v720 = vmax.f32 %v718, %v611
      %v721 = vmax.f32 %v719, %v617
      %v722 = vmax.f32 %v720, %v621
      %v723 = vmax.f32 %v721, %v627
      %v724 = vmax.f32 %v722, %v631
      %v725 = vmax.f32 %v723, %v637
      %v726 = vmax.f32 %v724, %v641
      %v727 = vmax.f32 %v725, %v647
      %v728 = vmax.f32 %v726, %v651
      %v729 = vmax.f32 %v727, %v657
      %v730 = vmax.f32 %v728, %v661
      %v731 = vmax.f32 %v729, %v730
      %v732 = vrot.slane %v731, 4
      %v733 = vmax.f32 %v731, %v732
      %v734 = vrot.slane %v733, 2
      %v735 = vmax.f32 %v733, %v734
      %v736 = vrot.slane %v735, 1
      %v737 = vmax.f32 %v735, %v736
      %v740 = vcombine.low %v700, %v737
      %v742 = vunpack.c.l.s4 1966171168
      %v743 = vunpack.c.0.s8 %v742
      %v744 = vlaneseq
      %v745 = vshrl.u32 %v744, 7
      %v746 = vsub.s32 %v743, %v745
      %v747 = vrot.slane %v740, %v746
      %v749 = vunpack.c.l.s4 1966171168
      %v750 = vunpack.c.0.s8 %v749
      %v751 = vlaneseq
      %v752 = vshrl.u32 %v751, 7
      %v753 = vsub.s32 %v750, %v752
      %v754 = vrot.slane %v747, %v753
      %v756 = vmax.f32 %v663, %v754
      %v757 = vsub.f32 %v663, %v756
      %v758 = vmul.f32 %v757, 1.442695
      %v759 = vpow.pop %v758
      %v761 = vlaneseq
      %v762 = vshrl.u32 %v761, 7
      %v763 = vsub.s32 0, %v762
      %v764 = vrot.slane %v756, %v763
      %v765 = vlaneseq
      %v766 = vshrl.u32 %v765, 7
      %v767 = vsub.s32 1, %v766
      %v768 = vrot.slane %v756, %v767
      %v771 = vsub.f32 %v505, %v764
      %v772 = vsub.f32 %v507, %v768
      %v773 = vsub.f32 %v509, %v764
      %v774 = vsub.f32 %v511, %v768
      %v775 = vsub.f32 %v515, %v764
      %v776 = vsub.f32 %v517, %v768
      %v777 = vsub.f32 %v519, %v764
      %v778 = vsub.f32 %v521, %v768
      %v779 = vsub.f32 %v525, %v764
      %v780 = vsub.f32 %v527, %v768
      %v781 = vsub.f32 %v529, %v764
      %v782 = vsub.f32 %v531, %v768
      %v783 = vsub.f32 %v535, %v764
      %v784 = vsub.f32 %v537, %v768
      %v785 = vsub.f32 %v539, %v764
      %v786 = vsub.f32 %v541, %v768
      %v787 = vsub.f32 %v545, %v764
      %v788 = vsub.f32 %v547, %v768
      %v789 = vsub.f32 %v549, %v764
      %v790 = vsub.f32 %v551, %v768
      %v791 = vsub.f32 %v555, %v764
      %v792 = vsub.f32 %v557, %v768
      %v793 = vsub.f32 %v559, %v764
      %v794 = vsub.f32 %v561, %v768
      %v795 = vsub.f32 %v565, %v764
      %v796 = vsub.f32 %v567, %v768
      %v797 = vsub.f32 %v569, %v764
      %v798 = vsub.f32 %v571, %v768
      %v799 = vsub.f32 %v575, %v764
      %v800 = vsub.f32 %v577, %v768
      %v801 = vsub.f32 %v579, %v764
      %v802 = vsub.f32 %v581, %v768
      %v803 = vsub.f32 %v585, %v764
      %v804 = vsub.f32 %v587, %v768
      %v805 = vsub.f32 %v589, %v764
      %v806 = vsub.f32 %v591, %v768
      %v807 = vsub.f32 %v595, %v764
      %v808 = vsub.f32 %v597, %v768
      %v809 = vsub.f32 %v599, %v764
      %v810 = vsub.f32 %v601, %v768
      %v811 = vsub.f32 %v605, %v764
      %v812 = vsub.f32 %v607, %v768
      %v813 = vsub.f32 %v609, %v764
      %v814 = vsub.f32 %v611, %v768
      %v815 = vsub.f32 %v615, %v764
      %v816 = vsub.f32 %v617, %v768
      %v817 = vsub.f32 %v619, %v764
      %v818 = vsub.f32 %v621, %v768
      %v819 = vsub.f32 %v625, %v764
      %v820 = vsub.f32 %v627, %v768
      %v821 = vsub.f32 %v629, %v764
      %v822 = vsub.f32 %v631, %v768
      %v823 = vsub.f32 %v635, %v764
      %v824 = vsub.f32 %v637, %v768
      %v825 = vsub.f32 %v639, %v764
      %v826 = vsub.f32 %v641, %v768
      %v827 = vsub.f32 %v645, %v764
      %v828 = vsub.f32 %v647, %v768
      %v829 = vsub.f32 %v649, %v764
      %v830 = vsub.f32 %v651, %v768
      %v831 = vsub.f32 %v655, %v764
      %v832 = vsub.f32 %v657, %v768
      %v833 = vsub.f32 %v659, %v764
      %v834 = vsub.f32 %v661, %v768
      %v835 = vpack.c.bf16 %v773, %v771
      %v836 = vpack.c.bf16 %v774, %v772
      %v837 = vpack.c.bf16 %v777, %v775
      %v838 = vpack.c.bf16 %v778, %v776
      %v839 = vpack.c.bf16 %v781, %v779
      %v840 = vpack.c.bf16 %v782, %v780
      %v841 = vpack.c.bf16 %v785, %v783
      %v842 = vpack.c.bf16 %v786, %v784
      %v843 = vpack.c.bf16 %v789, %v787
      %v844 = vpack.c.bf16 %v790, %v788
      %v845 = vpack.c.bf16 %v793, %v791
      %v846 = vpack.c.bf16 %v794, %v792
      %v847 = vpack.c.bf16 %v797, %v795
      %v848 = vpack.c.bf16 %v798, %v796
      %v849 = vpack.c.bf16 %v801, %v799
      %v850 = vpack.c.bf16 %v802, %v800
      %v851 = vpack.c.bf16 %v805, %v803
      %v852 = vpack.c.bf16 %v806, %v804
      %v853 = vpack.c.bf16 %v809, %v807
      %v854 = vpack.c.bf16 %v810, %v808
      %v855 = vpack.c.bf16 %v813, %v811
      %v856 = vpack.c.bf16 %v814, %v812
      %v857 = vpack.c.bf16 %v817, %v815
      %v858 = vpack.c.bf16 %v818, %v816
      %v859 = vpack.c.bf16 %v821, %v819
      %v860 = vpack.c.bf16 %v822, %v820
      %v861 = vpack.c.bf16 %v825, %v823
      %v862 = vpack.c.bf16 %v826, %v824
      %v863 = vpack.c.bf16 %v829, %v827
      %v864 = vpack.c.bf16 %v830, %v828
      %v865 = vpack.c.bf16 %v833, %v831
      %v866 = vpack.c.bf16 %v834, %v832
      %v868 = vmul.bf16 %v835, 1069105081
      %v869 = vpow.bf16.pop %v868
      %v871 = vmul.bf16 %v836, 1069105081
      %v872 = vpow.bf16.pop %v871
      %v874 = vmul.bf16 %v837, 1069105081
      %v875 = vpow.bf16.pop %v874
      %v877 = vmul.bf16 %v838, 1069105081
      %v878 = vpow.bf16.pop %v877
      %v880 = vmul.bf16 %v839, 1069105081
      %v881 = vpow.bf16.pop %v880
      %v883 = vmul.bf16 %v840, 1069105081
      %v884 = vpow.bf16.pop %v883
      %v886 = vmul.bf16 %v841, 1069105081
      %v887 = vpow.bf16.pop %v886
      %v889 = vmul.bf16 %v842, 1069105081
      %v890 = vpow.bf16.pop %v889
      %v892 = vmul.bf16 %v843, 1069105081
      %v893 = vpow.bf16.pop %v892
      %v895 = vmul.bf16 %v844, 1069105081
      %v896 = vpow.bf16.pop %v895
      %v898 = vmul.bf16 %v845, 1069105081
      %v899 = vpow.bf16.pop %v898
      %v901 = vmul.bf16 %v846, 1069105081
      %v902 = vpow.bf16.pop %v901
      %v904 = vmul.bf16 %v847, 1069105081
      %v905 = vpow.bf16.pop %v904
      %v907 = vmul.bf16 %v848, 1069105081
      %v908 = vpow.bf16.pop %v907
      %v910 = vmul.bf16 %v849, 1069105081
      %v911 = vpow.bf16.pop %v910
      %v913 = vmul.bf16 %v850, 1069105081
      %v914 = vpow.bf16.pop %v913
      %v916 = vmul.bf16 %v851, 1069105081
      %v917 = vpow.bf16.pop %v916
      %v919 = vmul.bf16 %v852, 1069105081
      %v920 = vpow.bf16.pop %v919
      %v922 = vmul.bf16 %v853, 1069105081
      %v923 = vpow.bf16.pop %v922
      %v925 = vmul.bf16 %v854, 1069105081
      %v926 = vpow.bf16.pop %v925
      %v928 = vmul.bf16 %v855, 1069105081
      %v929 = vpow.bf16.pop %v928
      %v931 = vmul.bf16 %v856, 1069105081
      %v932 = vpow.bf16.pop %v931
      %v934 = vmul.bf16 %v857, 1069105081
      %v935 = vpow.bf16.pop %v934
      %v937 = vmul.bf16 %v858, 1069105081
      %v938 = vpow.bf16.pop %v937
      %v940 = vmul.bf16 %v859, 1069105081
      %v941 = vpow.bf16.pop %v940
      %v943 = vmul.bf16 %v860, 1069105081
      %v944 = vpow.bf16.pop %v943
      %v946 = vmul.bf16 %v861, 1069105081
      %v947 = vpow.bf16.pop %v946
      %v949 = vmul.bf16 %v862, 1069105081
      %v950 = vpow.bf16.pop %v949
      %v952 = vmul.bf16 %v863, 1069105081
      %v953 = vpow.bf16.pop %v952
      %v955 = vmul.bf16 %v864, 1069105081
      %v956 = vpow.bf16.pop %v955
      %v958 = vmul.bf16 %v865, 1069105081
      %v959 = vpow.bf16.pop %v958
      %v961 = vmul.bf16 %v866, 1069105081
      %v962 = vpow.bf16.pop %v961
      %v963 = vld [vmem:[%s292] sm:$0xf]
      %v966 = vunpack.c.l.s4 1983009808
      %v967 = vunpack.c.0.s8 %v966
      %v968 = vlaneseq
      %v969 = vshrl.u32 %v968, 7
      %v970 = vsub.s32 %v967, %v969
      %v971 = vrot.slane %v963, %v970
      %v972 = vcombine.high %v971, %v971
      %975 = vmatprep.subr.bf16.mxu0 %v872
      %976 = vmatpush1.bf16.msra.mxu0 %v869
      %977 = vmatprep.subr.bf16.mxu0 %v878
      %978 = vmatpush1.bf16.msra.mxu0 %v875
      %979 = vmatprep.subr.bf16.mxu0 %v884
      %980 = vmatpush1.bf16.msra.mxu0 %v881
      %981 = vmatprep.subr.bf16.mxu0 %v890
      %982 = vmatpush1.bf16.msra.mxu0 %v887
      %983 = vmatprep.subr.bf16.mxu0 %v896
      %984 = vmatpush1.bf16.msra.mxu0 %v893
      %985 = vmatprep.subr.bf16.mxu0 %v902
      %986 = vmatpush1.bf16.msra.mxu0 %v899
      %987 = vmatprep.subr.bf16.mxu0 %v908
      %988 = vmatpush1.bf16.msra.mxu0 %v905
      %989 = vmatprep.subr.bf16.mxu0 %v914
      %990 = vmatpush1.bf16.msra.mxu0 %v911
      %991 = vmatprep.subr.bf16.mxu0 %v920
      %992 = vmatpush1.bf16.msra.mxu0 %v917
      %993 = vmatprep.subr.bf16.mxu0 %v926
      %994 = vmatpush1.bf16.msra.mxu0 %v923
      %995 = vmatprep.subr.bf16.mxu0 %v932
      %996 = vmatpush1.bf16.msra.mxu0 %v929
      %997 = vmatprep.subr.bf16.mxu0 %v938
      %998 = vmatpush1.bf16.msra.mxu0 %v935
      %999 = vmatprep.subr.bf16.mxu0 %v944
      %1000 = vmatpush1.bf16.msra.mxu0 %v941
      %1001 = vmatprep.subr.bf16.mxu0 %v950
      %1002 = vmatpush1.bf16.msra.mxu0 %v947
      %1003 = vmatprep.subr.bf16.mxu0 %v956
      %1004 = vmatpush1.bf16.msra.mxu0 %v953
      %1005 = vmatprep.subr.bf16.mxu0 %v962
      %1006 = vmatpush1.bf16.msra.mxu0 %v959
      %1007 = vmatprep.mubr.bf16.mxu0 %v972
      %1008 = vmatmul.mubr.bf16.gmra.mrb[0].mxu0 %v971
      %v1009 = vpop.f32.mrb[0].mxu0
      %v1010 = vadd.f32 0.0, %v1009
      %v1011 = vpop.f32.mrb[0].mxu0
      %v1012 = vadd.f32 0.0, %v1011
      %v1013 = vpop.f32.mrb[0].mxu0
      %v1014 = vpop.f32.mrb[0].mxu0
      %1015 = vdwg.mxu0
      %v1016 = vld [vmem:[#allocation3] sm:$0x77]
      %v1018 = vlaneseq
      %v1019 = vshrl.u32 %v1018, 7
      %v1020 = vsub.s32 0, %v1019
      %v1021 = vrot.slane %v759, %v1020
      %v1022 = vlaneseq
      %v1023 = vshrl.u32 %v1022, 7
      %v1024 = vsub.s32 1, %v1023
      %v1025 = vrot.slane %v759, %v1024
      %v1029 = vcombine.high %v1016, %v1016
      %v1031 = vmul.f32 %v1021, %v1016
      %v1032 = vmul.f32 %v1025, %v1029
      %v1033 = vadd.f32 %v1031, %v1010
      %v1034 = vadd.f32 %v1032, %v1012
      %v1037 = vcombine.low %v1033, %v1034
      %1039 = vst [vmem:[#allocation3] sm:$0x77] %v1037
      %v1040 = vlaneseq
      %vm1041 = vcmp.ge.s32.totalorder %v1040, 0
      %vm1042 = vcmp.lt.s32.totalorder %v1040, 256
      %vm1043 = vmand %vm1041, %vm1042
      %1044 = vst.msk [vmem:[#allocation2] sm:$0x3] %vm1043, %v756
      %s1045 = scalar_lea.vmem %s280, 40
      %v1046 = vld [vmem:[%s1045] sm:$0xff]
      %v1047 = vld [vmem:[%s1045 + $0x8] sm:$0xff]
      %v1048 = vld [vmem:[%s1045 + $0x10] sm:$0xff]
      %v1049 = vld [vmem:[%s1045 + $0x18] sm:$0xff]
      %v1050 = vld [vmem:[%s1045 + $0x20] sm:$0x33]
      %s1051 = scalar_lea.vmem %s268, 40
      %v1052 = vld [vmem:[%s1051] sm:$0xff]
      %v1053 = vld [vmem:[%s1051 + $0x8] sm:$0xff]
      %v1054 = vld [vmem:[%s1051 + $0x10] sm:$0xff]
      %v1055 = vld [vmem:[%s1051 + $0x18] sm:$0xff]
      %v1056 = vld [vmem:[%s1051 + $0x20] sm:$0x33]
      %v1062 = vunpack.c.l.b16 %v1046
      %v1063 = vunpack.c.h.b16 %v1046
      %v1064 = vunpack.c.l.b16 %v1047
      %v1065 = vunpack.c.h.b16 %v1047
      %v1066 = vunpack.c.l.b16 %v1048
      %v1067 = vunpack.c.h.b16 %v1048
      %v1068 = vunpack.c.l.b16 %v1049
      %v1069 = vunpack.c.h.b16 %v1049
      %v1070 = vunpack.c.l.b16 %v1050
      %v1071 = vunpack.c.h.b16 %v1050
      %v1072 = vpack.c.b16 %v1064, %v1062
      %v1073 = vpack.c.b16 %v1065, %v1063
      %v1074 = vpack.c.b16 %v1068, %v1066
      %v1075 = vpack.c.b16 %v1069, %v1067
      %v1076 = vpack.c.b16 %v1070, %v1070
      %v1077 = vpack.c.b16 %v1071, %v1071
      %1084 = vxpose.xlu0.c.b16.start [1/8] %v1072, 128
      %1085 = vxpose.xlu0.c.b16.cont [2/8] %v1074, 128
      %1086 = vxpose.xlu0.c.b16.cont [3/8] %v1076, 128
      %1087 = vxpose.xlu0.c.b16.cont [4/8] 0, 128
      %1088 = vxpose.xlu0.c.b16.cont [5/8] 0, 128
      %1089 = vxpose.xlu0.c.b16.cont [6/8] 0, 128
      %1090 = vxpose.xlu0.c.b16.cont [7/8] 0, 128
      %1091 = vxpose.xlu0.c.b16.end [8/8] 0, 128
      %v1092 = vpop.trf.xlu0
      %v1093 = vpop.trf.xlu0
      %v1094 = vpop.trf.xlu0
      %v1095 = vpop.trf.xlu0
      %v1096 = vpop.trf.xlu0
      %v1097 = vpop.trf.xlu0
      %v1098 = vpop.trf.xlu0
      %v1099 = vpop.trf.xlu0
      %1100 = vxpose.xlu0.c.b16.start [1/8] %v1073, 128
      %1101 = vxpose.xlu0.c.b16.cont [2/8] %v1075, 128
      %1102 = vxpose.xlu0.c.b16.cont [3/8] %v1077, 128
      %1103 = vxpose.xlu0.c.b16.cont [4/8] 0, 128
      %1104 = vxpose.xlu0.c.b16.cont [5/8] 0, 128
      %1105 = vxpose.xlu0.c.b16.cont [6/8] 0, 128
      %1106 = vxpose.xlu0.c.b16.cont [7/8] 0, 128
      %1107 = vxpose.xlu0.c.b16.end [8/8] 0, 128
      %v1108 = vpop.trf.xlu0
      %v1109 = vpop.trf.xlu0
      %v1110 = vpop.trf.xlu0
      %v1111 = vpop.trf.xlu0
      %v1112 = vpop.trf.xlu0
      %v1113 = vpop.trf.xlu0
      %v1114 = vpop.trf.xlu0
      %v1115 = vpop.trf.xlu0
      %v1121 = vunpack.c.l.b16 %v1052
      %v1122 = vunpack.c.h.b16 %v1052
      %v1123 = vunpack.c.l.b16 %v1053
      %v1124 = vunpack.c.h.b16 %v1053
      %v1125 = vunpack.c.l.b16 %v1054
      %v1126 = vunpack.c.h.b16 %v1054
      %v1127 = vunpack.c.l.b16 %v1055
      %v1128 = vunpack.c.h.b16 %v1055
      %v1129 = vunpack.c.l.b16 %v1056
      %v1130 = vunpack.c.h.b16 %v1056
      %v1131 = vpack.c.b16 %v1123, %v1121
      %v1132 = vpack.c.b16 %v1124, %v1122
      %v1133 = vpack.c.b16 %v1127, %v1125
      %v1134 = vpack.c.b16 %v1128, %v1126
      %v1135 = vpack.c.b16 %v1129, %v1129
      %v1136 = vpack.c.b16 %v1130, %v1130
      %v1142 = vsel %vm414, %v1092, 0
      %v1145 = vsel %vm414, %v1093, 0
      %v1148 = vsel %vm414, %v1094, 0
      %v1151 = vsel %vm414, %v1095, 0
      %v1154 = vsel %vm414, %v1096, 0
      %v1157 = vsel %vm414, %v1097, 0
      %v1160 = vsel %vm414, %v1098, 0
      %v1163 = vsel %vm414, %v1099, 0
      %v1166 = vsel %vm414, %v1108, 0
      %v1169 = vsel %vm414, %v1109, 0
      %v1172 = vsel %vm414, %v1110, 0
      %v1175 = vsel %vm414, %v1111, 0
      %v1178 = vsel %vm414, %v1112, 0
      %v1181 = vsel %vm414, %v1113, 0
      %v1184 = vsel %vm414, %v1114, 0
      %v1187 = vsel %vm414, %v1115, 0
      %v1190 = vsel %vm463, %v1135, 0
      %v1193 = vsel %vm463, %v1136, 0
      %1195 = vmatprep.subr.bf16.mxu0 %v1132
      %1196 = vmatpush1.bf16.msra.mxu0 %v1131
      %1197 = vmatprep.subr.bf16.mxu0 %v1134
      %1198 = vmatpush1.bf16.msra.mxu0 %v1133
      %1199 = vmatprep.subr.bf16.mxu0 %v1193
      %1200 = vmatpush1.bf16.msra.mxu0 %v1190
      %1201 = vmatprep.subr.bf16.mxu0 0
      %1202 = vmatpush1.bf16.msra.mxu0 0
      %1203 = vmatprep.subr.bf16.mxu0 0
      %1204 = vmatpush1.bf16.msra.mxu0 0
      %1205 = vmatprep.subr.bf16.mxu0 0
      %1206 = vmatpush1.bf16.msra.mxu0 0
      %1207 = vmatprep.subr.bf16.mxu0 0
      %1208 = vmatpush1.bf16.msra.mxu0 0
      %1209 = vmatprep.subr.bf16.mxu0 0
      %1210 = vmatpush1.bf16.msra.mxu0 0
      %1211 = vmatprep.subr.bf16.mxu0 0
      %1212 = vmatpush1.bf16.msra.mxu0 0
      %1213 = vmatprep.subr.bf16.mxu0 0
      %1214 = vmatpush1.bf16.msra.mxu0 0
      %1215 = vmatprep.subr.bf16.mxu0 0
      %1216 = vmatpush1.bf16.msra.mxu0 0
      %1217 = vmatprep.subr.bf16.mxu0 0
      %1218 = vmatpush1.bf16.msra.mxu0 0
      %1219 = vmatprep.subr.bf16.mxu0 0
      %1220 = vmatpush1.bf16.msra.mxu0 0
      %1221 = vmatprep.subr.bf16.mxu0 0
      %1222 = vmatpush1.bf16.msra.mxu0 0
      %1223 = vmatprep.subr.bf16.mxu0 0
      %1224 = vmatpush1.bf16.msra.mxu0 0
      %1225 = vmatprep.subr.bf16.mxu0 0
      %1226 = vmatpush1.bf16.msra.mxu0 0
      %1227 = vmatprep.mubr.bf16.mxu0 0
      %1228 = vmatmul.mubr.bf16.gmra.mrb[0].mxu0 %v1142
      %v1229 = vpop.f32.mrb[0].mxu0
      %v1230 = vadd.f32 0.0, %v1229
      %v1231 = vpop.f32.mrb[0].mxu0
      %v1232 = vadd.f32 0.0, %v1231
      %v1233 = vpop.f32.mrb[0].mxu0
      %v1234 = vadd.f32 0.0, %v1233
      %v1235 = vpop.f32.mrb[0].mxu0
      %v1236 = vadd.f32 0.0, %v1235
      %1237 = vmatprep.mubr.bf16.mxu0 0
      %1238 = vmatmul.mubr.bf16.gmra.mrb[0].mxu0 %v1145
      %v1239 = vpop.f32.mrb[0].mxu0
      %v1240 = vadd.f32 0.0, %v1239
      %v1241 = vpop.f32.mrb[0].mxu0
      %v1242 = vadd.f32 0.0, %v1241
      %v1243 = vpop.f32.mrb[0].mxu0
      %v1244 = vadd.f32 0.0, %v1243
      %v1245 = vpop.f32.mrb[0].mxu0
      %v1246 = vadd.f32 0.0, %v1245
      %1247 = vmatprep.mubr.bf16.mxu0 0
      %1248 = vmatmul.mubr.bf16.gmra.mrb[0].mxu0 %v1148
      %v1249 = vpop.f32.mrb[0].mxu0
      %v1250 = vadd.f32 0.0, %v1249
      %v1251 = vpop.f32.mrb[0].mxu0
      %v1252 = vadd.f32 0.0, %v1251
      %v1253 = vpop.f32.mrb[0].mxu0
      %v1254 = vadd.f32 0.0, %v1253
      %v1255 = vpop.f32.mrb[0].mxu0
      %v1256 = vadd.f32 0.0, %v1255
      %1257 = vmatprep.mubr.bf16.mxu0 0
      %1258 = vmatmul.mubr.bf16.gmra.mrb[0].mxu0 %v1151
      %v1259 = vpop.f32.mrb[0].mxu0
      %v1260 = vadd.f32 0.0, %v1259
      %v1261 = vpop.f32.mrb[0].mxu0
      %v1262 = vadd.f32 0.0, %v1261
      %v1263 = vpop.f32.mrb[0].mxu0
      %v1264 = vadd.f32 0.0, %v1263
      %v1265 = vpop.f32.mrb[0].mxu0
      %v1266 = vadd.f32 0.0, %v1265
      %1267 = vmatprep.mubr.bf16.mxu0 0
      %1268 = vmatmul.mubr.bf16.gmra.mrb[0].mxu0 %v1154
      %v1269 = vpop.f32.mrb[0].mxu0
      %v1270 = vadd.f32 0.0, %v1269
      %v1271 = vpop.f32.mrb[0].mxu0
      %v1272 = vadd.f32 0.0, %v1271
      %v1273 = vpop.f32.mrb[0].mxu0
      %v1274 = vadd.f32 0.0, %v1273
      %v1275 = vpop.f32.mrb[0].mxu0
      %v1276 = vadd.f32 0.0, %v1275
      %1277 = vmatprep.mubr.bf16.mxu0 0
      %1278 = vmatmul.mubr.bf16.gmra.mrb[0].mxu0 %v1157
      %v1279 = vpop.f32.mrb[0].mxu0
      %v1280 = vadd.f32 0.0, %v1279
      %v1281 = vpop.f32.mrb[0].mxu0
      %v1282 = vadd.f32 0.0, %v1281
      %v1283 = vpop.f32.mrb[0].mxu0
      %v1284 = vadd.f32 0.0, %v1283
      %v1285 = vpop.f32.mrb[0].mxu0
      %v1286 = vadd.f32 0.0, %v1285
      %1287 = vmatprep.mubr.bf16.mxu0 0
      %1288 = vmatmul.mubr.bf16.gmra.mrb[0].mxu0 %v1160
      %v1289 = vpop.f32.mrb[0].mxu0
      %v1290 = vadd.f32 0.0, %v1289
      %v1291 = vpop.f32.mrb[0].mxu0
      %v1292 = vadd.f32 0.0, %v1291
      %v1293 = vpop.f32.mrb[0].mxu0
      %v1294 = vadd.f32 0.0, %v1293
      %v1295 = vpop.f32.mrb[0].mxu0
      %v1296 = vadd.f32 0.0, %v1295
      %1297 = vmatprep.mubr.bf16.mxu0 0
      %1298 = vmatmul.mubr.bf16.gmra.mrb[0].mxu0 %v1163
      %v1299 = vpop.f32.mrb[0].mxu0
      %v1300 = vadd.f32 0.0, %v1299
      %v1301 = vpop.f32.mrb[0].mxu0
      %v1302 = vadd.f32 0.0, %v1301
      %v1303 = vpop.f32.mrb[0].mxu0
      %v1304 = vadd.f32 0.0, %v1303
      %v1305 = vpop.f32.mrb[0].mxu0
      %v1306 = vadd.f32 0.0, %v1305
      %1307 = vmatprep.mubr.bf16.mxu0 0
      %1308 = vmatmul.mubr.bf16.gmra.mrb[0].mxu0 %v1166
      %v1309 = vpop.f32.mrb[0].mxu0
      %v1310 = vadd.f32 0.0, %v1309
      %v1311 = vpop.f32.mrb[0].mxu0
      %v1312 = vadd.f32 0.0, %v1311
      %v1313 = vpop.f32.mrb[0].mxu0
      %v1314 = vadd.f32 0.0, %v1313
      %v1315 = vpop.f32.mrb[0].mxu0
      %v1316 = vadd.f32 0.0, %v1315
      %1317 = vmatprep.mubr.bf16.mxu0 0
      %1318 = vmatmul.mubr.bf16.gmra.mrb[0].mxu0 %v1169
      %v1319 = vpop.f32.mrb[0].mxu0
      %v1320 = vadd.f32 0.0, %v1319
      %v1321 = vpop.f32.mrb[0].mxu0
      %v1322 = vadd.f32 0.0, %v1321
      %v1323 = vpop.f32.mrb[0].mxu0
      %v1324 = vadd.f32 0.0, %v1323
      %v1325 = vpop.f32.mrb[0].mxu0
      %v1326 = vadd.f32 0.0, %v1325
      %1327 = vmatprep.mubr.bf16.mxu0 0
      %1328 = vmatmul.mubr.bf16.gmra.mrb[0].mxu0 %v1172
      %v1329 = vpop.f32.mrb[0].mxu0
      %v1330 = vadd.f32 0.0, %v1329
      %v1331 = vpop.f32.mrb[0].mxu0
      %v1332 = vadd.f32 0.0, %v1331
      %v1333 = vpop.f32.mrb[0].mxu0
      %v1334 = vadd.f32 0.0, %v1333
      %v1335 = vpop.f32.mrb[0].mxu0
      %v1336 = vadd.f32 0.0, %v1335
      %1337 = vmatprep.mubr.bf16.mxu0 0
      %1338 = vmatmul.mubr.bf16.gmra.mrb[0].mxu0 %v1175
      %v1339 = vpop.f32.mrb[0].mxu0
      %v1340 = vadd.f32 0.0, %v1339
      %v1341 = vpop.f32.mrb[0].mxu0
      %v1342 = vadd.f32 0.0, %v1341
      %v1343 = vpop.f32.mrb[0].mxu0
      %v1344 = vadd.f32 0.0, %v1343
      %v1345 = vpop.f32.mrb[0].mxu0
      %v1346 = vadd.f32 0.0, %v1345
      %1347 = vmatprep.mubr.bf16.mxu0 0
      %1348 = vmatmul.mubr.bf16.gmra.mrb[0].mxu0 %v1178
      %v1349 = vpop.f32.mrb[0].mxu0
      %v1350 = vadd.f32 0.0, %v1349
      %v1351 = vpop.f32.mrb[0].mxu0
      %v1352 = vadd.f32 0.0, %v1351
      %v1353 = vpop.f32.mrb[0].mxu0
      %v1354 = vadd.f32 0.0, %v1353
      %v1355 = vpop.f32.mrb[0].mxu0
      %v1356 = vadd.f32 0.0, %v1355
      %1357 = vmatprep.mubr.bf16.mxu0 0
      %1358 = vmatmul.mubr.bf16.gmra.mrb[0].mxu0 %v1181
      %v1359 = vpop.f32.mrb[0].mxu0
      %v1360 = vadd.f32 0.0, %v1359
      %v1361 = vpop.f32.mrb[0].mxu0
      %v1362 = vadd.f32 0.0, %v1361
      %v1363 = vpop.f32.mrb[0].mxu0
      %v1364 = vadd.f32 0.0, %v1363
      %v1365 = vpop.f32.mrb[0].mxu0
      %v1366 = vadd.f32 0.0, %v1365
      %1367 = vmatprep.mubr.bf16.mxu0 0
      %1368 = vmatmul.mubr.bf16.gmra.mrb[0].mxu0 %v1184
      %v1369 = vpop.f32.mrb[0].mxu0
      %v1370 = vadd.f32 0.0, %v1369
      %v1371 = vpop.f32.mrb[0].mxu0
      %v1372 = vadd.f32 0.0, %v1371
      %v1373 = vpop.f32.mrb[0].mxu0
      %v1374 = vadd.f32 0.0, %v1373
      %v1375 = vpop.f32.mrb[0].mxu0
      %v1376 = vadd.f32 0.0, %v1375
      %1377 = vmatprep.mubr.bf16.mxu0 0
      %1378 = vmatmul.mubr.bf16.gmra.mrb[0].mxu0 %v1187
      %v1379 = vpop.f32.mrb[0].mxu0
      %v1380 = vadd.f32 0.0, %v1379
      %v1381 = vpop.f32.mrb[0].mxu0
      %v1382 = vadd.f32 0.0, %v1381
      %v1383 = vpop.f32.mrb[0].mxu0
      %v1384 = vadd.f32 0.0, %v1383
      %v1385 = vpop.f32.mrb[0].mxu0
      %v1386 = vadd.f32 0.0, %v1385
      %1387 = vdwg.mxu0
      %s1388 = scalar_lea.vmem [#allocation2], 2
      %v1389 = vld [vmem:[%s1388] sm:$0x3]
      %v1390 = vmax.f32 %v1230, %v1240
      %v1391 = vmax.f32 %v1234, %v1244
      %v1392 = vmax.f32 %v1390, %v1250
      %v1393 = vmax.f32 %v1391, %v1254
      %v1394 = vmax.f32 %v1392, %v1260
      %v1395 = vmax.f32 %v1393, %v1264
      %v1396 = vmax.f32 %v1394, %v1270
      %v1397 = vmax.f32 %v1395, %v1274
      %v1398 = vmax.f32 %v1396, %v1280
      %v1399 = vmax.f32 %v1397, %v1284
      %v1400 = vmax.f32 %v1398, %v1290
      %v1401 = vmax.f32 %v1399, %v1294
      %v1402 = vmax.f32 %v1400, %v1300
      %v1403 = vmax.f32 %v1401, %v1304
      %v1404 = vmax.f32 %v1402, %v1310
      %v1405 = vmax.f32 %v1403, %v1314
      %v1406 = vmax.f32 %v1404, %v1320
      %v1407 = vmax.f32 %v1405, %v1324
      %v1408 = vmax.f32 %v1406, %v1330
      %v1409 = vmax.f32 %v1407, %v1334
      %v1410 = vmax.f32 %v1408, %v1340
      %v1411 = vmax.f32 %v1409, %v1344
      %v1412 = vmax.f32 %v1410, %v1350
      %v1413 = vmax.f32 %v1411, %v1354
      %v1414 = vmax.f32 %v1412, %v1360
      %v1415 = vmax.f32 %v1413, %v1364
      %v1416 = vmax.f32 %v1414, %v1370
      %v1417 = vmax.f32 %v1415, %v1374
      %v1418 = vmax.f32 %v1416, %v1380
      %v1419 = vmax.f32 %v1417, %v1384
      %v1420 = vmax.f32 %v1418, %v1419
      %v1421 = vrot.slane %v1420, 4
      %v1422 = vmax.f32 %v1420, %v1421
      %v1423 = vrot.slane %v1422, 2
      %v1424 = vmax.f32 %v1422, %v1423
      %v1425 = vrot.slane %v1424, 1
      %v1426 = vmax.f32 %v1424, %v1425
      %v1427 = vmax.f32 %v1232, %v1242
      %v1428 = vmax.f32 %v1236, %v1246
      %v1429 = vmax.f32 %v1427, %v1252
      %v1430 = vmax.f32 %v1428, %v1256
      %v1431 = vmax.f32 %v1429, %v1262
      %v1432 = vmax.f32 %v1430, %v1266
      %v1433 = vmax.f32 %v1431, %v1272
      %v1434 = vmax.f32 %v1432, %v1276
      %v1435 = vmax.f32 %v1433, %v1282
      %v1436 = vmax.f32 %v1434, %v1286
      %v1437 = vmax.f32 %v1435, %v1292
      %v1438 = vmax.f32 %v1436, %v1296
      %v1439 = vmax.f32 %v1437, %v1302
      %v1440 = vmax.f32 %v1438, %v1306
      %v1441 = vmax.f32 %v1439, %v1312
      %v1442 = vmax.f32 %v1440, %v1316
      %v1443 = vmax.f32 %v1441, %v1322
      %v1444 = vmax.f32 %v1442, %v1326
      %v1445 = vmax.f32 %v1443, %v1332
      %v1446 = vmax.f32 %v1444, %v1336
      %v1447 = vmax.f32 %v1445, %v1342
      %v1448 = vmax.f32 %v1446, %v1346
      %v1449 = vmax.f32 %v1447, %v1352
      %v1450 = vmax.f32 %v1448, %v1356
      %v1451 = vmax.f32 %v1449, %v1362
      %v1452 = vmax.f32 %v1450, %v1366
      %v1453 = vmax.f32 %v1451, %v1372
      %v1454 = vmax.f32 %v1452, %v1376
      %v1455 = vmax.f32 %v1453, %v1382
      %v1456 = vmax.f32 %v1454, %v1386
      %v1457 = vmax.f32 %v1455, %v1456
      %v1458 = vrot.slane %v1457, 4
      %v1459 = vmax.f32 %v1457, %v1458
      %v1460 = vrot.slane %v1459, 2
      %v1461 = vmax.f32 %v1459, %v1460
      %v1462 = vrot.slane %v1461, 1
      %v1463 = vmax.f32 %v1461, %v1462
      %v1466 = vcombine.low %v1426, %v1463
      %v1468 = vunpack.c.l.s4 1966171168
      %v1469 = vunpack.c.0.s8 %v1468
      %v1470 = vlaneseq
      %v1471 = vshrl.u32 %v1470, 7
      %v1472 = vsub.s32 %v1469, %v1471
      %v1473 = vrot.slane %v1466, %v1472
      %v1475 = vunpack.c.l.s4 1966171168
      %v1476 = vunpack.c.0.s8 %v1475
      %v1477 = vlaneseq
      %v1478 = vshrl.u32 %v1477, 7
      %v1479 = vsub.s32 %v1476, %v1478
      %v1480 = vrot.slane %v1473, %v1479
      %v1482 = vmax.f32 %v1389, %v1480
      %v1483 = vsub.f32 %v1389, %v1482
      %v1484 = vmul.f32 %v1483, 1.442695
      %v1485 = vpow.pop %v1484
      %v1487 = vlaneseq
      %v1488 = vshrl.u32 %v1487, 7
      %v1489 = vsub.s32 0, %v1488
      %v1490 = vrot.slane %v1482, %v1489
      %v1491 = vlaneseq
      %v1492 = vshrl.u32 %v1491, 7
      %v1493 = vsub.s32 1, %v1492
      %v1494 = vrot.slane %v1482, %v1493
      %v1497 = vsub.f32 %v1230, %v1490
      %v1498 = vsub.f32 %v1232, %v1494
      %v1499 = vsub.f32 %v1234, %v1490
      %v1500 = vsub.f32 %v1236, %v1494
      %v1501 = vsub.f32 %v1240, %v1490
      %v1502 = vsub.f32 %v1242, %v1494
      %v1503 = vsub.f32 %v1244, %v1490
      %v1504 = vsub.f32 %v1246, %v1494
      %v1505 = vsub.f32 %v1250, %v1490
      %v1506 = vsub.f32 %v1252, %v1494
      %v1507 = vsub.f32 %v1254, %v1490
      %v1508 = vsub.f32 %v1256, %v1494
      %v1509 = vsub.f32 %v1260, %v1490
      %v1510 = vsub.f32 %v1262, %v1494
      %v1511 = vsub.f32 %v1264, %v1490
      %v1512 = vsub.f32 %v1266, %v1494
      %v1513 = vsub.f32 %v1270, %v1490
      %v1514 = vsub.f32 %v1272, %v1494
      %v1515 = vsub.f32 %v1274, %v1490
      %v1516 = vsub.f32 %v1276, %v1494
      %v1517 = vsub.f32 %v1280, %v1490
      %v1518 = vsub.f32 %v1282, %v1494
      %v1519 = vsub.f32 %v1284, %v1490
      %v1520 = vsub.f32 %v1286, %v1494
      %v1521 = vsub.f32 %v1290, %v1490
      %v1522 = vsub.f32 %v1292, %v1494
      %v1523 = vsub.f32 %v1294, %v1490
      %v1524 = vsub.f32 %v1296, %v1494
      %v1525 = vsub.f32 %v1300, %v1490
      %v1526 = vsub.f32 %v1302, %v1494
      %v1527 = vsub.f32 %v1304, %v1490
      %v1528 = vsub.f32 %v1306, %v1494
      %v1529 = vsub.f32 %v1310, %v1490
      %v1530 = vsub.f32 %v1312, %v1494
      %v1531 = vsub.f32 %v1314, %v1490
      %v1532 = vsub.f32 %v1316, %v1494
      %v1533 = vsub.f32 %v1320, %v1490
      %v1534 = vsub.f32 %v1322, %v1494
      %v1535 = vsub.f32 %v1324, %v1490
      %v1536 = vsub.f32 %v1326, %v1494
      %v1537 = vsub.f32 %v1330, %v1490
      %v1538 = vsub.f32 %v1332, %v1494
      %v1539 = vsub.f32 %v1334, %v1490
      %v1540 = vsub.f32 %v1336, %v1494
      %v1541 = vsub.f32 %v1340, %v1490
      %v1542 = vsub.f32 %v1342, %v1494
      %v1543 = vsub.f32 %v1344, %v1490
      %v1544 = vsub.f32 %v1346, %v1494
      %v1545 = vsub.f32 %v1350, %v1490
      %v1546 = vsub.f32 %v1352, %v1494
      %v1547 = vsub.f32 %v1354, %v1490
      %v1548 = vsub.f32 %v1356, %v1494
      %v1549 = vsub.f32 %v1360, %v1490
      %v1550 = vsub.f32 %v1362, %v1494
      %v1551 = vsub.f32 %v1364, %v1490
      %v1552 = vsub.f32 %v1366, %v1494
      %v1553 = vsub.f32 %v1370, %v1490
      %v1554 = vsub.f32 %v1372, %v1494
      %v1555 = vsub.f32 %v1374, %v1490
      %v1556 = vsub.f32 %v1376, %v1494
      %v1557 = vsub.f32 %v1380, %v1490
      %v1558 = vsub.f32 %v1382, %v1494
      %v1559 = vsub.f32 %v1384, %v1490
      %v1560 = vsub.f32 %v1386, %v1494
      %v1561 = vpack.c.bf16 %v1499, %v1497
      %v1562 = vpack.c.bf16 %v1500, %v1498
      %v1563 = vpack.c.bf16 %v1503, %v1501
      %v1564 = vpack.c.bf16 %v1504, %v1502
      %v1565 = vpack.c.bf16 %v1507, %v1505
      %v1566 = vpack.c.bf16 %v1508, %v1506
      %v1567 = vpack.c.bf16 %v1511, %v1509
      %v1568 = vpack.c.bf16 %v1512, %v1510
      %v1569 = vpack.c.bf16 %v1515, %v1513
      %v1570 = vpack.c.bf16 %v1516, %v1514
      %v1571 = vpack.c.bf16 %v1519, %v1517
      %v1572 = vpack.c.bf16 %v1520, %v1518
      %v1573 = vpack.c.bf16 %v1523, %v1521
      %v1574 = vpack.c.bf16 %v1524, %v1522
      %v1575 = vpack.c.bf16 %v1527, %v1525
      %v1576 = vpack.c.bf16 %v1528, %v1526
      %v1577 = vpack.c.bf16 %v1531, %v1529
      %v1578 = vpack.c.bf16 %v1532, %v1530
      %v1579 = vpack.c.bf16 %v1535, %v1533
      %v1580 = vpack.c.bf16 %v1536, %v1534
      %v1581 = vpack.c.bf16 %v1539, %v1537
      %v1582 = vpack.c.bf16 %v1540, %v1538
      %v1583 = vpack.c.bf16 %v1543, %v1541
      %v1584 = vpack.c.bf16 %v1544, %v1542
      %v1585 = vpack.c.bf16 %v1547, %v1545
      %v1586 = vpack.c.bf16 %v1548, %v1546
      %v1587 = vpack.c.bf16 %v1551, %v1549
      %v1588 = vpack.c.bf16 %v1552, %v1550
      %v1589 = vpack.c.bf16 %v1555, %v1553
      %v1590 = vpack.c.bf16 %v1556, %v1554
      %v1591 = vpack.c.bf16 %v1559, %v1557
      %v1592 = vpack.c.bf16 %v1560, %v1558
      %v1594 = vmul.bf16 %v1561, 1069105081
      %v1595 = vpow.bf16.pop %v1594
      %v1597 = vmul.bf16 %v1562, 1069105081
      %v1598 = vpow.bf16.pop %v1597
      %v1600 = vmul.bf16 %v1563, 1069105081
      %v1601 = vpow.bf16.pop %v1600
      %v1603 = vmul.bf16 %v1564, 1069105081
      %v1604 = vpow.bf16.pop %v1603
      %v1606 = vmul.bf16 %v1565, 1069105081
      %v1607 = vpow.bf16.pop %v1606
      %v1609 = vmul.bf16 %v1566, 1069105081
      %v1610 = vpow.bf16.pop %v1609
      %v1612 = vmul.bf16 %v1567, 1069105081
      %v1613 = vpow.bf16.pop %v1612
      %v1615 = vmul.bf16 %v1568, 1069105081
      %v1616 = vpow.bf16.pop %v1615
      %v1618 = vmul.bf16 %v1569, 1069105081
      %v1619 = vpow.bf16.pop %v1618
      %v1621 = vmul.bf16 %v1570, 1069105081
      %v1622 = vpow.bf16.pop %v1621
      %v1624 = vmul.bf16 %v1571, 1069105081
      %v1625 = vpow.bf16.pop %v1624
      %v1627 = vmul.bf16 %v1572, 1069105081
      %v1628 = vpow.bf16.pop %v1627
      %v1630 = vmul.bf16 %v1573, 1069105081
      %v1631 = vpow.bf16.pop %v1630
      %v1633 = vmul.bf16 %v1574, 1069105081
      %v1634 = vpow.bf16.pop %v1633
      %v1636 = vmul.bf16 %v1575, 1069105081
      %v1637 = vpow.bf16.pop %v1636
      %v1639 = vmul.bf16 %v1576, 1069105081
      %v1640 = vpow.bf16.pop %v1639
      %v1642 = vmul.bf16 %v1577, 1069105081
      %v1643 = vpow.bf16.pop %v1642
      %v1645 = vmul.bf16 %v1578, 1069105081
      %v1646 = vpow.bf16.pop %v1645
      %v1648 = vmul.bf16 %v1579, 1069105081
      %v1649 = vpow.bf16.pop %v1648
      %v1651 = vmul.bf16 %v1580, 1069105081
      %v1652 = vpow.bf16.pop %v1651
      %v1654 = vmul.bf16 %v1581, 1069105081
      %v1655 = vpow.bf16.pop %v1654
      %v1657 = vmul.bf16 %v1582, 1069105081
      %v1658 = vpow.bf16.pop %v1657
      %v1660 = vmul.bf16 %v1583, 1069105081
      %v1661 = vpow.bf16.pop %v1660
      %v1663 = vmul.bf16 %v1584, 1069105081
      %v1664 = vpow.bf16.pop %v1663
      %v1666 = vmul.bf16 %v1585, 1069105081
      %v1667 = vpow.bf16.pop %v1666
      %v1669 = vmul.bf16 %v1586, 1069105081
      %v1670 = vpow.bf16.pop %v1669
      %v1672 = vmul.bf16 %v1587, 1069105081
      %v1673 = vpow.bf16.pop %v1672
      %v1675 = vmul.bf16 %v1588, 1069105081
      %v1676 = vpow.bf16.pop %v1675
      %v1678 = vmul.bf16 %v1589, 1069105081
      %v1679 = vpow.bf16.pop %v1678
      %v1681 = vmul.bf16 %v1590, 1069105081
      %v1682 = vpow.bf16.pop %v1681
      %v1684 = vmul.bf16 %v1591, 1069105081
      %v1685 = vpow.bf16.pop %v1684
      %v1687 = vmul.bf16 %v1592, 1069105081
      %v1688 = vpow.bf16.pop %v1687
      %s1689 = scalar_lea.vmem %s292, 4
      %v1690 = vld [vmem:[%s1689] sm:$0xf]
      %v1693 = vunpack.c.l.s4 1983009808
      %v1694 = vunpack.c.0.s8 %v1693
      %v1695 = vlaneseq
      %v1696 = vshrl.u32 %v1695, 7
      %v1697 = vsub.s32 %v1694, %v1696
      %v1698 = vrot.slane %v1690, %v1697
      %v1699 = vcombine.high %v1698, %v1698
      %1702 = vmatprep.subr.bf16.mxu0 %v1598
      %1703 = vmatpush1.bf16.msra.mxu0 %v1595
      %1704 = vmatprep.subr.bf16.mxu0 %v1604
      %1705 = vmatpush1.bf16.msra.mxu0 %v1601
      %1706 = vmatprep.subr.bf16.mxu0 %v1610
      %1707 = vmatpush1.bf16.msra.mxu0 %v1607
      %1708 = vmatprep.subr.bf16.mxu0 %v1616
      %1709 = vmatpush1.bf16.msra.mxu0 %v1613
      %1710 = vmatprep.subr.bf16.mxu0 %v1622
      %1711 = vmatpush1.bf16.msra.mxu0 %v1619
      %1712 = vmatprep.subr.bf16.mxu0 %v1628
      %1713 = vmatpush1.bf16.msra.mxu0 %v1625
      %1714 = vmatprep.subr.bf16.mxu0 %v1634
      %1715 = vmatpush1.bf16.msra.mxu0 %v1631
      %1716 = vmatprep.subr.bf16.mxu0 %v1640
      %1717 = vmatpush1.bf16.msra.mxu0 %v1637
      %1718 = vmatprep.subr.bf16.mxu0 %v1646
      %1719 = vmatpush1.bf16.msra.mxu0 %v1643
      %1720 = vmatprep.subr.bf16.mxu0 %v1652
      %1721 = vmatpush1.bf16.msra.mxu0 %v1649
      %1722 = vmatprep.subr.bf16.mxu0 %v1658
      %1723 = vmatpush1.bf16.msra.mxu0 %v1655
      %1724 = vmatprep.subr.bf16.mxu0 %v1664
      %1725 = vmatpush1.bf16.msra.mxu0 %v1661
      %1726 = vmatprep.subr.bf16.mxu0 %v1670
      %1727 = vmatpush1.bf16.msra.mxu0 %v1667
      %1728 = vmatprep.subr.bf16.mxu0 %v1676
      %1729 = vmatpush1.bf16.msra.mxu0 %v1673
      %1730 = vmatprep.subr.bf16.mxu0 %v1682
      %1731 = vmatpush1.bf16.msra.mxu0 %v1679
      %1732 = vmatprep.subr.bf16.mxu0 %v1688
      %1733 = vmatpush1.bf16.msra.mxu0 %v1685
      %1734 = vmatprep.mubr.bf16.mxu0 %v1699
      %1735 = vmatmul.mubr.bf16.gmra.mrb[0].mxu0 %v1698
      %v1736 = vpop.f32.mrb[0].mxu0
      %v1737 = vadd.f32 0.0, %v1736
      %v1738 = vpop.f32.mrb[0].mxu0
      %v1739 = vadd.f32 0.0, %v1738
      %v1740 = vpop.f32.mrb[0].mxu0
      %v1741 = vpop.f32.mrb[0].mxu0
      %1742 = vdwg.mxu0
      %s1743 = scalar_lea.vmem [#allocation3], 8
      %v1744 = vld [vmem:[%s1743] sm:$0x77]
      %v1746 = vlaneseq
      %v1747 = vshrl.u32 %v1746, 7
      %v1748 = vsub.s32 0, %v1747
      %v1749 = vrot.slane %v1485, %v1748
      %v1750 = vlaneseq
      %v1751 = vshrl.u32 %v1750, 7
      %v1752 = vsub.s32 1, %v1751
      %v1753 = vrot.slane %v1485, %v1752
      %v1757 = vcombine.high %v1744, %v1744
      %v1759 = vmul.f32 %v1749, %v1744
      %v1760 = vmul.f32 %v1753, %v1757
      %v1761 = vadd.f32 %v1759, %v1737
      %v1762 = vadd.f32 %v1760, %v1739
      %v1765 = vcombine.low %v1761, %v1762
      %1767 = vst [vmem:[%s1743] sm:$0x77] %v1765
      %1768 = vst.msk [vmem:[%s1388] sm:$0x3] %vm1043, %v1482
      // Predicated region
      $region37: #{attention_augmented_conv2d.7} parent=31 // pred_check
        %p1769 = pneg %p308
      $region38: #{attention_augmented_conv2d.7} parent=31 // pred_check_branch
        %1771 = sbr.rel (%p1769) target = $region40
      $region39: #{attention_augmented_conv2d.7} parent=31 // pred_region
        %v1772 = vld [vmem:[#allocation3] sm:$0x77]
        %v1773 = vld [vmem:[#allocation3 + $0x8] sm:$0x77]
        %v1774 = vrcp.pop %v1772
        %v1775 = vrcp.pop %v1773
        %v1778 = vlaneseq
        %v1779 = vshrl.u32 %v1778, 7
        %v1780 = vsub.s32 2, %v1779
        %v1781 = vrot.slane %v1774, %v1780
        %v1782 = vlaneseq
        %v1783 = vshrl.u32 %v1782, 7
        %v1784 = vsub.s32 6, %v1783
        %v1785 = vrot.slane %v1774, %v1784
        %v1786 = vlaneseq
        %v1787 = vshrl.u32 %v1786, 7
        %v1788 = vsub.s32 2, %v1787
        %v1789 = vrot.slane %v1775, %v1788
        %v1790 = vlaneseq
        %v1791 = vshrl.u32 %v1790, 7
        %v1792 = vsub.s32 6, %v1791
        %v1793 = vrot.slane %v1775, %v1792
        %v1798 = vlaneseq
        %v1799 = vshrl.u32 %v1798, 7
        %v1800 = vsub.s32 2, %v1799
        %v1801 = vrot.slane %v1781, %v1800
        %v1802 = vlaneseq
        %v1803 = vshrl.u32 %v1802, 7
        %v1804 = vsub.s32 2, %v1803
        %v1805 = vrot.slane %v1785, %v1804
        %v1806 = vlaneseq
        %v1807 = vshrl.u32 %v1806, 7
        %v1808 = vsub.s32 2, %v1807
        %v1809 = vrot.slane %v1789, %v1808
        %v1810 = vlaneseq
        %v1811 = vshrl.u32 %v1810, 7
        %v1812 = vsub.s32 2, %v1811
        %v1813 = vrot.slane %v1793, %v1812
        %v1818 = vcombine.low %v1801, %v1805
        %v1819 = vcombine.low %v1809, %v1813
        %v1822 = vmul.f32 %v1772, %v1818
        %v1823 = vmul.f32 %v1773, %v1819
        %v1827 = vunpack.c.l.s4 1983009808
        %v1828 = vunpack.c.0.s8 %v1827
        %v1829 = vlaneseq
        %v1830 = vshrl.u32 %v1829, 7
        %v1831 = vsub.s32 %v1828, %v1830
        %v1832 = vrot.slane %v1822, %v1831
        %v1834 = vunpack.c.l.s4 1983009808
        %v1835 = vunpack.c.0.s8 %v1834
        %v1836 = vlaneseq
        %v1837 = vshrl.u32 %v1836, 7
        %v1838 = vsub.s32 %v1835, %v1837
        %v1839 = vrot.slane %v1823, %v1838
        %1842 = vst [vmem:[%s304] sm:$0xf] %v1832
        %1843 = vst [vmem:[%s304 + $0x4] sm:$0xf] %v1839
      $region40: #{attention_augmented_conv2d.7} parent=31 // pred_fallthru
        _
      %s1844 = smul.u32 2, %s19
      %s1845 = smul.u32 2, %s20
      %p1846 = scmp.lt.s32.totalorder %s1844, 3
      %s1847 = scalar_select %p1846, %s1844, 3
      %p1848 = scmp.lt.s32.totalorder %s1845, 1
      %s1849 = scalar_select %p1848, %s1845, 1
      %s1850 = smul.addr %s1847, 2
      %s1851 = sadd.s32 %s1849, %s1850
      %s1852 = smul.addr %s1851, 2
      %s1853 = scalar_lea.vmem %s3, %s1852
      // Predicated region
      $region41: #{attention_augmented_conv2d.7} parent=31 // pred_check
        %p1854 = pneg %p137
      $region42: #{attention_augmented_conv2d.7} parent=31 // pred_check_branch
        %1856 = sbr.rel (%p1854) target = $region44
      $region43: #{attention_augmented_conv2d.7} parent=31 // pred_region
        %s1857 = smul.u32 2, %s19
        %s1858 = smul.u32 2, %s20
      $region44: #{attention_augmented_conv2d.7} parent=31 // pred_fallthru
        _
    $region32: #{attention_augmented_conv2d.7} parent=5 // pred_fallthru
      _
    %p1859 = scmp.le.s32.totalorder 2, %s9
    // Predicated region
    $region45: #{attention_augmented_conv2d.7} parent=5 // pred_check
      %p1860 = pneg %p1859
    $region46: #{attention_augmented_conv2d.7} parent=5 // pred_check_branch
      %1862 = sbr.rel (%p1860) target = $region48
    $region47: #{attention_augmented_conv2d.7} parent=5 // pred_region
      %s1863 = ssub.s32 %s9, 2
      // Predicated region
      $region49: #{attention_augmented_conv2d.7} parent=47 // pred_check
        %p1864 = pneg %p143
      $region50: #{attention_augmented_conv2d.7} parent=47 // pred_check_branch
        %1866 = sbr.rel (%p1864) target = $region52
      $region51: #{attention_augmented_conv2d.7} parent=47 // pred_region
        %s1867 = smul.u32 2, %s22
        %s1868 = smul.u32 2, %s23
        %p1869 = scmp.lt.s32.totalorder %s1867, 3
        %s1870 = scalar_select %p1869, %s1867, 3
        %p1871 = scmp.lt.s32.totalorder %s1868, 1
        %s1872 = scalar_select %p1871, %s1868, 1
        %s1873 = smul.addr %s1870, 2
        %s1874 = sadd.s32 %s1872, %s1873
        %s1875 = smul.addr %s1874, 2
        %s1876 = scalar_lea.vmem %s3, %s1875
      $region52: #{attention_augmented_conv2d.7} parent=47 // pred_fallthru
        _
    $region48: #{attention_augmented_conv2d.7} parent=5 // pred_fallthru
      _
  $region6: #{attention_augmented_conv2d.7} parent=0 // loop_footer
    %s13 = sadd.s32 1, %s9
  $region7: #{attention_augmented_conv2d.7} parent=0 // loop_footer_branch
    %8 = sbr.rel target = $region3
  $region8: #{attention_augmented_conv2d.7} parent=0 // loop_exit
    _

</llo_original>
